<compile_context>
chip_gen: v5e
topology: v5e:2x2
jax: 0.10.0
libtpu: 0.0.40
codegen_flags: <defaults>
</compile_context>

<pallas_src>
import numpy as np
import jax
import jax.numpy as jnp
from jax.experimental import pallas as pl
from jax.experimental.pallas import tpu as pltpu

DIM = 4                       # discriminator width (channels: 1 -> 4 -> 8 -> 16)
IMG = 28
FEAT = 4 * 4 * 4 * DIM        # 256 = flattened features before the final Linear
OUT_LANES = 128               # lane-dense padded width of the final output

# Row widths of the NHWC-per-sample flattened activation slabs (channel fastest)
RW_X = 28 * 1                 # 28   (input rows)
RW_H1 = 14 * DIM              # 56   (conv1 output rows)
RW_H2 = 7 * (2 * DIM)         # 56   (conv2 output rows)
RW_H3 = 4 * (4 * DIM)         # 64   (conv3 output rows)


# ----------------------------------------------------------------------------
# Kernel: full discriminator forward for one batch tile.
#   x:  (tm, 784) f32      k1: (140, 56) bf16   b1: (1, 56) f32
#                          k2: (280, 56) bf16   b2: (1, 56) f32
#                          k3: (280, 64) bf16   b3: (1, 64) f32
#   wl: (256, 128) bf16 (permuted + lane-padded Linear weight), bl: (1,128) f32
#   o:  (tm, 128) f32 (logit in lane 0)
# Scratch: bf16 slabs holding the vertically zero-padded activations.
# ----------------------------------------------------------------------------
def _discriminator_kernel(x_ref, k1_ref, b1_ref, k2_ref, b2_ref, k3_ref, b3_ref,
                          wl_ref, bl_ref, o_ref, xp_ref, h1p_ref, h2p_ref):
    tm = x_ref.shape[0]
    bf16 = jnp.bfloat16
    f32 = jnp.float32

    # -- stage 0: cast x to bf16 in-kernel, write into a 32x28 (flat 896)
    #    slab with 2 zero rows of vertical padding top & bottom.
    xp_ref[:, :2 * RW_X] = jnp.zeros((tm, 2 * RW_X), bf16)
    xp_ref[:, 30 * RW_X:] = jnp.zeros((tm, 2 * RW_X), bf16)
    xp_ref[:, 2 * RW_X:30 * RW_X] = x_ref[...].astype(bf16)

    # -- conv1 (banded): one (tm,140)@(140,56) matmul per output row oy.
    h1p_ref[:, :2 * RW_H1] = jnp.zeros((tm, 2 * RW_H1), bf16)
    h1p_ref[:, 16 * RW_H1:] = jnp.zeros((tm, 2 * RW_H1), bf16)
    for oy in range(14):
        band = xp_ref[:, 2 * oy * RW_X:(2 * oy + 5) * RW_X]            # (tm,140)
        p = jnp.dot(band, k1_ref[...], preferred_element_type=f32)      # (tm,56)
        p = jnp.maximum(p + b1_ref[...], 0.0)
        h1p_ref[:, (2 + oy) * RW_H1:(3 + oy) * RW_H1] = p.astype(bf16)

    # -- conv2 (banded): one (tm,280)@(280,56) matmul per output row oy.
    h2p_ref[:, :2 * RW_H2] = jnp.zeros((tm, 2 * RW_H2), bf16)
    h2p_ref[:, 9 * RW_H2:] = jnp.zeros((tm, 2 * RW_H2), bf16)
    for oy in range(7):
        band = h1p_ref[:, 2 * oy * RW_H1:(2 * oy + 5) * RW_H1]          # (tm,280)
        p = jnp.dot(band, k2_ref[...], preferred_element_type=f32)      # (tm,56)
        p = jnp.maximum(p + b2_ref[...], 0.0)
        h2p_ref[:, (2 + oy) * RW_H2:(3 + oy) * RW_H2] = p.astype(bf16)

    # -- conv3 (banded) fused with the final Linear: accumulate each 64-wide
    #    feature-row piece against the matching row slice of wl (no (tm,256)
    #    feature map is materialized).
    acc = jnp.zeros((tm, OUT_LANES), f32)
    for oy in range(4):
        band = h2p_ref[:, 2 * oy * RW_H2:(2 * oy + 5) * RW_H2]          # (tm,280)
        p = jnp.dot(band, k3_ref[...], preferred_element_type=f32)      # (tm,64)
        p = jnp.maximum(p + b3_ref[...], 0.0)
        acc = acc + jnp.dot(p.astype(bf16),
                            wl_ref[oy * RW_H3:(oy + 1) * RW_H3, :],
                            preferred_element_type=f32)                 # (tm,128)
    o_ref[...] = acc + bl_ref[...]


def discriminator_forward(x, prep):
    """x: (B, 1, 28, 28) or (B, 784) float32.  Returns (B,) logits."""
    B = x.shape[0]
    x2d = x.reshape(B, IMG * IMG)            # reshape only; bf16 cast is in-kernel
    tm = B if B <= 256 else 256              # batch tile (sweep 256..1024 for training)
    grid = (pl.cdiv(B, tm),)
    const = lambda i: (0, 0)                 # weights/biases: fetched once, VMEM-resident

    out = pl.pallas_call(
        _discriminator_kernel,
        out_shape=jax.ShapeDtypeStruct((B, OUT_LANES), jnp.float32),
        grid=grid,
        in_specs=[
            pl.BlockSpec((tm, IMG * IMG), lambda i: (i, 0)),
            pl.BlockSpec(prep["k1"].shape, const),
            pl.BlockSpec(prep["b1"].shape, const),
            pl.BlockSpec(prep["k2"].shape, const),
            pl.BlockSpec(prep["b2"].shape, const),
            pl.BlockSpec(prep["k3"].shape, const),
            pl.BlockSpec(prep["b3"].shape, const),
            pl.BlockSpec(prep["wl"].shape, const),
            pl.BlockSpec(prep["bl"].shape, const),
        ],
        out_specs=pl.BlockSpec((tm, OUT_LANES), lambda i: (i, 0)),
        scratch_shapes=[
            pltpu.VMEM((tm, 32 * RW_X), jnp.bfloat16),    # padded input  (32 x 28)
            pltpu.VMEM((tm, 18 * RW_H1), jnp.bfloat16),   # padded conv1  (18 x 56)
            pltpu.VMEM((tm, 11 * RW_H2), jnp.bfloat16),   # padded conv2  (11 x 56)
        ],
        compiler_params=pltpu.CompilerParams(
            dimension_semantics=("parallel",)),           # both v7x TCs split batch
    )(x2d, prep["k1"], prep["b1"], prep["k2"], prep["b2"],
      prep["k3"], prep["b3"], prep["wl"], prep["bl"])
    return out[:, 0]


# ----------------------------------------------------------------------------
# One-time weight preprocessing: lower each stride-2/pad-2 conv to its
# oy-invariant vertical-band operator (pure parameter reshuffling, no FLOPs).
# ----------------------------------------------------------------------------
def conv_band_matrix(w, w_in):
    """w: PyTorch Conv2d weight (Cout, Cin, 5, 5).  Returns K of shape
    (5*w_in*Cin, w_out*Cout) such that, for the NHWC-flattened and vertically
    zero-padded input slab, the slice of 5 consecutive rows starting at padded
    row 2*oy times K reproduces output row oy of Conv2d(stride=2, padding=2)."""
    w_np = np.asarray(w, np.float32)
    c_out, c_in, k, _ = w_np.shape
    w_out = (w_in + 2 * 2 - k) // 2 + 1
    ky, ix, ci, ox, co = np.meshgrid(
        np.arange(k), np.arange(w_in), np.arange(c_in),
        np.arange(w_out), np.arange(c_out), indexing="ij")
    kx = ix - 2 * ox + 2                       # horizontal tap index (stride 2, pad 2)
    valid = (kx >= 0) & (kx < k)               # out-of-range taps == zero padding
    rows = ((ky * w_in + ix) * c_in + ci)[valid]
    cols = (ox * c_out + co)[valid]
    mat = np.zeros((k * w_in * c_in, w_out * c_out), np.float32)
    mat[rows, cols] = w_np[co[valid], ci[valid], ky[valid], kx[valid]]
    return mat


def prepare_params(params):
    k1 = conv_band_matrix(params["w_c1"], 28)   # (140, 56)  ~16 KB bf16
    k2 = conv_band_matrix(params["w_c2"], 14)   # (280, 56)  ~31 KB
    k3 = conv_band_matrix(params["w_c3"], 7)    # (280, 64)  ~36 KB
    # Final Linear expects PyTorch NCHW flattening j = co*16 + oy*4 + ox; our
    # features are NHWC-flattened r = (oy*4+ox)*16 + co -> permute rows, then
    # pad to 128 output lanes (real weight in column 0) for an unmasked store.
    c3 = 4 * DIM
    r = np.arange(FEAT)
    perm = (r % c3) * (4 * 4) + (r // c3)
    wl = np.zeros((FEAT, OUT_LANES), np.float32)
    wl[:, 0] = np.asarray(params["w_out"], np.float32)[0, perm]
    bl = np.zeros((1, OUT_LANES), np.float32)
    bl[0, 0] = float(np.asarray(params["b_out"], np.float32)[0])
    return {
        "k1": jnp.asarray(k1, jnp.bfloat16),
        "k2": jnp.asarray(k2, jnp.bfloat16),
        "k3": jnp.asarray(k3, jnp.bfloat16),
        "wl": jnp.asarray(wl, jnp.bfloat16),
        "b1": jnp.asarray(np.tile(np.asarray(params["b_c1"], np.float32), 14)[None, :]),
        "b2": jnp.asarray(np.tile(np.asarray(params["b_c2"], np.float32), 7)[None, :]),
        "b3": jnp.asarray(np.tile(np.asarray(params["b_c3"], np.float32), 4)[None, :]),
        "bl": jnp.asarray(bl),
    }


# ----------------------------------------------------------------------------
# Deterministic parameter init (PyTorch-style uniform(+-1/sqrt(fan_in)))
# ----------------------------------------------------------------------------
def init_params(key):
    ks = jax.random.split(key, 8)

    def u(k, shape, fan_in):
        bound = 1.0 / np.sqrt(fan_in)
        return jax.random.uniform(k, shape, jnp.float32, -bound, bound)

    return {
        "w_c1": u(ks[0], (DIM, 1, 5, 5), 1 * 25),
        "b_c1": u(ks[1], (DIM,), 1 * 25),
        "w_c2": u(ks[2], (2 * DIM, DIM, 5, 5), DIM * 25),
        "b_c2": u(ks[3], (2 * DIM,), DIM * 25),
        "w_c3": u(ks[4], (4 * DIM, 2 * DIM, 5, 5), 2 * DIM * 25),
        "b_c3": u(ks[5], (4 * DIM,), 2 * DIM * 25),
        "w_out": u(ks[6], (1, FEAT), FEAT),
        "b_out": u(ks[7], (1,), FEAT),
    }


# ----------------------------------------------------------------------------
# NumPy reference (direct PyTorch Conv2d semantics, NCHW)
# ----------------------------------------------------------------------------
def _conv2d_ref(x, w, b, stride, pad):
    B, Cin, H, W = x.shape
    Cout, _, K, _ = w.shape
    xp = np.zeros((B, Cin, H + 2 * pad, W + 2 * pad), np.float32)
    xp[:, :, pad:pad + H, pad:pad + W] = x
    Ho = (H + 2 * pad - K) // stride + 1
    Wo = (W + 2 * pad - K) // stride + 1
    y = np.zeros((B, Cout, Ho, Wo), np.float32)
    for ky in range(K):
        for kx in range(K):
            patch = xp[:, :, ky:ky + stride * (Ho - 1) + 1:stride,
                           kx:kx + stride * (Wo - 1) + 1:stride]
            y += np.einsum("bcij,oc->boij", patch, w[:, :, ky, kx])
    return y + b.reshape(1, Cout, 1, 1)


def reference_forward(x, params):
    p = {k: np.asarray(v, np.float32) for k, v in params.items()}
    h = np.asarray(x, np.float32).reshape(-1, 1, 28, 28)
    h = np.maximum(_conv2d_ref(h, p["w_c1"], p["b_c1"], 2, 2), 0.0)
    h = np.maximum(_conv2d_ref(h, p["w_c2"], p["b_c2"], 2, 2), 0.0)
    h = np.maximum(_conv2d_ref(h, p["w_c3"], p["b_c3"], 2, 2), 0.0)
    h = h.reshape(-1, FEAT)                       # NCHW flatten, like .view()
    out = h @ p["w_out"].T + p["b_out"]
    return out.reshape(-1)


if __name__ == "__main__":
    key = jax.random.PRNGKey(0)
    pk, xk = jax.random.split(key)
    params = init_params(pk)
    x = jax.random.normal(xk, (2, 1, 28, 28), jnp.float32)   # batch=2, MNIST-sized

    prep = prepare_params(params)                # one-time weight lowering (~150 KB)
    fwd = jax.jit(discriminator_forward)
    out = fwd(x, prep)
    jax.block_until_ready(out)
    assert out.shape == (2,), out.shape

    ref = reference_forward(np.asarray(x), params)
    err = float(np.max(np.abs(np.asarray(out) - ref)))
    if not np.allclose(np.asarray(out), ref, atol=3e-2, rtol=0):
        raise AssertionError(f"mismatch vs reference: max abs diff {err}")
    print("KERNEL_OK")
</pallas_src>

<mosaic_0001>
module attributes {stable_mosaic.version = 11 : i64} {
  func.func @_discriminator_kernel(%arg0: i32, %arg1: memref<2x784xf32, #tpu.memory_space<vmem>>, %arg2: memref<140x56xbf16, #tpu.memory_space<vmem>>, %arg3: memref<1x56xf32, #tpu.memory_space<vmem>>, %arg4: memref<280x56xbf16, #tpu.memory_space<vmem>>, %arg5: memref<1x56xf32, #tpu.memory_space<vmem>>, %arg6: memref<280x64xbf16, #tpu.memory_space<vmem>>, %arg7: memref<1x64xf32, #tpu.memory_space<vmem>>, %arg8: memref<256x128xbf16, #tpu.memory_space<vmem>>, %arg9: memref<1x128xf32, #tpu.memory_space<vmem>>, %arg10: memref<2x128xf32, #tpu.memory_space<vmem>>, %arg11: memref<2x896xbf16, #tpu.memory_space<vmem>>, %arg12: memref<2x1008xbf16, #tpu.memory_space<vmem>>, %arg13: memref<2x616xbf16, #tpu.memory_space<vmem>>) attributes {dimension_semantics = [#tpu.dimension_semantics<parallel>], iteration_bounds = array<i64: 1>, scalar_prefetch = 0 : i64, scratch_operands = 3 : i64, tpu.core_type = #tpu.core_type<tc>, window_params = [{transform_indices = @transform_0, window_bounds = array<i64: 2, 784>}, {pipeline_mode = #tpu.pipeline_mode<synchronous>, transform_indices = @transform_1, window_bounds = array<i64: 140, 56>}, {pipeline_mode = #tpu.pipeline_mode<synchronous>, transform_indices = @transform_2, window_bounds = array<i64: 1, 56>}, {pipeline_mode = #tpu.pipeline_mode<synchronous>, transform_indices = @transform_3, window_bounds = array<i64: 280, 56>}, {pipeline_mode = #tpu.pipeline_mode<synchronous>, transform_indices = @transform_4, window_bounds = array<i64: 1, 56>}, {pipeline_mode = #tpu.pipeline_mode<synchronous>, transform_indices = @transform_5, window_bounds = array<i64: 280, 64>}, {pipeline_mode = #tpu.pipeline_mode<synchronous>, transform_indices = @transform_6, window_bounds = array<i64: 1, 64>}, {pipeline_mode = #tpu.pipeline_mode<synchronous>, transform_indices = @transform_7, window_bounds = array<i64: 256, 128>}, {pipeline_mode = #tpu.pipeline_mode<synchronous>, transform_indices = @transform_8, window_bounds = array<i64: 1, 128>}, {transform_indices = @transform_9, window_bounds = array<i64: 2, 128>}]} {
    %cst = arith.constant 0.000000e+00 : bf16
    %0 = vector.broadcast %cst : bf16 to vector<2x56xbf16>
    %c0 = arith.constant 0 : index
    %c0_0 = arith.constant 0 : index
    %1 = vector.load %arg11[%c0, %c0_0] : memref<2x896xbf16, #tpu.memory_space<vmem>>, vector<2x56xbf16>
    tpu.vector_store %arg11[%c0, %c0_0], %0 {strides = array<i32>} : memref<2x896xbf16, #tpu.memory_space<vmem>>, vector<2x56xbf16>,
    %cst_1 = arith.constant 0.000000e+00 : bf16
    %2 = vector.broadcast %cst_1 : bf16 to vector<2x56xbf16>
    %c0_2 = arith.constant 0 : index
    %c840 = arith.constant 840 : index
    %3 = vector.load %arg11[%c0_2, %c840] : memref<2x896xbf16, #tpu.memory_space<vmem>>, vector<2x56xbf16>
    tpu.vector_store %arg11[%c0_2, %c840], %2 {strides = array<i32>} : memref<2x896xbf16, #tpu.memory_space<vmem>>, vector<2x56xbf16>,
    %c0_3 = arith.constant 0 : index
    %c0_4 = arith.constant 0 : index
    %4 = vector.load %arg1[%c0_3, %c0_4] : memref<2x784xf32, #tpu.memory_space<vmem>>, vector<2x784xf32>
    %5 = arith.truncf %4 : vector<2x784xf32> to vector<2x784xbf16>
    %c0_5 = arith.constant 0 : index
    %c56 = arith.constant 56 : index
    %6 = vector.load %arg11[%c0_5, %c56] : memref<2x896xbf16, #tpu.memory_space<vmem>>, vector<2x784xbf16>
    tpu.vector_store %arg11[%c0_5, %c56], %5 {strides = array<i32>} : memref<2x896xbf16, #tpu.memory_space<vmem>>, vector<2x784xbf16>,
    %cst_6 = arith.constant 0.000000e+00 : bf16
    %7 = vector.broadcast %cst_6 : bf16 to vector<2x112xbf16>
    %c0_7 = arith.constant 0 : index
    %c0_8 = arith.constant 0 : index
    %8 = vector.load %arg12[%c0_7, %c0_8] : memref<2x1008xbf16, #tpu.memory_space<vmem>>, vector<2x112xbf16>
    tpu.vector_store %arg12[%c0_7, %c0_8], %7 {strides = array<i32>} : memref<2x1008xbf16, #tpu.memory_space<vmem>>, vector<2x112xbf16>,
    %cst_9 = arith.constant 0.000000e+00 : bf16
    %9 = vector.broadcast %cst_9 : bf16 to vector<2x112xbf16>
    %c0_10 = arith.constant 0 : index
    %c896 = arith.constant 896 : index
    %10 = vector.load %arg12[%c0_10, %c896] : memref<2x1008xbf16, #tpu.memory_space<vmem>>, vector<2x112xbf16>
    tpu.vector_store %arg12[%c0_10, %c896], %9 {strides = array<i32>} : memref<2x1008xbf16, #tpu.memory_space<vmem>>, vector<2x112xbf16>,
    %c0_11 = arith.constant 0 : index
    %c0_12 = arith.constant 0 : index
    %11 = vector.load %arg11[%c0_11, %c0_12] : memref<2x896xbf16, #tpu.memory_space<vmem>>, vector<2x140xbf16>
    %c0_13 = arith.constant 0 : index
    %c0_14 = arith.constant 0 : index
    %12 = vector.load %arg2[%c0_13, %c0_14] : memref<140x56xbf16, #tpu.memory_space<vmem>>, vector<140x56xbf16>
    %cst_15 = arith.constant dense<0.000000e+00> : vector<2x56xf32>
    %13 = tpu.matmul %11, %12, %cst_15 {dimension_numbers = #tpu.dot_dimension_numbers<[1], [0], [0], [1], [0, 0, 1, 1], [], []>} : vector<2x140xbf16>, vector<140x56xbf16>, vector<2x56xf32> -> vector<2x56xf32>
    %c0_16 = arith.constant 0 : index
    %c0_17 = arith.constant 0 : index
    %14 = vector.load %arg3[%c0_16, %c0_17] : memref<1x56xf32, #tpu.memory_space<vmem>>, vector<1x56xf32>
    %15 = vector.broadcast %14 : vector<1x56xf32> to vector<2x56xf32>
    %16 = arith.addf %13, %15 : vector<2x56xf32>
    %cst_18 = arith.constant 0.000000e+00 : f32
    %17 = vector.broadcast %cst_18 : f32 to vector<2x56xf32>
    %18 = arith.maximumf %16, %17 : vector<2x56xf32>
    %19 = arith.truncf %18 : vector<2x56xf32> to vector<2x56xbf16>
    %c0_19 = arith.constant 0 : index
    %c112 = arith.constant 112 : index
    %20 = vector.load %arg12[%c0_19, %c112] : memref<2x1008xbf16, #tpu.memory_space<vmem>>, vector<2x56xbf16>
    tpu.vector_store %arg12[%c0_19, %c112], %19 {strides = array<i32>} : memref<2x1008xbf16, #tpu.memory_space<vmem>>, vector<2x56xbf16>,
    %c0_20 = arith.constant 0 : index
    %c56_21 = arith.constant 56 : index
    %21 = vector.load %arg11[%c0_20, %c56_21] : memref<2x896xbf16, #tpu.memory_space<vmem>>, vector<2x140xbf16>
    %c0_22 = arith.constant 0 : index
    %c0_23 = arith.constant 0 : index
    %22 = vector.load %arg2[%c0_22, %c0_23] : memref<140x56xbf16, #tpu.memory_space<vmem>>, vector<140x56xbf16>
    %cst_24 = arith.constant dense<0.000000e+00> : vector<2x56xf32>
    %23 = tpu.matmul %21, %22, %cst_24 {dimension_numbers = #tpu.dot_dimension_numbers<[1], [0], [0], [1], [0, 0, 1, 1], [], []>} : vector<2x140xbf16>, vector<140x56xbf16>, vector<2x56xf32> -> vector<2x56xf32>
    %c0_25 = arith.constant 0 : index
    %c0_26 = arith.constant 0 : index
    %24 = vector.load %arg3[%c0_25, %c0_26] : memref<1x56xf32, #tpu.memory_space<vmem>>, vector<1x56xf32>
    %25 = vector.broadcast %24 : vector<1x56xf32> to vector<2x56xf32>
    %26 = arith.addf %23, %25 : vector<2x56xf32>
    %cst_27 = arith.constant 0.000000e+00 : f32
    %27 = vector.broadcast %cst_27 : f32 to vector<2x56xf32>
    %28 = arith.maximumf %26, %27 : vector<2x56xf32>
    %29 = arith.truncf %28 : vector<2x56xf32> to vector<2x56xbf16>
    %c0_28 = arith.constant 0 : index
    %c168 = arith.constant 168 : index
    %30 = vector.load %arg12[%c0_28, %c168] : memref<2x1008xbf16, #tpu.memory_space<vmem>>, vector<2x56xbf16>
    tpu.vector_store %arg12[%c0_28, %c168], %29 {strides = array<i32>} : memref<2x1008xbf16, #tpu.memory_space<vmem>>, vector<2x56xbf16>,
    %c0_29 = arith.constant 0 : index
    %c112_30 = arith.constant 112 : index
    %31 = vector.load %arg11[%c0_29, %c112_30] : memref<2x896xbf16, #tpu.memory_space<vmem>>, vector<2x140xbf16>
    %c0_31 = arith.constant 0 : index
    %c0_32 = arith.constant 0 : index
    %32 = vector.load %arg2[%c0_31, %c0_32] : memref<140x56xbf16, #tpu.memory_space<vmem>>, vector<140x56xbf16>
    %cst_33 = arith.constant dense<0.000000e+00> : vector<2x56xf32>
    %33 = tpu.matmul %31, %32, %cst_33 {dimension_numbers = #tpu.dot_dimension_numbers<[1], [0], [0], [1], [0, 0, 1, 1], [], []>} : vector<2x140xbf16>, vector<140x56xbf16>, vector<2x56xf32> -> vector<2x56xf32>
    %c0_34 = arith.constant 0 : index
    %c0_35 = arith.constant 0 : index
    %34 = vector.load %arg3[%c0_34, %c0_35] : memref<1x56xf32, #tpu.memory_space<vmem>>, vector<1x56xf32>
    %35 = vector.broadcast %34 : vector<1x56xf32> to vector<2x56xf32>
    %36 = arith.addf %33, %35 : vector<2x56xf32>
    %cst_36 = arith.constant 0.000000e+00 : f32
    %37 = vector.broadcast %cst_36 : f32 to vector<2x56xf32>
    %38 = arith.maximumf %36, %37 : vector<2x56xf32>
    %39 = arith.truncf %38 : vector<2x56xf32> to vector<2x56xbf16>
    %c0_37 = arith.constant 0 : index
    %c224 = arith.constant 224 : index
    %40 = vector.load %arg12[%c0_37, %c224] : memref<2x1008xbf16, #tpu.memory_space<vmem>>, vector<2x56xbf16>
    tpu.vector_store %arg12[%c0_37, %c224], %39 {strides = array<i32>} : memref<2x1008xbf16, #tpu.memory_space<vmem>>, vector<2x56xbf16>,
    %c0_38 = arith.constant 0 : index
    %c168_39 = arith.constant 168 : index
    %41 = vector.load %arg11[%c0_38, %c168_39] : memref<2x896xbf16, #tpu.memory_space<vmem>>, vector<2x140xbf16>
    %c0_40 = arith.constant 0 : index
    %c0_41 = arith.constant 0 : index
    %42 = vector.load %arg2[%c0_40, %c0_41] : memref<140x56xbf16, #tpu.memory_space<vmem>>, vector<140x56xbf16>
    %cst_42 = arith.constant dense<0.000000e+00> : vector<2x56xf32>
    %43 = tpu.matmul %41, %42, %cst_42 {dimension_numbers = #tpu.dot_dimension_numbers<[1], [0], [0], [1], [0, 0, 1, 1], [], []>} : vector<2x140xbf16>, vector<140x56xbf16>, vector<2x56xf32> -> vector<2x56xf32>
    %c0_43 = arith.constant 0 : index
    %c0_44 = arith.constant 0 : index
    %44 = vector.load %arg3[%c0_43, %c0_44] : memref<1x56xf32, #tpu.memory_space<vmem>>, vector<1x56xf32>
    %45 = vector.broadcast %44 : vector<1x56xf32> to vector<2x56xf32>
    %46 = arith.addf %43, %45 : vector<2x56xf32>
    %cst_45 = arith.constant 0.000000e+00 : f32
    %47 = vector.broadcast %cst_45 : f32 to vector<2x56xf32>
    %48 = arith.maximumf %46, %47 : vector<2x56xf32>
    %49 = arith.truncf %48 : vector<2x56xf32> to vector<2x56xbf16>
    %c0_46 = arith.constant 0 : index
    %c280 = arith.constant 280 : index
    %50 = vector.load %arg12[%c0_46, %c280] : memref<2x1008xbf16, #tpu.memory_space<vmem>>, vector<2x56xbf16>
    tpu.vector_store %arg12[%c0_46, %c280], %49 {strides = array<i32>} : memref<2x1008xbf16, #tpu.memory_space<vmem>>, vector<2x56xbf16>,
    %c0_47 = arith.constant 0 : index
    %c224_48 = arith.constant 224 : index
    %51 = vector.load %arg11[%c0_47, %c224_48] : memref<2x896xbf16, #tpu.memory_space<vmem>>, vector<2x140xbf16>
    %c0_49 = arith.constant 0 : index
    %c0_50 = arith.constant 0 : index
    %52 = vector.load %arg2[%c0_49, %c0_50] : memref<140x56xbf16, #tpu.memory_space<vmem>>, vector<140x56xbf16>
    %cst_51 = arith.constant dense<0.000000e+00> : vector<2x56xf32>
    %53 = tpu.matmul %51, %52, %cst_51 {dimension_numbers = #tpu.dot_dimension_numbers<[1], [0], [0], [1], [0, 0, 1, 1], [], []>} : vector<2x140xbf16>, vector<140x56xbf16>, vector<2x56xf32> -> vector<2x56xf32>
    %c0_52 = arith.constant 0 : index
    %c0_53 = arith.constant 0 : index
    %54 = vector.load %arg3[%c0_52, %c0_53] : memref<1x56xf32, #tpu.memory_space<vmem>>, vector<1x56xf32>
    %55 = vector.broadcast %54 : vector<1x56xf32> to vector<2x56xf32>
    %56 = arith.addf %53, %55 : vector<2x56xf32>
    %cst_54 = arith.constant 0.000000e+00 : f32
    %57 = vector.broadcast %cst_54 : f32 to vector<2x56xf32>
    %58 = arith.maximumf %56, %57 : vector<2x56xf32>
    %59 = arith.truncf %58 : vector<2x56xf32> to vector<2x56xbf16>
    %c0_55 = arith.constant 0 : index
    %c336 = arith.constant 336 : index
    %60 = vector.load %arg12[%c0_55, %c336] : memref<2x1008xbf16, #tpu.memory_space<vmem>>, vector<2x56xbf16>
    tpu.vector_store %arg12[%c0_55, %c336], %59 {strides = array<i32>} : memref<2x1008xbf16, #tpu.memory_space<vmem>>, vector<2x56xbf16>,
    %c0_56 = arith.constant 0 : index
    %c280_57 = arith.constant 280 : index
    %61 = vector.load %arg11[%c0_56, %c280_57] : memref<2x896xbf16, #tpu.memory_space<vmem>>, vector<2x140xbf16>
    %c0_58 = arith.constant 0 : index
    %c0_59 = arith.constant 0 : index
    %62 = vector.load %arg2[%c0_58, %c0_59] : memref<140x56xbf16, #tpu.memory_space<vmem>>, vector<140x56xbf16>
    %cst_60 = arith.constant dense<0.000000e+00> : vector<2x56xf32>
    %63 = tpu.matmul %61, %62, %cst_60 {dimension_numbers = #tpu.dot_dimension_numbers<[1], [0], [0], [1], [0, 0, 1, 1], [], []>} : vector<2x140xbf16>, vector<140x56xbf16>, vector<2x56xf32> -> vector<2x56xf32>
    %c0_61 = arith.constant 0 : index
    %c0_62 = arith.constant 0 : index
    %64 = vector.load %arg3[%c0_61, %c0_62] : memref<1x56xf32, #tpu.memory_space<vmem>>, vector<1x56xf32>
    %65 = vector.broadcast %64 : vector<1x56xf32> to vector<2x56xf32>
    %66 = arith.addf %63, %65 : vector<2x56xf32>
    %cst_63 = arith.constant 0.000000e+00 : f32
    %67 = vector.broadcast %cst_63 : f32 to vector<2x56xf32>
    %68 = arith.maximumf %66, %67 : vector<2x56xf32>
    %69 = arith.truncf %68 : vector<2x56xf32> to vector<2x56xbf16>
    %c0_64 = arith.constant 0 : index
    %c392 = arith.constant 392 : index
    %70 = vector.load %arg12[%c0_64, %c392] : memref<2x1008xbf16, #tpu.memory_space<vmem>>, vector<2x56xbf16>
    tpu.vector_store %arg12[%c0_64, %c392], %69 {strides = array<i32>} : memref<2x1008xbf16, #tpu.memory_space<vmem>>, vector<2x56xbf16>,
    %c0_65 = arith.constant 0 : index
    %c336_66 = arith.constant 336 : index
    %71 = vector.load %arg11[%c0_65, %c336_66] : memref<2x896xbf16, #tpu.memory_space<vmem>>, vector<2x140xbf16>
    %c0_67 = arith.constant 0 : index
    %c0_68 = arith.constant 0 : index
    %72 = vector.load %arg2[%c0_67, %c0_68] : memref<140x56xbf16, #tpu.memory_space<vmem>>, vector<140x56xbf16>
    %cst_69 = arith.constant dense<0.000000e+00> : vector<2x56xf32>
    %73 = tpu.matmul %71, %72, %cst_69 {dimension_numbers = #tpu.dot_dimension_numbers<[1], [0], [0], [1], [0, 0, 1, 1], [], []>} : vector<2x140xbf16>, vector<140x56xbf16>, vector<2x56xf32> -> vector<2x56xf32>
    %c0_70 = arith.constant 0 : index
    %c0_71 = arith.constant 0 : index
    %74 = vector.load %arg3[%c0_70, %c0_71] : memref<1x56xf32, #tpu.memory_space<vmem>>, vector<1x56xf32>
    %75 = vector.broadcast %74 : vector<1x56xf32> to vector<2x56xf32>
    %76 = arith.addf %73, %75 : vector<2x56xf32>
    %cst_72 = arith.constant 0.000000e+00 : f32
    %77 = vector.broadcast %cst_72 : f32 to vector<2x56xf32>
    %78 = arith.maximumf %76, %77 : vector<2x56xf32>
    %79 = arith.truncf %78 : vector<2x56xf32> to vector<2x56xbf16>
    %c0_73 = arith.constant 0 : index
    %c448 = arith.constant 448 : index
    %80 = vector.load %arg12[%c0_73, %c448] : memref<2x1008xbf16, #tpu.memory_space<vmem>>, vector<2x56xbf16>
    tpu.vector_store %arg12[%c0_73, %c448], %79 {strides = array<i32>} : memref<2x1008xbf16, #tpu.memory_space<vmem>>, vector<2x56xbf16>,
    %c0_74 = arith.constant 0 : index
    %c392_75 = arith.constant 392 : index
    %81 = vector.load %arg11[%c0_74, %c392_75] : memref<2x896xbf16, #tpu.memory_space<vmem>>, vector<2x140xbf16>
    %c0_76 = arith.constant 0 : index
    %c0_77 = arith.constant 0 : index
    %82 = vector.load %arg2[%c0_76, %c0_77] : memref<140x56xbf16, #tpu.memory_space<vmem>>, vector<140x56xbf16>
    %cst_78 = arith.constant dense<0.000000e+00> : vector<2x56xf32>
    %83 = tpu.matmul %81, %82, %cst_78 {dimension_numbers = #tpu.dot_dimension_numbers<[1], [0], [0], [1], [0, 0, 1, 1], [], []>} : vector<2x140xbf16>, vector<140x56xbf16>, vector<2x56xf32> -> vector<2x56xf32>
    %c0_79 = arith.constant 0 : index
    %c0_80 = arith.constant 0 : index
    %84 = vector.load %arg3[%c0_79, %c0_80] : memref<1x56xf32, #tpu.memory_space<vmem>>, vector<1x56xf32>
    %85 = vector.broadcast %84 : vector<1x56xf32> to vector<2x56xf32>
    %86 = arith.addf %83, %85 : vector<2x56xf32>
    %cst_81 = arith.constant 0.000000e+00 : f32
    %87 = vector.broadcast %cst_81 : f32 to vector<2x56xf32>
    %88 = arith.maximumf %86, %87 : vector<2x56xf32>
    %89 = arith.truncf %88 : vector<2x56xf32> to vector<2x56xbf16>
    %c0_82 = arith.constant 0 : index
    %c504 = arith.constant 504 : index
    %90 = vector.load %arg12[%c0_82, %c504] : memref<2x1008xbf16, #tpu.memory_space<vmem>>, vector<2x56xbf16>
    tpu.vector_store %arg12[%c0_82, %c504], %89 {strides = array<i32>} : memref<2x1008xbf16, #tpu.memory_space<vmem>>, vector<2x56xbf16>,
    %c0_83 = arith.constant 0 : index
    %c448_84 = arith.constant 448 : index
    %91 = vector.load %arg11[%c0_83, %c448_84] : memref<2x896xbf16, #tpu.memory_space<vmem>>, vector<2x140xbf16>
    %c0_85 = arith.constant 0 : index
    %c0_86 = arith.constant 0 : index
    %92 = vector.load %arg2[%c0_85, %c0_86] : memref<140x56xbf16, #tpu.memory_space<vmem>>, vector<140x56xbf16>
    %cst_87 = arith.constant dense<0.000000e+00> : vector<2x56xf32>
    %93 = tpu.matmul %91, %92, %cst_87 {dimension_numbers = #tpu.dot_dimension_numbers<[1], [0], [0], [1], [0, 0, 1, 1], [], []>} : vector<2x140xbf16>, vector<140x56xbf16>, vector<2x56xf32> -> vector<2x56xf32>
    %c0_88 = arith.constant 0 : index
    %c0_89 = arith.constant 0 : index
    %94 = vector.load %arg3[%c0_88, %c0_89] : memref<1x56xf32, #tpu.memory_space<vmem>>, vector<1x56xf32>
    %95 = vector.broadcast %94 : vector<1x56xf32> to vector<2x56xf32>
    %96 = arith.addf %93, %95 : vector<2x56xf32>
    %cst_90 = arith.constant 0.000000e+00 : f32
    %97 = vector.broadcast %cst_90 : f32 to vector<2x56xf32>
    %98 = arith.maximumf %96, %97 : vector<2x56xf32>
    %99 = arith.truncf %98 : vector<2x56xf32> to vector<2x56xbf16>
    %c0_91 = arith.constant 0 : index
    %c560 = arith.constant 560 : index
    %100 = vector.load %arg12[%c0_91, %c560] : memref<2x1008xbf16, #tpu.memory_space<vmem>>, vector<2x56xbf16>
    tpu.vector_store %arg12[%c0_91, %c560], %99 {strides = array<i32>} : memref<2x1008xbf16, #tpu.memory_space<vmem>>, vector<2x56xbf16>,
    %c0_92 = arith.constant 0 : index
    %c504_93 = arith.constant 504 : index
    %101 = vector.load %arg11[%c0_92, %c504_93] : memref<2x896xbf16, #tpu.memory_space<vmem>>, vector<2x140xbf16>
    %c0_94 = arith.constant 0 : index
    %c0_95 = arith.constant 0 : index
    %102 = vector.load %arg2[%c0_94, %c0_95] : memref<140x56xbf16, #tpu.memory_space<vmem>>, vector<140x56xbf16>
    %cst_96 = arith.constant dense<0.000000e+00> : vector<2x56xf32>
    %103 = tpu.matmul %101, %102, %cst_96 {dimension_numbers = #tpu.dot_dimension_numbers<[1], [0], [0], [1], [0, 0, 1, 1], [], []>} : vector<2x140xbf16>, vector<140x56xbf16>, vector<2x56xf32> -> vector<2x56xf32>
    %c0_97 = arith.constant 0 : index
    %c0_98 = arith.constant 0 : index
    %104 = vector.load %arg3[%c0_97, %c0_98] : memref<1x56xf32, #tpu.memory_space<vmem>>, vector<1x56xf32>
    %105 = vector.broadcast %104 : vector<1x56xf32> to vector<2x56xf32>
    %106 = arith.addf %103, %105 : vector<2x56xf32>
    %cst_99 = arith.constant 0.000000e+00 : f32
    %107 = vector.broadcast %cst_99 : f32 to vector<2x56xf32>
    %108 = arith.maximumf %106, %107 : vector<2x56xf32>
    %109 = arith.truncf %108 : vector<2x56xf32> to vector<2x56xbf16>
    %c0_100 = arith.constant 0 : index
    %c616 = arith.constant 616 : index
    %110 = vector.load %arg12[%c0_100, %c616] : memref<2x1008xbf16, #tpu.memory_space<vmem>>, vector<2x56xbf16>
    tpu.vector_store %arg12[%c0_100, %c616], %109 {strides = array<i32>} : memref<2x1008xbf16, #tpu.memory_space<vmem>>, vector<2x56xbf16>,
    %c0_101 = arith.constant 0 : index
    %c560_102 = arith.constant 560 : index
    %111 = vector.load %arg11[%c0_101, %c560_102] : memref<2x896xbf16, #tpu.memory_space<vmem>>, vector<2x140xbf16>
    %c0_103 = arith.constant 0 : index
    %c0_104 = arith.constant 0 : index
    %112 = vector.load %arg2[%c0_103, %c0_104] : memref<140x56xbf16, #tpu.memory_space<vmem>>, vector<140x56xbf16>
    %cst_105 = arith.constant dense<0.000000e+00> : vector<2x56xf32>
    %113 = tpu.matmul %111, %112, %cst_105 {dimension_numbers = #tpu.dot_dimension_numbers<[1], [0], [0], [1], [0, 0, 1, 1], [], []>} : vector<2x140xbf16>, vector<140x56xbf16>, vector<2x56xf32> -> vector<2x56xf32>
    %c0_106 = arith.constant 0 : index
    %c0_107 = arith.constant 0 : index
    %114 = vector.load %arg3[%c0_106, %c0_107] : memref<1x56xf32, #tpu.memory_space<vmem>>, vector<1x56xf32>
    %115 = vector.broadcast %114 : vector<1x56xf32> to vector<2x56xf32>
    %116 = arith.addf %113, %115 : vector<2x56xf32>
    %cst_108 = arith.constant 0.000000e+00 : f32
    %117 = vector.broadcast %cst_108 : f32 to vector<2x56xf32>
    %118 = arith.maximumf %116, %117 : vector<2x56xf32>
    %119 = arith.truncf %118 : vector<2x56xf32> to vector<2x56xbf16>
    %c0_109 = arith.constant 0 : index
    %c672 = arith.constant 672 : index
    %120 = vector.load %arg12[%c0_109, %c672] : memref<2x1008xbf16, #tpu.memory_space<vmem>>, vector<2x56xbf16>
    tpu.vector_store %arg12[%c0_109, %c672], %119 {strides = array<i32>} : memref<2x1008xbf16, #tpu.memory_space<vmem>>, vector<2x56xbf16>,
    %c0_110 = arith.constant 0 : index
    %c616_111 = arith.constant 616 : index
    %121 = vector.load %arg11[%c0_110, %c616_111] : memref<2x896xbf16, #tpu.memory_space<vmem>>, vector<2x140xbf16>
    %c0_112 = arith.constant 0 : index
    %c0_113 = arith.constant 0 : index
    %122 = vector.load %arg2[%c0_112, %c0_113] : memref<140x56xbf16, #tpu.memory_space<vmem>>, vector<140x56xbf16>
    %cst_114 = arith.constant dense<0.000000e+00> : vector<2x56xf32>
    %123 = tpu.matmul %121, %122, %cst_114 {dimension_numbers = #tpu.dot_dimension_numbers<[1], [0], [0], [1], [0, 0, 1, 1], [], []>} : vector<2x140xbf16>, vector<140x56xbf16>, vector<2x56xf32> -> vector<2x56xf32>
    %c0_115 = arith.constant 0 : index
    %c0_116 = arith.constant 0 : index
    %124 = vector.load %arg3[%c0_115, %c0_116] : memref<1x56xf32, #tpu.memory_space<vmem>>, vector<1x56xf32>
    %125 = vector.broadcast %124 : vector<1x56xf32> to vector<2x56xf32>
    %126 = arith.addf %123, %125 : vector<2x56xf32>
    %cst_117 = arith.constant 0.000000e+00 : f32
    %127 = vector.broadcast %cst_117 : f32 to vector<2x56xf32>
    %128 = arith.maximumf %126, %127 : vector<2x56xf32>
    %129 = arith.truncf %128 : vector<2x56xf32> to vector<2x56xbf16>
    %c0_118 = arith.constant 0 : index
    %c728 = arith.constant 728 : index
    %130 = vector.load %arg12[%c0_118, %c728] : memref<2x1008xbf16, #tpu.memory_space<vmem>>, vector<2x56xbf16>
    tpu.vector_store %arg12[%c0_118, %c728], %129 {strides = array<i32>} : memref<2x1008xbf16, #tpu.memory_space<vmem>>, vector<2x56xbf16>,
    %c0_119 = arith.constant 0 : index
    %c672_120 = arith.constant 672 : index
    %131 = vector.load %arg11[%c0_119, %c672_120] : memref<2x896xbf16, #tpu.memory_space<vmem>>, vector<2x140xbf16>
    %c0_121 = arith.constant 0 : index
    %c0_122 = arith.constant 0 : index
    %132 = vector.load %arg2[%c0_121, %c0_122] : memref<140x56xbf16, #tpu.memory_space<vmem>>, vector<140x56xbf16>
    %cst_123 = arith.constant dense<0.000000e+00> : vector<2x56xf32>
    %133 = tpu.matmul %131, %132, %cst_123 {dimension_numbers = #tpu.dot_dimension_numbers<[1], [0], [0], [1], [0, 0, 1, 1], [], []>} : vector<2x140xbf16>, vector<140x56xbf16>, vector<2x56xf32> -> vector<2x56xf32>
    %c0_124 = arith.constant 0 : index
    %c0_125 = arith.constant 0 : index
    %134 = vector.load %arg3[%c0_124, %c0_125] : memref<1x56xf32, #tpu.memory_space<vmem>>, vector<1x56xf32>
    %135 = vector.broadcast %134 : vector<1x56xf32> to vector<2x56xf32>
    %136 = arith.addf %133, %135 : vector<2x56xf32>
    %cst_126 = arith.constant 0.000000e+00 : f32
    %137 = vector.broadcast %cst_126 : f32 to vector<2x56xf32>
    %138 = arith.maximumf %136, %137 : vector<2x56xf32>
    %139 = arith.truncf %138 : vector<2x56xf32> to vector<2x56xbf16>
    %c0_127 = arith.constant 0 : index
    %c784 = arith.constant 784 : index
    %140 = vector.load %arg12[%c0_127, %c784] : memref<2x1008xbf16, #tpu.memory_space<vmem>>, vector<2x56xbf16>
    tpu.vector_store %arg12[%c0_127, %c784], %139 {strides = array<i32>} : memref<2x1008xbf16, #tpu.memory_space<vmem>>, vector<2x56xbf16>,
    %c0_128 = arith.constant 0 : index
    %c728_129 = arith.constant 728 : index
    %141 = vector.load %arg11[%c0_128, %c728_129] : memref<2x896xbf16, #tpu.memory_space<vmem>>, vector<2x140xbf16>
    %c0_130 = arith.constant 0 : index
    %c0_131 = arith.constant 0 : index
    %142 = vector.load %arg2[%c0_130, %c0_131] : memref<140x56xbf16, #tpu.memory_space<vmem>>, vector<140x56xbf16>
    %cst_132 = arith.constant dense<0.000000e+00> : vector<2x56xf32>
    %143 = tpu.matmul %141, %142, %cst_132 {dimension_numbers = #tpu.dot_dimension_numbers<[1], [0], [0], [1], [0, 0, 1, 1], [], []>} : vector<2x140xbf16>, vector<140x56xbf16>, vector<2x56xf32> -> vector<2x56xf32>
    %c0_133 = arith.constant 0 : index
    %c0_134 = arith.constant 0 : index
    %144 = vector.load %arg3[%c0_133, %c0_134] : memref<1x56xf32, #tpu.memory_space<vmem>>, vector<1x56xf32>
    %145 = vector.broadcast %144 : vector<1x56xf32> to vector<2x56xf32>
    %146 = arith.addf %143, %145 : vector<2x56xf32>
    %cst_135 = arith.constant 0.000000e+00 : f32
    %147 = vector.broadcast %cst_135 : f32 to vector<2x56xf32>
    %148 = arith.maximumf %146, %147 : vector<2x56xf32>
    %149 = arith.truncf %148 : vector<2x56xf32> to vector<2x56xbf16>
    %c0_136 = arith.constant 0 : index
    %c840_137 = arith.constant 840 : index
    %150 = vector.load %arg12[%c0_136, %c840_137] : memref<2x1008xbf16, #tpu.memory_space<vmem>>, vector<2x56xbf16>
    tpu.vector_store %arg12[%c0_136, %c840_137], %149 {strides = array<i32>} : memref<2x1008xbf16, #tpu.memory_space<vmem>>, vector<2x56xbf16>,
    %cst_138 = arith.constant 0.000000e+00 : bf16
    %151 = vector.broadcast %cst_138 : bf16 to vector<2x112xbf16>
    %c0_139 = arith.constant 0 : index
    %c0_140 = arith.constant 0 : index
    %152 = vector.load %arg13[%c0_139, %c0_140] : memref<2x616xbf16, #tpu.memory_space<vmem>>, vector<2x112xbf16>
    tpu.vector_store %arg13[%c0_139, %c0_140], %151 {strides = array<i32>} : memref<2x616xbf16, #tpu.memory_space<vmem>>, vector<2x112xbf16>,
    %cst_141 = arith.constant 0.000000e+00 : bf16
    %153 = vector.broadcast %cst_141 : bf16 to vector<2x112xbf16>
    %c0_142 = arith.constant 0 : index
    %c504_143 = arith.constant 504 : index
    %154 = vector.load %arg13[%c0_142, %c504_143] : memref<2x616xbf16, #tpu.memory_space<vmem>>, vector<2x112xbf16>
    tpu.vector_store %arg13[%c0_142, %c504_143], %153 {strides = array<i32>} : memref<2x616xbf16, #tpu.memory_space<vmem>>, vector<2x112xbf16>,
    %c0_144 = arith.constant 0 : index
    %c0_145 = arith.constant 0 : index
    %155 = vector.load %arg12[%c0_144, %c0_145] : memref<2x1008xbf16, #tpu.memory_space<vmem>>, vector<2x280xbf16>
    %c0_146 = arith.constant 0 : index
    %c0_147 = arith.constant 0 : index
    %156 = vector.load %arg4[%c0_146, %c0_147] : memref<280x56xbf16, #tpu.memory_space<vmem>>, vector<280x56xbf16>
    %cst_148 = arith.constant dense<0.000000e+00> : vector<2x56xf32>
    %157 = tpu.matmul %155, %156, %cst_148 {dimension_numbers = #tpu.dot_dimension_numbers<[1], [0], [0], [1], [0, 0, 1, 1], [], []>} : vector<2x280xbf16>, vector<280x56xbf16>, vector<2x56xf32> -> vector<2x56xf32>
    %c0_149 = arith.constant 0 : index
    %c0_150 = arith.constant 0 : index
    %158 = vector.load %arg5[%c0_149, %c0_150] : memref<1x56xf32, #tpu.memory_space<vmem>>, vector<1x56xf32>
    %159 = vector.broadcast %158 : vector<1x56xf32> to vector<2x56xf32>
    %160 = arith.addf %157, %159 : vector<2x56xf32>
    %cst_151 = arith.constant 0.000000e+00 : f32
    %161 = vector.broadcast %cst_151 : f32 to vector<2x56xf32>
    %162 = arith.maximumf %160, %161 : vector<2x56xf32>
    %163 = arith.truncf %162 : vector<2x56xf32> to vector<2x56xbf16>
    %c0_152 = arith.constant 0 : index
    %c112_153 = arith.constant 112 : index
    %164 = vector.load %arg13[%c0_152, %c112_153] : memref<2x616xbf16, #tpu.memory_space<vmem>>, vector<2x56xbf16>
    tpu.vector_store %arg13[%c0_152, %c112_153], %163 {strides = array<i32>} : memref<2x616xbf16, #tpu.memory_space<vmem>>, vector<2x56xbf16>,
    %c0_154 = arith.constant 0 : index
    %c112_155 = arith.constant 112 : index
    %165 = vector.load %arg12[%c0_154, %c112_155] : memref<2x1008xbf16, #tpu.memory_space<vmem>>, vector<2x280xbf16>
    %c0_156 = arith.constant 0 : index
    %c0_157 = arith.constant 0 : index
    %166 = vector.load %arg4[%c0_156, %c0_157] : memref<280x56xbf16, #tpu.memory_space<vmem>>, vector<280x56xbf16>
    %cst_158 = arith.constant dense<0.000000e+00> : vector<2x56xf32>
    %167 = tpu.matmul %165, %166, %cst_158 {dimension_numbers = #tpu.dot_dimension_numbers<[1], [0], [0], [1], [0, 0, 1, 1], [], []>} : vector<2x280xbf16>, vector<280x56xbf16>, vector<2x56xf32> -> vector<2x56xf32>
    %c0_159 = arith.constant 0 : index
    %c0_160 = arith.constant 0 : index
    %168 = vector.load %arg5[%c0_159, %c0_160] : memref<1x56xf32, #tpu.memory_space<vmem>>, vector<1x56xf32>
    %169 = vector.broadcast %168 : vector<1x56xf32> to vector<2x56xf32>
    %170 = arith.addf %167, %169 : vector<2x56xf32>
    %cst_161 = arith.constant 0.000000e+00 : f32
    %171 = vector.broadcast %cst_161 : f32 to vector<2x56xf32>
    %172 = arith.maximumf %170, %171 : vector<2x56xf32>
    %173 = arith.truncf %172 : vector<2x56xf32> to vector<2x56xbf16>
    %c0_162 = arith.constant 0 : index
    %c168_163 = arith.constant 168 : index
    %174 = vector.load %arg13[%c0_162, %c168_163] : memref<2x616xbf16, #tpu.memory_space<vmem>>, vector<2x56xbf16>
    tpu.vector_store %arg13[%c0_162, %c168_163], %173 {strides = array<i32>} : memref<2x616xbf16, #tpu.memory_space<vmem>>, vector<2x56xbf16>,
    %c0_164 = arith.constant 0 : index
    %c224_165 = arith.constant 224 : index
    %175 = vector.load %arg12[%c0_164, %c224_165] : memref<2x1008xbf16, #tpu.memory_space<vmem>>, vector<2x280xbf16>
    %c0_166 = arith.constant 0 : index
    %c0_167 = arith.constant 0 : index
    %176 = vector.load %arg4[%c0_166, %c0_167] : memref<280x56xbf16, #tpu.memory_space<vmem>>, vector<280x56xbf16>
    %cst_168 = arith.constant dense<0.000000e+00> : vector<2x56xf32>
    %177 = tpu.matmul %175, %176, %cst_168 {dimension_numbers = #tpu.dot_dimension_numbers<[1], [0], [0], [1], [0, 0, 1, 1], [], []>} : vector<2x280xbf16>, vector<280x56xbf16>, vector<2x56xf32> -> vector<2x56xf32>
    %c0_169 = arith.constant 0 : index
    %c0_170 = arith.constant 0 : index
    %178 = vector.load %arg5[%c0_169, %c0_170] : memref<1x56xf32, #tpu.memory_space<vmem>>, vector<1x56xf32>
    %179 = vector.broadcast %178 : vector<1x56xf32> to vector<2x56xf32>
    %180 = arith.addf %177, %179 : vector<2x56xf32>
    %cst_171 = arith.constant 0.000000e+00 : f32
    %181 = vector.broadcast %cst_171 : f32 to vector<2x56xf32>
    %182 = arith.maximumf %180, %181 : vector<2x56xf32>
    %183 = arith.truncf %182 : vector<2x56xf32> to vector<2x56xbf16>
    %c0_172 = arith.constant 0 : index
    %c224_173 = arith.constant 224 : index
    %184 = vector.load %arg13[%c0_172, %c224_173] : memref<2x616xbf16, #tpu.memory_space<vmem>>, vector<2x56xbf16>
    tpu.vector_store %arg13[%c0_172, %c224_173], %183 {strides = array<i32>} : memref<2x616xbf16, #tpu.memory_space<vmem>>, vector<2x56xbf16>,
    %c0_174 = arith.constant 0 : index
    %c336_175 = arith.constant 336 : index
    %185 = vector.load %arg12[%c0_174, %c336_175] : memref<2x1008xbf16, #tpu.memory_space<vmem>>, vector<2x280xbf16>
    %c0_176 = arith.constant 0 : index
    %c0_177 = arith.constant 0 : index
    %186 = vector.load %arg4[%c0_176, %c0_177] : memref<280x56xbf16, #tpu.memory_space<vmem>>, vector<280x56xbf16>
    %cst_178 = arith.constant dense<0.000000e+00> : vector<2x56xf32>
    %187 = tpu.matmul %185, %186, %cst_178 {dimension_numbers = #tpu.dot_dimension_numbers<[1], [0], [0], [1], [0, 0, 1, 1], [], []>} : vector<2x280xbf16>, vector<280x56xbf16>, vector<2x56xf32> -> vector<2x56xf32>
    %c0_179 = arith.constant 0 : index
    %c0_180 = arith.constant 0 : index
    %188 = vector.load %arg5[%c0_179, %c0_180] : memref<1x56xf32, #tpu.memory_space<vmem>>, vector<1x56xf32>
    %189 = vector.broadcast %188 : vector<1x56xf32> to vector<2x56xf32>
    %190 = arith.addf %187, %189 : vector<2x56xf32>
    %cst_181 = arith.constant 0.000000e+00 : f32
    %191 = vector.broadcast %cst_181 : f32 to vector<2x56xf32>
    %192 = arith.maximumf %190, %191 : vector<2x56xf32>
    %193 = arith.truncf %192 : vector<2x56xf32> to vector<2x56xbf16>
    %c0_182 = arith.constant 0 : index
    %c280_183 = arith.constant 280 : index
    %194 = vector.load %arg13[%c0_182, %c280_183] : memref<2x616xbf16, #tpu.memory_space<vmem>>, vector<2x56xbf16>
    tpu.vector_store %arg13[%c0_182, %c280_183], %193 {strides = array<i32>} : memref<2x616xbf16, #tpu.memory_space<vmem>>, vector<2x56xbf16>,
    %c0_184 = arith.constant 0 : index
    %c448_185 = arith.constant 448 : index
    %195 = vector.load %arg12[%c0_184, %c448_185] : memref<2x1008xbf16, #tpu.memory_space<vmem>>, vector<2x280xbf16>
    %c0_186 = arith.constant 0 : index
    %c0_187 = arith.constant 0 : index
    %196 = vector.load %arg4[%c0_186, %c0_187] : memref<280x56xbf16, #tpu.memory_space<vmem>>, vector<280x56xbf16>
    %cst_188 = arith.constant dense<0.000000e+00> : vector<2x56xf32>
    %197 = tpu.matmul %195, %196, %cst_188 {dimension_numbers = #tpu.dot_dimension_numbers<[1], [0], [0], [1], [0, 0, 1, 1], [], []>} : vector<2x280xbf16>, vector<280x56xbf16>, vector<2x56xf32> -> vector<2x56xf32>
    %c0_189 = arith.constant 0 : index
    %c0_190 = arith.constant 0 : index
    %198 = vector.load %arg5[%c0_189, %c0_190] : memref<1x56xf32, #tpu.memory_space<vmem>>, vector<1x56xf32>
    %199 = vector.broadcast %198 : vector<1x56xf32> to vector<2x56xf32>
    %200 = arith.addf %197, %199 : vector<2x56xf32>
    %cst_191 = arith.constant 0.000000e+00 : f32
    %201 = vector.broadcast %cst_191 : f32 to vector<2x56xf32>
    %202 = arith.maximumf %200, %201 : vector<2x56xf32>
    %203 = arith.truncf %202 : vector<2x56xf32> to vector<2x56xbf16>
    %c0_192 = arith.constant 0 : index
    %c336_193 = arith.constant 336 : index
    %204 = vector.load %arg13[%c0_192, %c336_193] : memref<2x616xbf16, #tpu.memory_space<vmem>>, vector<2x56xbf16>
    tpu.vector_store %arg13[%c0_192, %c336_193], %203 {strides = array<i32>} : memref<2x616xbf16, #tpu.memory_space<vmem>>, vector<2x56xbf16>,
    %c0_194 = arith.constant 0 : index
    %c560_195 = arith.constant 560 : index
    %205 = vector.load %arg12[%c0_194, %c560_195] : memref<2x1008xbf16, #tpu.memory_space<vmem>>, vector<2x280xbf16>
    %c0_196 = arith.constant 0 : index
    %c0_197 = arith.constant 0 : index
    %206 = vector.load %arg4[%c0_196, %c0_197] : memref<280x56xbf16, #tpu.memory_space<vmem>>, vector<280x56xbf16>
    %cst_198 = arith.constant dense<0.000000e+00> : vector<2x56xf32>
    %207 = tpu.matmul %205, %206, %cst_198 {dimension_numbers = #tpu.dot_dimension_numbers<[1], [0], [0], [1], [0, 0, 1, 1], [], []>} : vector<2x280xbf16>, vector<280x56xbf16>, vector<2x56xf32> -> vector<2x56xf32>
    %c0_199 = arith.constant 0 : index
    %c0_200 = arith.constant 0 : index
    %208 = vector.load %arg5[%c0_199, %c0_200] : memref<1x56xf32, #tpu.memory_space<vmem>>, vector<1x56xf32>
    %209 = vector.broadcast %208 : vector<1x56xf32> to vector<2x56xf32>
    %210 = arith.addf %207, %209 : vector<2x56xf32>
    %cst_201 = arith.constant 0.000000e+00 : f32
    %211 = vector.broadcast %cst_201 : f32 to vector<2x56xf32>
    %212 = arith.maximumf %210, %211 : vector<2x56xf32>
    %213 = arith.truncf %212 : vector<2x56xf32> to vector<2x56xbf16>
    %c0_202 = arith.constant 0 : index
    %c392_203 = arith.constant 392 : index
    %214 = vector.load %arg13[%c0_202, %c392_203] : memref<2x616xbf16, #tpu.memory_space<vmem>>, vector<2x56xbf16>
    tpu.vector_store %arg13[%c0_202, %c392_203], %213 {strides = array<i32>} : memref<2x616xbf16, #tpu.memory_space<vmem>>, vector<2x56xbf16>,
    %c0_204 = arith.constant 0 : index
    %c672_205 = arith.constant 672 : index
    %215 = vector.load %arg12[%c0_204, %c672_205] : memref<2x1008xbf16, #tpu.memory_space<vmem>>, vector<2x280xbf16>
    %c0_206 = arith.constant 0 : index
    %c0_207 = arith.constant 0 : index
    %216 = vector.load %arg4[%c0_206, %c0_207] : memref<280x56xbf16, #tpu.memory_space<vmem>>, vector<280x56xbf16>
    %cst_208 = arith.constant dense<0.000000e+00> : vector<2x56xf32>
    %217 = tpu.matmul %215, %216, %cst_208 {dimension_numbers = #tpu.dot_dimension_numbers<[1], [0], [0], [1], [0, 0, 1, 1], [], []>} : vector<2x280xbf16>, vector<280x56xbf16>, vector<2x56xf32> -> vector<2x56xf32>
    %c0_209 = arith.constant 0 : index
    %c0_210 = arith.constant 0 : index
    %218 = vector.load %arg5[%c0_209, %c0_210] : memref<1x56xf32, #tpu.memory_space<vmem>>, vector<1x56xf32>
    %219 = vector.broadcast %218 : vector<1x56xf32> to vector<2x56xf32>
    %220 = arith.addf %217, %219 : vector<2x56xf32>
    %cst_211 = arith.constant 0.000000e+00 : f32
    %221 = vector.broadcast %cst_211 : f32 to vector<2x56xf32>
    %222 = arith.maximumf %220, %221 : vector<2x56xf32>
    %223 = arith.truncf %222 : vector<2x56xf32> to vector<2x56xbf16>
    %c0_212 = arith.constant 0 : index
    %c448_213 = arith.constant 448 : index
    %224 = vector.load %arg13[%c0_212, %c448_213] : memref<2x616xbf16, #tpu.memory_space<vmem>>, vector<2x56xbf16>
    tpu.vector_store %arg13[%c0_212, %c448_213], %223 {strides = array<i32>} : memref<2x616xbf16, #tpu.memory_space<vmem>>, vector<2x56xbf16>,
    %cst_214 = arith.constant 0.000000e+00 : f32
    %225 = vector.broadcast %cst_214 : f32 to vector<2x128xf32>
    %c0_215 = arith.constant 0 : index
    %c0_216 = arith.constant 0 : index
    %226 = vector.load %arg13[%c0_215, %c0_216] : memref<2x616xbf16, #tpu.memory_space<vmem>>, vector<2x280xbf16>
    %c0_217 = arith.constant 0 : index
    %c0_218 = arith.constant 0 : index
    %227 = vector.load %arg6[%c0_217, %c0_218] : memref<280x64xbf16, #tpu.memory_space<vmem>>, vector<280x64xbf16>
    %cst_219 = arith.constant dense<0.000000e+00> : vector<2x64xf32>
    %228 = tpu.matmul %226, %227, %cst_219 {dimension_numbers = #tpu.dot_dimension_numbers<[1], [0], [0], [1], [0, 0, 1, 1], [], []>} : vector<2x280xbf16>, vector<280x64xbf16>, vector<2x64xf32> -> vector<2x64xf32>
    %c0_220 = arith.constant 0 : index
    %c0_221 = arith.constant 0 : index
    %229 = vector.load %arg7[%c0_220, %c0_221] : memref<1x64xf32, #tpu.memory_space<vmem>>, vector<1x64xf32>
    %230 = vector.broadcast %229 : vector<1x64xf32> to vector<2x64xf32>
    %231 = arith.addf %228, %230 : vector<2x64xf32>
    %cst_222 = arith.constant 0.000000e+00 : f32
    %232 = vector.broadcast %cst_222 : f32 to vector<2x64xf32>
    %233 = arith.maximumf %231, %232 : vector<2x64xf32>
    %234 = arith.truncf %233 : vector<2x64xf32> to vector<2x64xbf16>
    %c0_223 = arith.constant 0 : index
    %c0_224 = arith.constant 0 : index
    %235 = vector.load %arg8[%c0_223, %c0_224] : memref<256x128xbf16, #tpu.memory_space<vmem>>, vector<64x128xbf16>
    %cst_225 = arith.constant dense<0.000000e+00> : vector<2x128xf32>
    %236 = tpu.matmul %234, %235, %cst_225 {dimension_numbers = #tpu.dot_dimension_numbers<[1], [0], [0], [1], [0, 0, 1, 1], [], []>} : vector<2x64xbf16>, vector<64x128xbf16>, vector<2x128xf32> -> vector<2x128xf32>
    %237 = arith.addf %225, %236 : vector<2x128xf32>
    %c0_226 = arith.constant 0 : index
    %c112_227 = arith.constant 112 : index
    %238 = vector.load %arg13[%c0_226, %c112_227] : memref<2x616xbf16, #tpu.memory_space<vmem>>, vector<2x280xbf16>
    %c0_228 = arith.constant 0 : index
    %c0_229 = arith.constant 0 : index
    %239 = vector.load %arg6[%c0_228, %c0_229] : memref<280x64xbf16, #tpu.memory_space<vmem>>, vector<280x64xbf16>
    %cst_230 = arith.constant dense<0.000000e+00> : vector<2x64xf32>
    %240 = tpu.matmul %238, %239, %cst_230 {dimension_numbers = #tpu.dot_dimension_numbers<[1], [0], [0], [1], [0, 0, 1, 1], [], []>} : vector<2x280xbf16>, vector<280x64xbf16>, vector<2x64xf32> -> vector<2x64xf32>
    %c0_231 = arith.constant 0 : index
    %c0_232 = arith.constant 0 : index
    %241 = vector.load %arg7[%c0_231, %c0_232] : memref<1x64xf32, #tpu.memory_space<vmem>>, vector<1x64xf32>
    %242 = vector.broadcast %241 : vector<1x64xf32> to vector<2x64xf32>
    %243 = arith.addf %240, %242 : vector<2x64xf32>
    %cst_233 = arith.constant 0.000000e+00 : f32
    %244 = vector.broadcast %cst_233 : f32 to vector<2x64xf32>
    %245 = arith.maximumf %243, %244 : vector<2x64xf32>
    %246 = arith.truncf %245 : vector<2x64xf32> to vector<2x64xbf16>
    %c64 = arith.constant 64 : index
    %c0_234 = arith.constant 0 : index
    %247 = vector.load %arg8[%c64, %c0_234] : memref<256x128xbf16, #tpu.memory_space<vmem>>, vector<64x128xbf16>
    %cst_235 = arith.constant dense<0.000000e+00> : vector<2x128xf32>
    %248 = tpu.matmul %246, %247, %cst_235 {dimension_numbers = #tpu.dot_dimension_numbers<[1], [0], [0], [1], [0, 0, 1, 1], [], []>} : vector<2x64xbf16>, vector<64x128xbf16>, vector<2x128xf32> -> vector<2x128xf32>
    %249 = arith.addf %237, %248 : vector<2x128xf32>
    %c0_236 = arith.constant 0 : index
    %c224_237 = arith.constant 224 : index
    %250 = vector.load %arg13[%c0_236, %c224_237] : memref<2x616xbf16, #tpu.memory_space<vmem>>, vector<2x280xbf16>
    %c0_238 = arith.constant 0 : index
    %c0_239 = arith.constant 0 : index
    %251 = vector.load %arg6[%c0_238, %c0_239] : memref<280x64xbf16, #tpu.memory_space<vmem>>, vector<280x64xbf16>
    %cst_240 = arith.constant dense<0.000000e+00> : vector<2x64xf32>
    %252 = tpu.matmul %250, %251, %cst_240 {dimension_numbers = #tpu.dot_dimension_numbers<[1], [0], [0], [1], [0, 0, 1, 1], [], []>} : vector<2x280xbf16>, vector<280x64xbf16>, vector<2x64xf32> -> vector<2x64xf32>
    %c0_241 = arith.constant 0 : index
    %c0_242 = arith.constant 0 : index
    %253 = vector.load %arg7[%c0_241, %c0_242] : memref<1x64xf32, #tpu.memory_space<vmem>>, vector<1x64xf32>
    %254 = vector.broadcast %253 : vector<1x64xf32> to vector<2x64xf32>
    %255 = arith.addf %252, %254 : vector<2x64xf32>
    %cst_243 = arith.constant 0.000000e+00 : f32
    %256 = vector.broadcast %cst_243 : f32 to vector<2x64xf32>
    %257 = arith.maximumf %255, %256 : vector<2x64xf32>
    %258 = arith.truncf %257 : vector<2x64xf32> to vector<2x64xbf16>
    %c128 = arith.constant 128 : index
    %c0_244 = arith.constant 0 : index
    %259 = vector.load %arg8[%c128, %c0_244] : memref<256x128xbf16, #tpu.memory_space<vmem>>, vector<64x128xbf16>
    %cst_245 = arith.constant dense<0.000000e+00> : vector<2x128xf32>
    %260 = tpu.matmul %258, %259, %cst_245 {dimension_numbers = #tpu.dot_dimension_numbers<[1], [0], [0], [1], [0, 0, 1, 1], [], []>} : vector<2x64xbf16>, vector<64x128xbf16>, vector<2x128xf32> -> vector<2x128xf32>
    %261 = arith.addf %249, %260 : vector<2x128xf32>
    %c0_246 = arith.constant 0 : index
    %c336_247 = arith.constant 336 : index
    %262 = vector.load %arg13[%c0_246, %c336_247] : memref<2x616xbf16, #tpu.memory_space<vmem>>, vector<2x280xbf16>
    %c0_248 = arith.constant 0 : index
    %c0_249 = arith.constant 0 : index
    %263 = vector.load %arg6[%c0_248, %c0_249] : memref<280x64xbf16, #tpu.memory_space<vmem>>, vector<280x64xbf16>
    %cst_250 = arith.constant dense<0.000000e+00> : vector<2x64xf32>
    %264 = tpu.matmul %262, %263, %cst_250 {dimension_numbers = #tpu.dot_dimension_numbers<[1], [0], [0], [1], [0, 0, 1, 1], [], []>} : vector<2x280xbf16>, vector<280x64xbf16>, vector<2x64xf32> -> vector<2x64xf32>
    %c0_251 = arith.constant 0 : index
    %c0_252 = arith.constant 0 : index
    %265 = vector.load %arg7[%c0_251, %c0_252] : memref<1x64xf32, #tpu.memory_space<vmem>>, vector<1x64xf32>
    %266 = vector.broadcast %265 : vector<1x64xf32> to vector<2x64xf32>
    %267 = arith.addf %264, %266 : vector<2x64xf32>
    %cst_253 = arith.constant 0.000000e+00 : f32
    %268 = vector.broadcast %cst_253 : f32 to vector<2x64xf32>
    %269 = arith.maximumf %267, %268 : vector<2x64xf32>
    %270 = arith.truncf %269 : vector<2x64xf32> to vector<2x64xbf16>
    %c192 = arith.constant 192 : index
    %c0_254 = arith.constant 0 : index
    %271 = vector.load %arg8[%c192, %c0_254] : memref<256x128xbf16, #tpu.memory_space<vmem>>, vector<64x128xbf16>
    %cst_255 = arith.constant dense<0.000000e+00> : vector<2x128xf32>
    %272 = tpu.matmul %270, %271, %cst_255 {dimension_numbers = #tpu.dot_dimension_numbers<[1], [0], [0], [1], [0, 0, 1, 1], [], []>} : vector<2x64xbf16>, vector<64x128xbf16>, vector<2x128xf32> -> vector<2x128xf32>
    %273 = arith.addf %261, %272 : vector<2x128xf32>
    %c0_256 = arith.constant 0 : index
    %c0_257 = arith.constant 0 : index
    %274 = vector.load %arg9[%c0_256, %c0_257] : memref<1x128xf32, #tpu.memory_space<vmem>>, vector<1x128xf32>
    %275 = vector.broadcast %274 : vector<1x128xf32> to vector<2x128xf32>
    %276 = arith.addf %273, %275 : vector<2x128xf32>
    %c0_258 = arith.constant 0 : index
    %c0_259 = arith.constant 0 : index
    %277 = vector.load %arg10[%c0_258, %c0_259] : memref<2x128xf32, #tpu.memory_space<vmem>>, vector<2x128xf32>
    tpu.vector_store %arg10[%c0_258, %c0_259], %276 {strides = array<i32>} : memref<2x128xf32, #tpu.memory_space<vmem>>, vector<2x128xf32>,
    return
  }
  func.func @transform_0(%arg0: i32) -> (i32, i32) {
    %c0_i32 = arith.constant 0 : i32
    %c0_i32_0 = arith.constant 0 : i32
    return %arg0, %c0_i32 : i32, i32
  }
  func.func @transform_1(%arg0: i32) -> (i32, i32) {
    %c0_i32 = arith.constant 0 : i32
    %c0_i32_0 = arith.constant 0 : i32
    %c0_i32_1 = arith.constant 0 : i32
    return %c0_i32, %c0_i32_0 : i32, i32
  }
  func.func @transform_2(%arg0: i32) -> (i32, i32) {
    %c0_i32 = arith.constant 0 : i32
    %c0_i32_0 = arith.constant 0 : i32
    %c0_i32_1 = arith.constant 0 : i32
    return %c0_i32, %c0_i32_0 : i32, i32
  }
  func.func @transform_3(%arg0: i32) -> (i32, i32) {
    %c0_i32 = arith.constant 0 : i32
    %c0_i32_0 = arith.constant 0 : i32
    %c0_i32_1 = arith.constant 0 : i32
    return %c0_i32, %c0_i32_0 : i32, i32
  }
  func.func @transform_4(%arg0: i32) -> (i32, i32) {
    %c0_i32 = arith.constant 0 : i32
    %c0_i32_0 = arith.constant 0 : i32
    %c0_i32_1 = arith.constant 0 : i32
    return %c0_i32, %c0_i32_0 : i32, i32
  }
  func.func @transform_5(%arg0: i32) -> (i32, i32) {
    %c0_i32 = arith.constant 0 : i32
    %c0_i32_0 = arith.constant 0 : i32
    %c0_i32_1 = arith.constant 0 : i32
    return %c0_i32, %c0_i32_0 : i32, i32
  }
  func.func @transform_6(%arg0: i32) -> (i32, i32) {
    %c0_i32 = arith.constant 0 : i32
    %c0_i32_0 = arith.constant 0 : i32
    %c0_i32_1 = arith.constant 0 : i32
    return %c0_i32, %c0_i32_0 : i32, i32
  }
  func.func @transform_7(%arg0: i32) -> (i32, i32) {
    %c0_i32 = arith.constant 0 : i32
    %c0_i32_0 = arith.constant 0 : i32
    %c0_i32_1 = arith.constant 0 : i32
    return %c0_i32, %c0_i32_0 : i32, i32
  }
  func.func @transform_8(%arg0: i32) -> (i32, i32) {
    %c0_i32 = arith.constant 0 : i32
    %c0_i32_0 = arith.constant 0 : i32
    %c0_i32_1 = arith.constant 0 : i32
    return %c0_i32, %c0_i32_0 : i32, i32
  }
  func.func @transform_9(%arg0: i32) -> (i32, i32) {
    %c0_i32 = arith.constant 0 : i32
    %c0_i32_0 = arith.constant 0 : i32
    return %arg0, %c0_i32 : i32, i32
  }
}

</mosaic_0001>

<llo_original>
// kernel: discriminator_forward.1
$region0: #{discriminator_forward.1}
  #allocation0 [shape = 'u32[]', space=smem, size = 0x4, offset = 0x4, fixed_abs, tag = 'smem constant byte address 0x4 - core index']
  #allocation1 [shape = 'u32[72,128]{1,0:T(1,128)}', space=vmem, size = 0x9000, scoped, tag = 'internal scratch']
  #allocation2 [shape = 'bf16[2,896]{1,0:T(2,128)(2,1)}', space=vmem, size = 0xe00, scoped, tag = 'scratch operand']
  #allocation3 [shape = 'bf16[2,1008]{1,0:T(2,128)(2,1)}', space=vmem, size = 0x1000, scoped, tag = 'scratch operand']
  #allocation4 [shape = 'bf16[2,616]{1,0:T(2,128)(2,1)}', space=vmem, size = 0xa00, scoped, tag = 'scratch operand']
  %s0 = inlined_call_operand.vmem [shape: f32[2,784], index: 0, kind: input, shape index: {}]
  %s1 = inlined_call_operand.vmem [shape: bf16[140,56], index: 1, kind: input, shape index: {}]
  %s2 = inlined_call_operand.vmem [shape: f32[1,56], index: 2, kind: input, shape index: {}]
  %s3 = inlined_call_operand.vmem [shape: bf16[280,56], index: 3, kind: input, shape index: {}]
  %s4 = inlined_call_operand.vmem [shape: f32[1,56], index: 4, kind: input, shape index: {}]
  %s5 = inlined_call_operand.vmem [shape: bf16[280,64], index: 5, kind: input, shape index: {}]
  %s6 = inlined_call_operand.vmem [shape: f32[1,64], index: 6, kind: input, shape index: {}]
  %s7 = inlined_call_operand.vmem [shape: bf16[256,128], index: 7, kind: input, shape index: {}]
  %s8 = inlined_call_operand.vmem [shape: f32[1,128], index: 8, kind: input, shape index: {}]
  %s9 = inlined_call_operand.vmem [shape: f32[2,128], index: 9, kind: output, shape index: {}]
  %s10 = sld [smem:[#allocation0]]
  $region46: #{discriminator_forward.1} parent=0
    _
  %s12 = ssub.s32 1, %s10
  %s13 = scalar_select 0, %s12, %s10
  // Predicated region
  $region2: #{discriminator_forward.1} parent=0 // pred_check
    _
  $region3: #{discriminator_forward.1} parent=0 // pred_check_branch
    %15 = sbr.rel (0) target = $region5
  $region4: #{discriminator_forward.1} parent=0 // pred_region
    _
  $region5: #{discriminator_forward.1} parent=0 // pred_fallthru
    _
  // Predicated region
  $region6: #{discriminator_forward.1} parent=0 // pred_check
    _
  $region7: #{discriminator_forward.1} parent=0 // pred_check_branch
    %17 = sbr.rel (0) target = $region9
  $region8: #{discriminator_forward.1} parent=0 // pred_region
    _
  $region9: #{discriminator_forward.1} parent=0 // pred_fallthru
    _
  // Predicated region
  $region10: #{discriminator_forward.1} parent=0 // pred_check
    _
  $region11: #{discriminator_forward.1} parent=0 // pred_check_branch
    %19 = sbr.rel (0) target = $region13
  $region12: #{discriminator_forward.1} parent=0 // pred_region
    _
  $region13: #{discriminator_forward.1} parent=0 // pred_fallthru
    _
  // Predicated region
  $region14: #{discriminator_forward.1} parent=0 // pred_check
    _
  $region15: #{discriminator_forward.1} parent=0 // pred_check_branch
    %21 = sbr.rel (0) target = $region17
  $region16: #{discriminator_forward.1} parent=0 // pred_region
    _
  $region17: #{discriminator_forward.1} parent=0 // pred_fallthru
    _
  // Predicated region
  $region18: #{discriminator_forward.1} parent=0 // pred_check
    _
  $region19: #{discriminator_forward.1} parent=0 // pred_check_branch
    %23 = sbr.rel (0) target = $region21
  $region20: #{discriminator_forward.1} parent=0 // pred_region
    _
  $region21: #{discriminator_forward.1} parent=0 // pred_fallthru
    _
  // Predicated region
  $region22: #{discriminator_forward.1} parent=0 // pred_check
    _
  $region23: #{discriminator_forward.1} parent=0 // pred_check_branch
    %25 = sbr.rel (0) target = $region25
  $region24: #{discriminator_forward.1} parent=0 // pred_region
    _
  $region25: #{discriminator_forward.1} parent=0 // pred_fallthru
    _
  // Predicated region
  $region26: #{discriminator_forward.1} parent=0 // pred_check
    _
  $region27: #{discriminator_forward.1} parent=0 // pred_check_branch
    %27 = sbr.rel (0) target = $region29
  $region28: #{discriminator_forward.1} parent=0 // pred_region
    _
  $region29: #{discriminator_forward.1} parent=0 // pred_fallthru
    _
  // Predicated region
  $region30: #{discriminator_forward.1} parent=0 // pred_check
    _
  $region31: #{discriminator_forward.1} parent=0 // pred_check_branch
    %29 = sbr.rel (0) target = $region33
  $region32: #{discriminator_forward.1} parent=0 // pred_region
    _
  $region33: #{discriminator_forward.1} parent=0 // pred_fallthru
    _
  // Predicated region
  $region34: #{discriminator_forward.1} parent=0 // pred_check
    _
  $region35: #{discriminator_forward.1} parent=0 // pred_check_branch
    %31 = sbr.rel (0) target = $region37
  $region36: #{discriminator_forward.1} parent=0 // pred_region
    _
  $region37: #{discriminator_forward.1} parent=0 // pred_fallthru
    _
  %vm33 = vcmask 450560
  %34 = vst.msk [vmem:[#allocation2] sm:$0x1] %vm33, 0
  %vm35 = vcmask 1040960
  %36 = vst.msk [vmem:[#allocation2 + $0x6] sm:$0x1] %vm35, 0
  %v37 = vld [vmem:[%s0] sm:$0xff]
  %v38 = vld [vmem:[%s0 + $0x8] sm:$0x3f]
  %41 = vst [vmem:[#allocation1] ss:$4 sm:$0xff] %v37
  %s42 = scalar_lea.vmem [#allocation1], 32
  %43 = vst [vmem:[%s42] ss:$4 sm:$0xff] %v38
  %v44 = vld.sshfl [vmem:[#allocation1] sm:$0xff pattern:$0x73625140]
  %v45 = vld.sshfl [vmem:[#allocation1 + $0x8] sm:$0xff pattern:$0x73625140]
  %v46 = vld.sshfl [vmem:[#allocation1 + $0x10] sm:$0xff pattern:$0x73625140]
  %v47 = vld.sshfl [vmem:[#allocation1 + $0x18] sm:$0xff pattern:$0x73625140]
  %v48 = vld.sshfl [vmem:[#allocation1 + $0x20] sm:$0xff pattern:$0x73625140]
  %v49 = vld.sshfl [vmem:[#allocation1 + $0x28] sm:$0xff pattern:$0x73625140]
  %v50 = vld.sshfl [vmem:[#allocation1 + $0x30] sm:$0xff pattern:$0x73625140]
  %v58 = vpack.c.bf16 %v45, %v44
  %v59 = vpack.c.bf16 %v47, %v46
  %v60 = vpack.c.bf16 %v49, %v48
  %v61 = vpack.c.bf16 %v50, %v50
  %v66 = vrot.slane %v58, 3
  %v67 = vrot.slane %v59, 6
  %v68 = vrot.slane %v59, 1
  %v69 = vrot.slane %v60, 4
  %v70 = vrot.slane %v60, 7
  %v71 = vrot.slane %v61, 2
  %v72 = vrot.slane %v61, 5
  %vm73 = vcmask 1040384
  %v76 = vsel %vm73, %v58, %v66
  %vm77 = vcmask 1042434
  %v80 = vsel %vm77, %v67, %v68
  %vm81 = vcmask 1041408
  %v82 = vsel %vm81, %v76, %v80
  %vm83 = vcmask 1044484
  %v86 = vsel %vm83, %v69, %v70
  %vm87 = vcmask 1046534
  %v90 = vsel %vm87, %v71, %v72
  %vm91 = vcmask 1045508
  %v92 = vsel %vm91, %v86, %v90
  %vm93 = vcmask 1043456
  %v94 = vsel %vm93, %v82, %v92
  %96 = vrot.lane.b32.xlu0 %v94, 56
  %v97 = vpop.permute.xlu0 %96
  %v98 = vrot.slane %v97, 7
  %vm99 = vcmask 457728
  %v100 = vsel %vm99, %v98, %v97
  %vm102 = vcmask 1040832
  %vm103 = vcmask 1041409
  %vm104 = vmor %vm103, %vm102
  %vm105 = vmor %vm77, %vm104
  %vm106 = vcmask 1043459
  %vm107 = vmor %vm106, %vm105
  %vm108 = vmor %vm83, %vm107
  %vm109 = vcmask 1045509
  %vm110 = vmor %vm109, %vm108
  %vm111 = vcmask 587782
  %vm112 = vmor %vm111, %vm110
  %113 = vst.msk [vmem:[#allocation2] sm:$0x7f] %vm112, %v100
  %vm114 = vcmask 909312
  %115 = vst.msk [vmem:[#allocation3] sm:$0x1] %vm114, 0
  %116 = vst.msk [vmem:[#allocation3 + $0x7] sm:$0x1] %vm114, 0
  %v117 = vld [vmem:[#allocation2] sm:$0x3]
  %v118 = vld [vmem:[%s1] sm:$0xf]
  %v119 = vld [vmem:[%s1 + $0x4] sm:$0xf]
  %v120 = vld [vmem:[%s1 + $0x8] sm:$0xf]
  %v121 = vld [vmem:[%s1 + $0xc] sm:$0xf]
  %v122 = vld [vmem:[%s1 + $0x10] sm:$0xf]
  %v123 = vld [vmem:[%s1 + $0x14] sm:$0xf]
  %v124 = vld [vmem:[%s1 + $0x18] sm:$0xf]
  %v125 = vld [vmem:[%s1 + $0x1c] sm:$0xf]
  %v126 = vld [vmem:[%s1 + $0x20] sm:$0xf]
  %v127 = vld [vmem:[%s1 + $0x24] sm:$0xf]
  %v128 = vld [vmem:[%s1 + $0x28] sm:$0xf]
  %v129 = vld [vmem:[%s1 + $0x2c] sm:$0xf]
  %v130 = vld [vmem:[%s1 + $0x30] sm:$0xf]
  %v131 = vld [vmem:[%s1 + $0x34] sm:$0xf]
  %v132 = vld [vmem:[%s1 + $0x38] sm:$0xf]
  %v133 = vld [vmem:[%s1 + $0x3c] sm:$0xf]
  %v134 = vld [vmem:[%s1 + $0x40] sm:$0xf]
  %v135 = vld [vmem:[%s1 + $0x44] sm:$0x3]
  %v136 = vld [vmem:[%s2] sm:$0x1]
  %v138 = vperm.slane %v136, 0
  %141 = vst [vmem:[#allocation1] ss:$9 sm:$0xff] %v117
  %v142 = vld [vmem:[#allocation1] sm:$0xff]
  %v143 = vld [vmem:[#allocation1 + $0x9] sm:$0xff]
  %v163 = vunpack.c.l.b16 %v118
  %v164 = vunpack.c.l.b16 %v119
  %v165 = vunpack.c.l.b16 %v120
  %v166 = vunpack.c.l.b16 %v121
  %v167 = vunpack.c.l.b16 %v122
  %v168 = vunpack.c.l.b16 %v123
  %v169 = vunpack.c.l.b16 %v124
  %v170 = vunpack.c.l.b16 %v125
  %v171 = vunpack.c.l.b16 %v126
  %v172 = vunpack.c.l.b16 %v127
  %v173 = vunpack.c.l.b16 %v128
  %v174 = vunpack.c.l.b16 %v129
  %v175 = vunpack.c.l.b16 %v130
  %v176 = vunpack.c.l.b16 %v131
  %v177 = vunpack.c.l.b16 %v132
  %v178 = vunpack.c.l.b16 %v133
  %v179 = vunpack.c.l.b16 %v134
  %v180 = vunpack.c.l.b16 %v135
  %v181 = vpack.c.b16 %v164, %v163
  %v182 = vpack.c.b16 %v166, %v165
  %v183 = vpack.c.b16 %v168, %v167
  %v184 = vpack.c.b16 %v170, %v169
  %v185 = vpack.c.b16 %v172, %v171
  %v186 = vpack.c.b16 %v174, %v173
  %v187 = vpack.c.b16 %v176, %v175
  %v188 = vpack.c.b16 %v178, %v177
  %v189 = vpack.c.b16 %v180, %v179
  %vm198 = vcmask 97280
  %v199 = vsel %vm198, %v143, 0
  %vm201 = vcmask 1045504
  %v203 = vsel %vm201, %v189, 0
  %205 = vmatpush.bf16.msra.mxu0 %v188
  %206 = vmatpush.bf16.msra.mxu0 %v187
  %207 = vmatpush.bf16.msra.mxu0 %v186
  %208 = vmatpush.bf16.msra.mxu0 %v185
  %209 = vmatpush.bf16.msra.mxu0 %v184
  %210 = vmatpush.bf16.msra.mxu0 %v183
  %211 = vmatpush.bf16.msra.mxu0 %v182
  %212 = vmatpush.bf16.msra.mxu0 %v181
  %213 = vmatmul.bf16.gmra.mxu0 %v142
  %v214 = vpop.f32.mrf.mxu0
  %v215 = vadd.f32 %v138, %v214
  %v216 = vpop.f32.mrf.mxu0
  %217 = vdwg.mxu0
  %218 = vmatpush.bf16.msra.mxu0 0
  %219 = vmatpush.bf16.msra.mxu0 0
  %220 = vmatpush.bf16.msra.mxu0 0
  %221 = vmatpush.bf16.msra.mxu0 0
  %222 = vmatpush.bf16.msra.mxu0 0
  %223 = vmatpush.bf16.msra.mxu0 0
  %224 = vmatpush.bf16.msra.mxu0 0
  %225 = vmatpush.bf16.msra.mxu0 %v203
  %226 = vmatmul.bf16.gmra.mxu0 %v199
  %v227 = vpop.f32.mrf.mxu0
  %v228 = vadd.f32 %v215, %v227
  %v229 = vpop.f32.mrf.mxu0
  %230 = vdwg.mxu0
  %v231 = vmax.f32 %v228, 0.0
  %v232 = vpack.c.bf16 %v231, %v231
  %v234 = vrot.slane %v232, 3
  %v237 = vsel %vm73, %v232, %v234
  %239 = vrot.lane.b32.xlu0 %v237, 112
  %v240 = vpop.permute.xlu0 %239
  %v241 = vrot.slane %v240, 7
  %vm242 = vcmask 916480
  %v243 = vsel %vm242, %v241, %v240
  %vm245 = vcmask 1041280
  %vm246 = vcmask 320513
  %vm247 = vmor %vm246, %vm245
  %248 = vst.msk [vmem:[#allocation3] sm:$0x3] %vm247, %v243
  %v249 = vld [vmem:[#allocation2] sm:$0x3]
  %v250 = vld [vmem:[%s1] sm:$0xf]
  %v251 = vld [vmem:[%s1 + $0x4] sm:$0xf]
  %v252 = vld [vmem:[%s1 + $0x8] sm:$0xf]
  %v253 = vld [vmem:[%s1 + $0xc] sm:$0xf]
  %v254 = vld [vmem:[%s1 + $0x10] sm:$0xf]
  %v255 = vld [vmem:[%s1 + $0x14] sm:$0xf]
  %v256 = vld [vmem:[%s1 + $0x18] sm:$0xf]
  %v257 = vld [vmem:[%s1 + $0x1c] sm:$0xf]
  %v258 = vld [vmem:[%s1 + $0x20] sm:$0xf]
  %v259 = vld [vmem:[%s1 + $0x24] sm:$0xf]
  %v260 = vld [vmem:[%s1 + $0x28] sm:$0xf]
  %v261 = vld [vmem:[%s1 + $0x2c] sm:$0xf]
  %v262 = vld [vmem:[%s1 + $0x30] sm:$0xf]
  %v263 = vld [vmem:[%s1 + $0x34] sm:$0xf]
  %v264 = vld [vmem:[%s1 + $0x38] sm:$0xf]
  %v265 = vld [vmem:[%s1 + $0x3c] sm:$0xf]
  %v266 = vld [vmem:[%s1 + $0x40] sm:$0xf]
  %v267 = vld [vmem:[%s1 + $0x44] sm:$0x3]
  %v268 = vld [vmem:[%s2] sm:$0x1]
  %v270 = vperm.slane %v268, 0
  %273 = vst [vmem:[#allocation1] ss:$9 sm:$0xff] %v249
  %v274 = vld [vmem:[#allocation1] sm:$0xff]
  %v276 = vld [vmem:[#allocation1 + $0x9] sm:$0xff]
  %278 = vrot.lane.b32.xlu0 %v274, 72
  %v279 = vpop.permute.xlu0 %278
  %280 = vrot.lane.b32.xlu0 %v276, 72
  %v281 = vpop.permute.xlu0 %280
  %vm282 = vcmask 588800
  %v283 = vsel %vm282, %v279, %v281
  %v303 = vunpack.c.l.b16 %v250
  %v304 = vunpack.c.l.b16 %v251
  %v305 = vunpack.c.l.b16 %v252
  %v306 = vunpack.c.l.b16 %v253
  %v307 = vunpack.c.l.b16 %v254
  %v308 = vunpack.c.l.b16 %v255
  %v309 = vunpack.c.l.b16 %v256
  %v310 = vunpack.c.l.b16 %v257
  %v311 = vunpack.c.l.b16 %v258
  %v312 = vunpack.c.l.b16 %v259
  %v313 = vunpack.c.l.b16 %v260
  %v314 = vunpack.c.l.b16 %v261
  %v315 = vunpack.c.l.b16 %v262
  %v316 = vunpack.c.l.b16 %v263
  %v317 = vunpack.c.l.b16 %v264
  %v318 = vunpack.c.l.b16 %v265
  %v319 = vunpack.c.l.b16 %v266
  %v320 = vunpack.c.l.b16 %v267
  %v321 = vpack.c.b16 %v304, %v303
  %v322 = vpack.c.b16 %v306, %v305
  %v323 = vpack.c.b16 %v308, %v307
  %v324 = vpack.c.b16 %v310, %v309
  %v325 = vpack.c.b16 %v312, %v311
  %v326 = vpack.c.b16 %v314, %v313
  %v327 = vpack.c.b16 %v316, %v315
  %v328 = vpack.c.b16 %v318, %v317
  %v329 = vpack.c.b16 %v320, %v319
  %v339 = vsel %vm198, %v281, 0
  %v342 = vsel %vm201, %v329, 0
  %344 = vmatpush.bf16.msra.mxu0 %v328
  %345 = vmatpush.bf16.msra.mxu0 %v327
  %346 = vmatpush.bf16.msra.mxu0 %v326
  %347 = vmatpush.bf16.msra.mxu0 %v325
  %348 = vmatpush.bf16.msra.mxu0 %v324
  %349 = vmatpush.bf16.msra.mxu0 %v323
  %350 = vmatpush.bf16.msra.mxu0 %v322
  %351 = vmatpush.bf16.msra.mxu0 %v321
  %352 = vmatmul.bf16.gmra.mxu0 %v283
  %v353 = vpop.f32.mrf.mxu0
  %v354 = vadd.f32 %v270, %v353
  %v355 = vpop.f32.mrf.mxu0
  %356 = vdwg.mxu0
  %357 = vmatpush.bf16.msra.mxu0 0
  %358 = vmatpush.bf16.msra.mxu0 0
  %359 = vmatpush.bf16.msra.mxu0 0
  %360 = vmatpush.bf16.msra.mxu0 0
  %361 = vmatpush.bf16.msra.mxu0 0
  %362 = vmatpush.bf16.msra.mxu0 0
  %363 = vmatpush.bf16.msra.mxu0 0
  %364 = vmatpush.bf16.msra.mxu0 %v342
  %365 = vmatmul.bf16.gmra.mxu0 %v339
  %v366 = vpop.f32.mrf.mxu0
  %v367 = vadd.f32 %v354, %v366
  %v368 = vpop.f32.mrf.mxu0
  %369 = vdwg.mxu0
  %v370 = vmax.f32 %v367, 0.0
  %v371 = vpack.c.bf16 %v370, %v370
  %v373 = vrot.slane %v371, 3
  %v376 = vsel %vm73, %v371, %v373
  %378 = vrot.lane.b32.xlu0 %v376, 40
  %v379 = vpop.permute.xlu0 %378
  %vm381 = vcmask 778560
  %382 = vst.msk [vmem:[#allocation3 + $0x1] sm:$0x1] %vm381, %v379
  %v383 = vld [vmem:[#allocation2] sm:$0x3]
  %v384 = vld [vmem:[%s1] sm:$0xf]
  %v385 = vld [vmem:[%s1 + $0x4] sm:$0xf]
  %v386 = vld [vmem:[%s1 + $0x8] sm:$0xf]
  %v387 = vld [vmem:[%s1 + $0xc] sm:$0xf]
  %v388 = vld [vmem:[%s1 + $0x10] sm:$0xf]
  %v389 = vld [vmem:[%s1 + $0x14] sm:$0xf]
  %v390 = vld [vmem:[%s1 + $0x18] sm:$0xf]
  %v391 = vld [vmem:[%s1 + $0x1c] sm:$0xf]
  %v392 = vld [vmem:[%s1 + $0x20] sm:$0xf]
  %v393 = vld [vmem:[%s1 + $0x24] sm:$0xf]
  %v394 = vld [vmem:[%s1 + $0x28] sm:$0xf]
  %v395 = vld [vmem:[%s1 + $0x2c] sm:$0xf]
  %v396 = vld [vmem:[%s1 + $0x30] sm:$0xf]
  %v397 = vld [vmem:[%s1 + $0x34] sm:$0xf]
  %v398 = vld [vmem:[%s1 + $0x38] sm:$0xf]
  %v399 = vld [vmem:[%s1 + $0x3c] sm:$0xf]
  %v400 = vld [vmem:[%s1 + $0x40] sm:$0xf]
  %v401 = vld [vmem:[%s1 + $0x44] sm:$0x3]
  %v402 = vld [vmem:[%s2] sm:$0x1]
  %v404 = vperm.slane %v402, 0
  %407 = vst [vmem:[#allocation1] ss:$9 sm:$0xff] %v383
  %v408 = vld [vmem:[#allocation1] sm:$0xff]
  %v410 = vld [vmem:[#allocation1 + $0x9] sm:$0xff]
  %412 = vrot.lane.b32.xlu0 %v408, 16
  %v413 = vpop.permute.xlu0 %412
  %414 = vrot.lane.b32.xlu0 %v410, 16
  %v415 = vpop.permute.xlu0 %414
  %vm416 = vcmask 130048
  %v417 = vsel %vm416, %v413, %v415
  %v437 = vunpack.c.l.b16 %v384
  %v438 = vunpack.c.l.b16 %v385
  %v439 = vunpack.c.l.b16 %v386
  %v440 = vunpack.c.l.b16 %v387
  %v441 = vunpack.c.l.b16 %v388
  %v442 = vunpack.c.l.b16 %v389
  %v443 = vunpack.c.l.b16 %v390
  %v444 = vunpack.c.l.b16 %v391
  %v445 = vunpack.c.l.b16 %v392
  %v446 = vunpack.c.l.b16 %v393
  %v447 = vunpack.c.l.b16 %v394
  %v448 = vunpack.c.l.b16 %v395
  %v449 = vunpack.c.l.b16 %v396
  %v450 = vunpack.c.l.b16 %v397
  %v451 = vunpack.c.l.b16 %v398
  %v452 = vunpack.c.l.b16 %v399
  %v453 = vunpack.c.l.b16 %v400
  %v454 = vunpack.c.l.b16 %v401
  %v455 = vpack.c.b16 %v438, %v437
  %v456 = vpack.c.b16 %v440, %v439
  %v457 = vpack.c.b16 %v442, %v441
  %v458 = vpack.c.b16 %v444, %v443
  %v459 = vpack.c.b16 %v446, %v445
  %v460 = vpack.c.b16 %v448, %v447
  %v461 = vpack.c.b16 %v450, %v449
  %v462 = vpack.c.b16 %v452, %v451
  %v463 = vpack.c.b16 %v454, %v453
  %v473 = vsel %vm198, %v415, 0
  %v476 = vsel %vm201, %v463, 0
  %478 = vmatpush.bf16.msra.mxu0 %v462
  %479 = vmatpush.bf16.msra.mxu0 %v461
  %480 = vmatpush.bf16.msra.mxu0 %v460
  %481 = vmatpush.bf16.msra.mxu0 %v459
  %482 = vmatpush.bf16.msra.mxu0 %v458
  %483 = vmatpush.bf16.msra.mxu0 %v457
  %484 = vmatpush.bf16.msra.mxu0 %v456
  %485 = vmatpush.bf16.msra.mxu0 %v455
  %486 = vmatmul.bf16.gmra.mxu0 %v417
  %v487 = vpop.f32.mrf.mxu0
  %v488 = vadd.f32 %v404, %v487
  %v489 = vpop.f32.mrf.mxu0
  %490 = vdwg.mxu0
  %491 = vmatpush.bf16.msra.mxu0 0
  %492 = vmatpush.bf16.msra.mxu0 0
  %493 = vmatpush.bf16.msra.mxu0 0
  %494 = vmatpush.bf16.msra.mxu0 0
  %495 = vmatpush.bf16.msra.mxu0 0
  %496 = vmatpush.bf16.msra.mxu0 0
  %497 = vmatpush.bf16.msra.mxu0 0
  %498 = vmatpush.bf16.msra.mxu0 %v476
  %499 = vmatmul.bf16.gmra.mxu0 %v473
  %v500 = vpop.f32.mrf.mxu0
  %v501 = vadd.f32 %v488, %v500
  %v502 = vpop.f32.mrf.mxu0
  %503 = vdwg.mxu0
  %v504 = vmax.f32 %v501, 0.0
  %v505 = vpack.c.bf16 %v504, %v504
  %v507 = vrot.slane %v505, 3
  %v510 = vsel %vm73, %v505, %v507
  %512 = vrot.lane.b32.xlu0 %v510, 96
  %v513 = vpop.permute.xlu0 %512
  %v514 = vrot.slane %v513, 7
  %vm515 = vcmask 785408
  %v516 = vsel %vm515, %v514, %v513
  %vm518 = vcmask 1041152
  %vm519 = vcmask 189441
  %vm520 = vmor %vm519, %vm518
  %521 = vst.msk [vmem:[#allocation3 + $0x1] sm:$0x3] %vm520, %v516
  %v522 = vld [vmem:[#allocation2 + $0x1] sm:$0x3]
  %v523 = vld [vmem:[%s1] sm:$0xf]
  %v524 = vld [vmem:[%s1 + $0x4] sm:$0xf]
  %v525 = vld [vmem:[%s1 + $0x8] sm:$0xf]
  %v526 = vld [vmem:[%s1 + $0xc] sm:$0xf]
  %v527 = vld [vmem:[%s1 + $0x10] sm:$0xf]
  %v528 = vld [vmem:[%s1 + $0x14] sm:$0xf]
  %v529 = vld [vmem:[%s1 + $0x18] sm:$0xf]
  %v530 = vld [vmem:[%s1 + $0x1c] sm:$0xf]
  %v531 = vld [vmem:[%s1 + $0x20] sm:$0xf]
  %v532 = vld [vmem:[%s1 + $0x24] sm:$0xf]
  %v533 = vld [vmem:[%s1 + $0x28] sm:$0xf]
  %v534 = vld [vmem:[%s1 + $0x2c] sm:$0xf]
  %v535 = vld [vmem:[%s1 + $0x30] sm:$0xf]
  %v536 = vld [vmem:[%s1 + $0x34] sm:$0xf]
  %v537 = vld [vmem:[%s1 + $0x38] sm:$0xf]
  %v538 = vld [vmem:[%s1 + $0x3c] sm:$0xf]
  %v539 = vld [vmem:[%s1 + $0x40] sm:$0xf]
  %v540 = vld [vmem:[%s1 + $0x44] sm:$0x3]
  %v541 = vld [vmem:[%s2] sm:$0x1]
  %v543 = vperm.slane %v541, 0
  %546 = vst [vmem:[#allocation1] ss:$9 sm:$0xff] %v522
  %v547 = vld [vmem:[#allocation1] sm:$0xff]
  %v549 = vld [vmem:[#allocation1 + $0x9] sm:$0xff]
  %551 = vrot.lane.b32.xlu0 %v547, 88
  %v552 = vpop.permute.xlu0 %551
  %553 = vrot.lane.b32.xlu0 %v549, 88
  %v554 = vpop.permute.xlu0 %553
  %vm555 = vcmask 719872
  %v556 = vsel %vm555, %v552, %v554
  %v576 = vunpack.c.l.b16 %v523
  %v577 = vunpack.c.l.b16 %v524
  %v578 = vunpack.c.l.b16 %v525
  %v579 = vunpack.c.l.b16 %v526
  %v580 = vunpack.c.l.b16 %v527
  %v581 = vunpack.c.l.b16 %v528
  %v582 = vunpack.c.l.b16 %v529
  %v583 = vunpack.c.l.b16 %v530
  %v584 = vunpack.c.l.b16 %v531
  %v585 = vunpack.c.l.b16 %v532
  %v586 = vunpack.c.l.b16 %v533
  %v587 = vunpack.c.l.b16 %v534
  %v588 = vunpack.c.l.b16 %v535
  %v589 = vunpack.c.l.b16 %v536
  %v590 = vunpack.c.l.b16 %v537
  %v591 = vunpack.c.l.b16 %v538
  %v592 = vunpack.c.l.b16 %v539
  %v593 = vunpack.c.l.b16 %v540
  %v594 = vpack.c.b16 %v577, %v576
  %v595 = vpack.c.b16 %v579, %v578
  %v596 = vpack.c.b16 %v581, %v580
  %v597 = vpack.c.b16 %v583, %v582
  %v598 = vpack.c.b16 %v585, %v584
  %v599 = vpack.c.b16 %v587, %v586
  %v600 = vpack.c.b16 %v589, %v588
  %v601 = vpack.c.b16 %v591, %v590
  %v602 = vpack.c.b16 %v593, %v592
  %v612 = vsel %vm198, %v554, 0
  %v615 = vsel %vm201, %v602, 0
  %617 = vmatpush.bf16.msra.mxu0 %v601
  %618 = vmatpush.bf16.msra.mxu0 %v600
  %619 = vmatpush.bf16.msra.mxu0 %v599
  %620 = vmatpush.bf16.msra.mxu0 %v598
  %621 = vmatpush.bf16.msra.mxu0 %v597
  %622 = vmatpush.bf16.msra.mxu0 %v596
  %623 = vmatpush.bf16.msra.mxu0 %v595
  %624 = vmatpush.bf16.msra.mxu0 %v594
  %625 = vmatmul.bf16.gmra.mxu0 %v556
  %v626 = vpop.f32.mrf.mxu0
  %v627 = vadd.f32 %v543, %v626
  %v628 = vpop.f32.mrf.mxu0
  %629 = vdwg.mxu0
  %630 = vmatpush.bf16.msra.mxu0 0
  %631 = vmatpush.bf16.msra.mxu0 0
  %632 = vmatpush.bf16.msra.mxu0 0
  %633 = vmatpush.bf16.msra.mxu0 0
  %634 = vmatpush.bf16.msra.mxu0 0
  %635 = vmatpush.bf16.msra.mxu0 0
  %636 = vmatpush.bf16.msra.mxu0 0
  %637 = vmatpush.bf16.msra.mxu0 %v615
  %638 = vmatmul.bf16.gmra.mxu0 %v612
  %v639 = vpop.f32.mrf.mxu0
  %v640 = vadd.f32 %v627, %v639
  %v641 = vpop.f32.mrf.mxu0
  %642 = vdwg.mxu0
  %v643 = vmax.f32 %v640, 0.0
  %v644 = vpack.c.bf16 %v643, %v643
  %v646 = vrot.slane %v644, 3
  %v649 = vsel %vm73, %v644, %v646
  %651 = vrot.lane.b32.xlu0 %v649, 24
  %v652 = vpop.permute.xlu0 %651
  %vm654 = vcmask 647360
  %655 = vst.msk [vmem:[#allocation3 + $0x2] sm:$0x1] %vm654, %v652
  %v656 = vld [vmem:[#allocation2 + $0x1] sm:$0x3]
  %v657 = vld [vmem:[%s1] sm:$0xf]
  %v658 = vld [vmem:[%s1 + $0x4] sm:$0xf]
  %v659 = vld [vmem:[%s1 + $0x8] sm:$0xf]
  %v660 = vld [vmem:[%s1 + $0xc] sm:$0xf]
  %v661 = vld [vmem:[%s1 + $0x10] sm:$0xf]
  %v662 = vld [vmem:[%s1 + $0x14] sm:$0xf]
  %v663 = vld [vmem:[%s1 + $0x18] sm:$0xf]
  %v664 = vld [vmem:[%s1 + $0x1c] sm:$0xf]
  %v665 = vld [vmem:[%s1 + $0x20] sm:$0xf]
  %v666 = vld [vmem:[%s1 + $0x24] sm:$0xf]
  %v667 = vld [vmem:[%s1 + $0x28] sm:$0xf]
  %v668 = vld [vmem:[%s1 + $0x2c] sm:$0xf]
  %v669 = vld [vmem:[%s1 + $0x30] sm:$0xf]
  %v670 = vld [vmem:[%s1 + $0x34] sm:$0xf]
  %v671 = vld [vmem:[%s1 + $0x38] sm:$0xf]
  %v672 = vld [vmem:[%s1 + $0x3c] sm:$0xf]
  %v673 = vld [vmem:[%s1 + $0x40] sm:$0xf]
  %v674 = vld [vmem:[%s1 + $0x44] sm:$0x3]
  %v675 = vld [vmem:[%s2] sm:$0x1]
  %v677 = vperm.slane %v675, 0
  %680 = vst [vmem:[#allocation1] ss:$9 sm:$0xff] %v656
  %v681 = vld [vmem:[#allocation1] sm:$0xff]
  %v683 = vld [vmem:[#allocation1 + $0x9] sm:$0xff]
  %685 = vrot.lane.b32.xlu0 %v681, 32
  %v686 = vpop.permute.xlu0 %685
  %687 = vrot.lane.b32.xlu0 %v683, 32
  %v688 = vpop.permute.xlu0 %687
  %vm689 = vcmask 261120
  %v690 = vsel %vm689, %v686, %v688
  %v710 = vunpack.c.l.b16 %v657
  %v711 = vunpack.c.l.b16 %v658
  %v712 = vunpack.c.l.b16 %v659
  %v713 = vunpack.c.l.b16 %v660
  %v714 = vunpack.c.l.b16 %v661
  %v715 = vunpack.c.l.b16 %v662
  %v716 = vunpack.c.l.b16 %v663
  %v717 = vunpack.c.l.b16 %v664
  %v718 = vunpack.c.l.b16 %v665
  %v719 = vunpack.c.l.b16 %v666
  %v720 = vunpack.c.l.b16 %v667
  %v721 = vunpack.c.l.b16 %v668
  %v722 = vunpack.c.l.b16 %v669
  %v723 = vunpack.c.l.b16 %v670
  %v724 = vunpack.c.l.b16 %v671
  %v725 = vunpack.c.l.b16 %v672
  %v726 = vunpack.c.l.b16 %v673
  %v727 = vunpack.c.l.b16 %v674
  %v728 = vpack.c.b16 %v711, %v710
  %v729 = vpack.c.b16 %v713, %v712
  %v730 = vpack.c.b16 %v715, %v714
  %v731 = vpack.c.b16 %v717, %v716
  %v732 = vpack.c.b16 %v719, %v718
  %v733 = vpack.c.b16 %v721, %v720
  %v734 = vpack.c.b16 %v723, %v722
  %v735 = vpack.c.b16 %v725, %v724
  %v736 = vpack.c.b16 %v727, %v726
  %v746 = vsel %vm198, %v688, 0
  %v749 = vsel %vm201, %v736, 0
  %751 = vmatpush.bf16.msra.mxu0 %v735
  %752 = vmatpush.bf16.msra.mxu0 %v734
  %753 = vmatpush.bf16.msra.mxu0 %v733
  %754 = vmatpush.bf16.msra.mxu0 %v732
  %755 = vmatpush.bf16.msra.mxu0 %v731
  %756 = vmatpush.bf16.msra.mxu0 %v730
  %757 = vmatpush.bf16.msra.mxu0 %v729
  %758 = vmatpush.bf16.msra.mxu0 %v728
  %759 = vmatmul.bf16.gmra.mxu0 %v690
  %v760 = vpop.f32.mrf.mxu0
  %v761 = vadd.f32 %v677, %v760
  %v762 = vpop.f32.mrf.mxu0
  %763 = vdwg.mxu0
  %764 = vmatpush.bf16.msra.mxu0 0
  %765 = vmatpush.bf16.msra.mxu0 0
  %766 = vmatpush.bf16.msra.mxu0 0
  %767 = vmatpush.bf16.msra.mxu0 0
  %768 = vmatpush.bf16.msra.mxu0 0
  %769 = vmatpush.bf16.msra.mxu0 0
  %770 = vmatpush.bf16.msra.mxu0 0
  %771 = vmatpush.bf16.msra.mxu0 %v749
  %772 = vmatmul.bf16.gmra.mxu0 %v746
  %v773 = vpop.f32.mrf.mxu0
  %v774 = vadd.f32 %v761, %v773
  %v775 = vpop.f32.mrf.mxu0
  %776 = vdwg.mxu0
  %v777 = vmax.f32 %v774, 0.0
  %v778 = vpack.c.bf16 %v777, %v777
  %v780 = vrot.slane %v778, 3
  %v783 = vsel %vm73, %v778, %v780
  %785 = vrot.lane.b32.xlu0 %v783, 80
  %v786 = vpop.permute.xlu0 %785
  %v787 = vrot.slane %v786, 7
  %vm788 = vcmask 654336
  %v789 = vsel %vm788, %v787, %v786
  %vm791 = vcmask 1041024
  %vm792 = vcmask 58369
  %vm793 = vmor %vm792, %vm791
  %794 = vst.msk [vmem:[#allocation3 + $0x2] sm:$0x3] %vm793, %v789
  %v795 = vld [vmem:[#allocation2 + $0x2] sm:$0x3]
  %v796 = vld [vmem:[%s1] sm:$0xf]
  %v797 = vld [vmem:[%s1 + $0x4] sm:$0xf]
  %v798 = vld [vmem:[%s1 + $0x8] sm:$0xf]
  %v799 = vld [vmem:[%s1 + $0xc] sm:$0xf]
  %v800 = vld [vmem:[%s1 + $0x10] sm:$0xf]
  %v801 = vld [vmem:[%s1 + $0x14] sm:$0xf]
  %v802 = vld [vmem:[%s1 + $0x18] sm:$0xf]
  %v803 = vld [vmem:[%s1 + $0x1c] sm:$0xf]
  %v804 = vld [vmem:[%s1 + $0x20] sm:$0xf]
  %v805 = vld [vmem:[%s1 + $0x24] sm:$0xf]
  %v806 = vld [vmem:[%s1 + $0x28] sm:$0xf]
  %v807 = vld [vmem:[%s1 + $0x2c] sm:$0xf]
  %v808 = vld [vmem:[%s1 + $0x30] sm:$0xf]
  %v809 = vld [vmem:[%s1 + $0x34] sm:$0xf]
  %v810 = vld [vmem:[%s1 + $0x38] sm:$0xf]
  %v811 = vld [vmem:[%s1 + $0x3c] sm:$0xf]
  %v812 = vld [vmem:[%s1 + $0x40] sm:$0xf]
  %v813 = vld [vmem:[%s1 + $0x44] sm:$0x3]
  %v814 = vld [vmem:[%s2] sm:$0x1]
  %v816 = vperm.slane %v814, 0
  %819 = vst [vmem:[#allocation1] ss:$9 sm:$0xff] %v795
  %v820 = vld [vmem:[#allocation1] sm:$0xff]
  %v822 = vld [vmem:[#allocation1 + $0x9] sm:$0xff]
  %824 = vrot.lane.b32.xlu0 %v820, 104
  %v825 = vpop.permute.xlu0 %824
  %826 = vrot.lane.b32.xlu0 %v822, 104
  %v827 = vpop.permute.xlu0 %826
  %vm828 = vcmask 850944
  %v829 = vsel %vm828, %v825, %v827
  %v849 = vunpack.c.l.b16 %v796
  %v850 = vunpack.c.l.b16 %v797
  %v851 = vunpack.c.l.b16 %v798
  %v852 = vunpack.c.l.b16 %v799
  %v853 = vunpack.c.l.b16 %v800
  %v854 = vunpack.c.l.b16 %v801
  %v855 = vunpack.c.l.b16 %v802
  %v856 = vunpack.c.l.b16 %v803
  %v857 = vunpack.c.l.b16 %v804
  %v858 = vunpack.c.l.b16 %v805
  %v859 = vunpack.c.l.b16 %v806
  %v860 = vunpack.c.l.b16 %v807
  %v861 = vunpack.c.l.b16 %v808
  %v862 = vunpack.c.l.b16 %v809
  %v863 = vunpack.c.l.b16 %v810
  %v864 = vunpack.c.l.b16 %v811
  %v865 = vunpack.c.l.b16 %v812
  %v866 = vunpack.c.l.b16 %v813
  %v867 = vpack.c.b16 %v850, %v849
  %v868 = vpack.c.b16 %v852, %v851
  %v869 = vpack.c.b16 %v854, %v853
  %v870 = vpack.c.b16 %v856, %v855
  %v871 = vpack.c.b16 %v858, %v857
  %v872 = vpack.c.b16 %v860, %v859
  %v873 = vpack.c.b16 %v862, %v861
  %v874 = vpack.c.b16 %v864, %v863
  %v875 = vpack.c.b16 %v866, %v865
  %v885 = vsel %vm198, %v827, 0
  %v888 = vsel %vm201, %v875, 0
  %890 = vmatpush.bf16.msra.mxu0 %v874
  %891 = vmatpush.bf16.msra.mxu0 %v873
  %892 = vmatpush.bf16.msra.mxu0 %v872
  %893 = vmatpush.bf16.msra.mxu0 %v871
  %894 = vmatpush.bf16.msra.mxu0 %v870
  %895 = vmatpush.bf16.msra.mxu0 %v869
  %896 = vmatpush.bf16.msra.mxu0 %v868
  %897 = vmatpush.bf16.msra.mxu0 %v867
  %898 = vmatmul.bf16.gmra.mxu0 %v829
  %v899 = vpop.f32.mrf.mxu0
  %v900 = vadd.f32 %v816, %v899
  %v901 = vpop.f32.mrf.mxu0
  %902 = vdwg.mxu0
  %903 = vmatpush.bf16.msra.mxu0 0
  %904 = vmatpush.bf16.msra.mxu0 0
  %905 = vmatpush.bf16.msra.mxu0 0
  %906 = vmatpush.bf16.msra.mxu0 0
  %907 = vmatpush.bf16.msra.mxu0 0
  %908 = vmatpush.bf16.msra.mxu0 0
  %909 = vmatpush.bf16.msra.mxu0 0
  %910 = vmatpush.bf16.msra.mxu0 %v888
  %911 = vmatmul.bf16.gmra.mxu0 %v885
  %v912 = vpop.f32.mrf.mxu0
  %v913 = vadd.f32 %v900, %v912
  %v914 = vpop.f32.mrf.mxu0
  %915 = vdwg.mxu0
  %v916 = vmax.f32 %v913, 0.0
  %v917 = vpack.c.bf16 %v916, %v916
  %v919 = vrot.slane %v917, 3
  %v922 = vsel %vm73, %v917, %v919
  %924 = vrot.lane.b32.xlu0 %v922, 8
  %v925 = vpop.permute.xlu0 %924
  %vm927 = vcmask 516160
  %928 = vst.msk [vmem:[#allocation3 + $0x3] sm:$0x1] %vm927, %v925
  %v929 = vld [vmem:[#allocation2 + $0x2] sm:$0x3]
  %v930 = vld [vmem:[%s1] sm:$0xf]
  %v931 = vld [vmem:[%s1 + $0x4] sm:$0xf]
  %v932 = vld [vmem:[%s1 + $0x8] sm:$0xf]
  %v933 = vld [vmem:[%s1 + $0xc] sm:$0xf]
  %v934 = vld [vmem:[%s1 + $0x10] sm:$0xf]
  %v935 = vld [vmem:[%s1 + $0x14] sm:$0xf]
  %v936 = vld [vmem:[%s1 + $0x18] sm:$0xf]
  %v937 = vld [vmem:[%s1 + $0x1c] sm:$0xf]
  %v938 = vld [vmem:[%s1 + $0x20] sm:$0xf]
  %v939 = vld [vmem:[%s1 + $0x24] sm:$0xf]
  %v940 = vld [vmem:[%s1 + $0x28] sm:$0xf]
  %v941 = vld [vmem:[%s1 + $0x2c] sm:$0xf]
  %v942 = vld [vmem:[%s1 + $0x30] sm:$0xf]
  %v943 = vld [vmem:[%s1 + $0x34] sm:$0xf]
  %v944 = vld [vmem:[%s1 + $0x38] sm:$0xf]
  %v945 = vld [vmem:[%s1 + $0x3c] sm:$0xf]
  %v946 = vld [vmem:[%s1 + $0x40] sm:$0xf]
  %v947 = vld [vmem:[%s1 + $0x44] sm:$0x3]
  %v948 = vld [vmem:[%s2] sm:$0x1]
  %v950 = vperm.slane %v948, 0
  %953 = vst [vmem:[#allocation1] ss:$9 sm:$0xff] %v929
  %v954 = vld [vmem:[#allocation1] sm:$0xff]
  %v956 = vld [vmem:[#allocation1 + $0x9] sm:$0xff]
  %958 = vrot.lane.b32.xlu0 %v954, 48
  %v959 = vpop.permute.xlu0 %958
  %960 = vrot.lane.b32.xlu0 %v956, 48
  %v961 = vpop.permute.xlu0 %960
  %vm962 = vcmask 392192
  %v963 = vsel %vm962, %v959, %v961
  %v983 = vunpack.c.l.b16 %v930
  %v984 = vunpack.c.l.b16 %v931
  %v985 = vunpack.c.l.b16 %v932
  %v986 = vunpack.c.l.b16 %v933
  %v987 = vunpack.c.l.b16 %v934
  %v988 = vunpack.c.l.b16 %v935
  %v989 = vunpack.c.l.b16 %v936
  %v990 = vunpack.c.l.b16 %v937
  %v991 = vunpack.c.l.b16 %v938
  %v992 = vunpack.c.l.b16 %v939
  %v993 = vunpack.c.l.b16 %v940
  %v994 = vunpack.c.l.b16 %v941
  %v995 = vunpack.c.l.b16 %v942
  %v996 = vunpack.c.l.b16 %v943
  %v997 = vunpack.c.l.b16 %v944
  %v998 = vunpack.c.l.b16 %v945
  %v999 = vunpack.c.l.b16 %v946
  %v1000 = vunpack.c.l.b16 %v947
  %v1001 = vpack.c.b16 %v984, %v983
  %v1002 = vpack.c.b16 %v986, %v985
  %v1003 = vpack.c.b16 %v988, %v987
  %v1004 = vpack.c.b16 %v990, %v989
  %v1005 = vpack.c.b16 %v992, %v991
  %v1006 = vpack.c.b16 %v994, %v993
  %v1007 = vpack.c.b16 %v996, %v995
  %v1008 = vpack.c.b16 %v998, %v997
  %v1009 = vpack.c.b16 %v1000, %v999
  %v1019 = vsel %vm198, %v961, 0
  %v1022 = vsel %vm201, %v1009, 0
  %1024 = vmatpush.bf16.msra.mxu0 %v1008
  %1025 = vmatpush.bf16.msra.mxu0 %v1007
  %1026 = vmatpush.bf16.msra.mxu0 %v1006
  %1027 = vmatpush.bf16.msra.mxu0 %v1005
  %1028 = vmatpush.bf16.msra.mxu0 %v1004
  %1029 = vmatpush.bf16.msra.mxu0 %v1003
  %1030 = vmatpush.bf16.msra.mxu0 %v1002
  %1031 = vmatpush.bf16.msra.mxu0 %v1001
  %1032 = vmatmul.bf16.gmra.mxu0 %v963
  %v1033 = vpop.f32.mrf.mxu0
  %v1034 = vadd.f32 %v950, %v1033
  %v1035 = vpop.f32.mrf.mxu0
  %1036 = vdwg.mxu0
  %1037 = vmatpush.bf16.msra.mxu0 0
  %1038 = vmatpush.bf16.msra.mxu0 0
  %1039 = vmatpush.bf16.msra.mxu0 0
  %1040 = vmatpush.bf16.msra.mxu0 0
  %1041 = vmatpush.bf16.msra.mxu0 0
  %1042 = vmatpush.bf16.msra.mxu0 0
  %1043 = vmatpush.bf16.msra.mxu0 0
  %1044 = vmatpush.bf16.msra.mxu0 %v1022
  %1045 = vmatmul.bf16.gmra.mxu0 %v1019
  %v1046 = vpop.f32.mrf.mxu0
  %v1047 = vadd.f32 %v1034, %v1046
  %v1048 = vpop.f32.mrf.mxu0
  %1049 = vdwg.mxu0
  %v1050 = vmax.f32 %v1047, 0.0
  %v1051 = vpack.c.bf16 %v1050, %v1050
  %v1053 = vrot.slane %v1051, 3
  %v1056 = vsel %vm73, %v1051, %v1053
  %1058 = vrot.lane.b32.xlu0 %v1056, 64
  %v1059 = vpop.permute.xlu0 %1058
  %vm1061 = vcmask 975360
  %1062 = vst.msk [vmem:[#allocation3 + $0x3] sm:$0x1] %vm1061, %v1059
  %v1063 = vld [vmem:[#allocation2 + $0x3] sm:$0x3]
  %v1064 = vld [vmem:[%s1] sm:$0xf]
  %v1065 = vld [vmem:[%s1 + $0x4] sm:$0xf]
  %v1066 = vld [vmem:[%s1 + $0x8] sm:$0xf]
  %v1067 = vld [vmem:[%s1 + $0xc] sm:$0xf]
  %v1068 = vld [vmem:[%s1 + $0x10] sm:$0xf]
  %v1069 = vld [vmem:[%s1 + $0x14] sm:$0xf]
  %v1070 = vld [vmem:[%s1 + $0x18] sm:$0xf]
  %v1071 = vld [vmem:[%s1 + $0x1c] sm:$0xf]
  %v1072 = vld [vmem:[%s1 + $0x20] sm:$0xf]
  %v1073 = vld [vmem:[%s1 + $0x24] sm:$0xf]
  %v1074 = vld [vmem:[%s1 + $0x28] sm:$0xf]
  %v1075 = vld [vmem:[%s1 + $0x2c] sm:$0xf]
  %v1076 = vld [vmem:[%s1 + $0x30] sm:$0xf]
  %v1077 = vld [vmem:[%s1 + $0x34] sm:$0xf]
  %v1078 = vld [vmem:[%s1 + $0x38] sm:$0xf]
  %v1079 = vld [vmem:[%s1 + $0x3c] sm:$0xf]
  %v1080 = vld [vmem:[%s1 + $0x40] sm:$0xf]
  %v1081 = vld [vmem:[%s1 + $0x44] sm:$0x3]
  %v1082 = vld [vmem:[%s2] sm:$0x1]
  %v1084 = vperm.slane %v1082, 0
  %1087 = vst [vmem:[#allocation1] ss:$9 sm:$0xff] %v1063
  %v1088 = vld [vmem:[#allocation1] sm:$0xff]
  %v1090 = vld [vmem:[#allocation1 + $0x9] sm:$0xff]
  %1092 = vrot.lane.b32.xlu0 %v1088, 120
  %v1093 = vpop.permute.xlu0 %1092
  %1094 = vrot.lane.b32.xlu0 %v1090, 120
  %v1095 = vpop.permute.xlu0 %1094
  %vm1096 = vcmask 982016
  %v1097 = vsel %vm1096, %v1093, %v1095
  %v1117 = vunpack.c.l.b16 %v1064
  %v1118 = vunpack.c.l.b16 %v1065
  %v1119 = vunpack.c.l.b16 %v1066
  %v1120 = vunpack.c.l.b16 %v1067
  %v1121 = vunpack.c.l.b16 %v1068
  %v1122 = vunpack.c.l.b16 %v1069
  %v1123 = vunpack.c.l.b16 %v1070
  %v1124 = vunpack.c.l.b16 %v1071
  %v1125 = vunpack.c.l.b16 %v1072
  %v1126 = vunpack.c.l.b16 %v1073
  %v1127 = vunpack.c.l.b16 %v1074
  %v1128 = vunpack.c.l.b16 %v1075
  %v1129 = vunpack.c.l.b16 %v1076
  %v1130 = vunpack.c.l.b16 %v1077
  %v1131 = vunpack.c.l.b16 %v1078
  %v1132 = vunpack.c.l.b16 %v1079
  %v1133 = vunpack.c.l.b16 %v1080
  %v1134 = vunpack.c.l.b16 %v1081
  %v1135 = vpack.c.b16 %v1118, %v1117
  %v1136 = vpack.c.b16 %v1120, %v1119
  %v1137 = vpack.c.b16 %v1122, %v1121
  %v1138 = vpack.c.b16 %v1124, %v1123
  %v1139 = vpack.c.b16 %v1126, %v1125
  %v1140 = vpack.c.b16 %v1128, %v1127
  %v1141 = vpack.c.b16 %v1130, %v1129
  %v1142 = vpack.c.b16 %v1132, %v1131
  %v1143 = vpack.c.b16 %v1134, %v1133
  %v1153 = vsel %vm198, %v1095, 0
  %v1156 = vsel %vm201, %v1143, 0
  %1158 = vmatpush.bf16.msra.mxu0 %v1142
  %1159 = vmatpush.bf16.msra.mxu0 %v1141
  %1160 = vmatpush.bf16.msra.mxu0 %v1140
  %1161 = vmatpush.bf16.msra.mxu0 %v1139
  %1162 = vmatpush.bf16.msra.mxu0 %v1138
  %1163 = vmatpush.bf16.msra.mxu0 %v1137
  %1164 = vmatpush.bf16.msra.mxu0 %v1136
  %1165 = vmatpush.bf16.msra.mxu0 %v1135
  %1166 = vmatmul.bf16.gmra.mxu0 %v1097
  %v1167 = vpop.f32.mrf.mxu0
  %v1168 = vadd.f32 %v1084, %v1167
  %v1169 = vpop.f32.mrf.mxu0
  %1170 = vdwg.mxu0
  %1171 = vmatpush.bf16.msra.mxu0 0
  %1172 = vmatpush.bf16.msra.mxu0 0
  %1173 = vmatpush.bf16.msra.mxu0 0
  %1174 = vmatpush.bf16.msra.mxu0 0
  %1175 = vmatpush.bf16.msra.mxu0 0
  %1176 = vmatpush.bf16.msra.mxu0 0
  %1177 = vmatpush.bf16.msra.mxu0 0
  %1178 = vmatpush.bf16.msra.mxu0 %v1156
  %1179 = vmatmul.bf16.gmra.mxu0 %v1153
  %v1180 = vpop.f32.mrf.mxu0
  %v1181 = vadd.f32 %v1168, %v1180
  %v1182 = vpop.f32.mrf.mxu0
  %1183 = vdwg.mxu0
  %v1184 = vmax.f32 %v1181, 0.0
  %v1185 = vpack.c.bf16 %v1184, %v1184
  %v1187 = vrot.slane %v1185, 3
  %v1190 = vsel %vm73, %v1185, %v1187
  %1192 = vrot.lane.b32.xlu0 %v1190, 120
  %v1193 = vpop.permute.xlu0 %1192
  %v1194 = vrot.slane %v1193, 7
  %v1195 = vsel %vm1096, %v1194, %v1193
  %vm1197 = vcmask 1041344
  %vm1198 = vcmask 386049
  %vm1199 = vmor %vm1198, %vm1197
  %1200 = vst.msk [vmem:[#allocation3 + $0x3] sm:$0x3] %vm1199, %v1195
  %v1201 = vld [vmem:[#allocation2 + $0x3] sm:$0x3]
  %v1202 = vld [vmem:[%s1] sm:$0xf]
  %v1203 = vld [vmem:[%s1 + $0x4] sm:$0xf]
  %v1204 = vld [vmem:[%s1 + $0x8] sm:$0xf]
  %v1205 = vld [vmem:[%s1 + $0xc] sm:$0xf]
  %v1206 = vld [vmem:[%s1 + $0x10] sm:$0xf]
  %v1207 = vld [vmem:[%s1 + $0x14] sm:$0xf]
  %v1208 = vld [vmem:[%s1 + $0x18] sm:$0xf]
  %v1209 = vld [vmem:[%s1 + $0x1c] sm:$0xf]
  %v1210 = vld [vmem:[%s1 + $0x20] sm:$0xf]
  %v1211 = vld [vmem:[%s1 + $0x24] sm:$0xf]
  %v1212 = vld [vmem:[%s1 + $0x28] sm:$0xf]
  %v1213 = vld [vmem:[%s1 + $0x2c] sm:$0xf]
  %v1214 = vld [vmem:[%s1 + $0x30] sm:$0xf]
  %v1215 = vld [vmem:[%s1 + $0x34] sm:$0xf]
  %v1216 = vld [vmem:[%s1 + $0x38] sm:$0xf]
  %v1217 = vld [vmem:[%s1 + $0x3c] sm:$0xf]
  %v1218 = vld [vmem:[%s1 + $0x40] sm:$0xf]
  %v1219 = vld [vmem:[%s1 + $0x44] sm:$0x3]
  %v1220 = vld [vmem:[%s2] sm:$0x1]
  %v1222 = vperm.slane %v1220, 0
  %1225 = vst [vmem:[#allocation1] ss:$9 sm:$0xff] %v1201
  %v1226 = vld [vmem:[#allocation1] sm:$0xff]
  %v1228 = vld [vmem:[#allocation1 + $0x9] sm:$0xff]
  %1230 = vrot.lane.b32.xlu0 %v1226, 64
  %v1231 = vpop.permute.xlu0 %1230
  %1232 = vrot.lane.b32.xlu0 %v1228, 64
  %v1233 = vpop.permute.xlu0 %1232
  %vm1234 = vcmask 523264
  %v1235 = vsel %vm1234, %v1231, %v1233
  %v1255 = vunpack.c.l.b16 %v1202
  %v1256 = vunpack.c.l.b16 %v1203
  %v1257 = vunpack.c.l.b16 %v1204
  %v1258 = vunpack.c.l.b16 %v1205
  %v1259 = vunpack.c.l.b16 %v1206
  %v1260 = vunpack.c.l.b16 %v1207
  %v1261 = vunpack.c.l.b16 %v1208
  %v1262 = vunpack.c.l.b16 %v1209
  %v1263 = vunpack.c.l.b16 %v1210
  %v1264 = vunpack.c.l.b16 %v1211
  %v1265 = vunpack.c.l.b16 %v1212
  %v1266 = vunpack.c.l.b16 %v1213
  %v1267 = vunpack.c.l.b16 %v1214
  %v1268 = vunpack.c.l.b16 %v1215
  %v1269 = vunpack.c.l.b16 %v1216
  %v1270 = vunpack.c.l.b16 %v1217
  %v1271 = vunpack.c.l.b16 %v1218
  %v1272 = vunpack.c.l.b16 %v1219
  %v1273 = vpack.c.b16 %v1256, %v1255
  %v1274 = vpack.c.b16 %v1258, %v1257
  %v1275 = vpack.c.b16 %v1260, %v1259
  %v1276 = vpack.c.b16 %v1262, %v1261
  %v1277 = vpack.c.b16 %v1264, %v1263
  %v1278 = vpack.c.b16 %v1266, %v1265
  %v1279 = vpack.c.b16 %v1268, %v1267
  %v1280 = vpack.c.b16 %v1270, %v1269
  %v1281 = vpack.c.b16 %v1272, %v1271
  %v1291 = vsel %vm198, %v1233, 0
  %v1294 = vsel %vm201, %v1281, 0
  %1296 = vmatpush.bf16.msra.mxu0 %v1280
  %1297 = vmatpush.bf16.msra.mxu0 %v1279
  %1298 = vmatpush.bf16.msra.mxu0 %v1278
  %1299 = vmatpush.bf16.msra.mxu0 %v1277
  %1300 = vmatpush.bf16.msra.mxu0 %v1276
  %1301 = vmatpush.bf16.msra.mxu0 %v1275
  %1302 = vmatpush.bf16.msra.mxu0 %v1274
  %1303 = vmatpush.bf16.msra.mxu0 %v1273
  %1304 = vmatmul.bf16.gmra.mxu0 %v1235
  %v1305 = vpop.f32.mrf.mxu0
  %v1306 = vadd.f32 %v1222, %v1305
  %v1307 = vpop.f32.mrf.mxu0
  %1308 = vdwg.mxu0
  %1309 = vmatpush.bf16.msra.mxu0 0
  %1310 = vmatpush.bf16.msra.mxu0 0
  %1311 = vmatpush.bf16.msra.mxu0 0
  %1312 = vmatpush.bf16.msra.mxu0 0
  %1313 = vmatpush.bf16.msra.mxu0 0
  %1314 = vmatpush.bf16.msra.mxu0 0
  %1315 = vmatpush.bf16.msra.mxu0 0
  %1316 = vmatpush.bf16.msra.mxu0 %v1294
  %1317 = vmatmul.bf16.gmra.mxu0 %v1291
  %v1318 = vpop.f32.mrf.mxu0
  %v1319 = vadd.f32 %v1306, %v1318
  %v1320 = vpop.f32.mrf.mxu0
  %1321 = vdwg.mxu0
  %v1322 = vmax.f32 %v1319, 0.0
  %v1323 = vpack.c.bf16 %v1322, %v1322
  %v1325 = vrot.slane %v1323, 3
  %v1328 = vsel %vm73, %v1323, %v1325
  %1330 = vrot.lane.b32.xlu0 %v1328, 48
  %v1331 = vpop.permute.xlu0 %1330
  %vm1333 = vcmask 844160
  %1334 = vst.msk [vmem:[#allocation3 + $0x4] sm:$0x1] %vm1333, %v1331
  %v1335 = vld [vmem:[#allocation2 + $0x3] sm:$0x7]
  %v1336 = vld [vmem:[%s1] sm:$0xf]
  %v1337 = vld [vmem:[%s1 + $0x4] sm:$0xf]
  %v1338 = vld [vmem:[%s1 + $0x8] sm:$0xf]
  %v1339 = vld [vmem:[%s1 + $0xc] sm:$0xf]
  %v1340 = vld [vmem:[%s1 + $0x10] sm:$0xf]
  %v1341 = vld [vmem:[%s1 + $0x14] sm:$0xf]
  %v1342 = vld [vmem:[%s1 + $0x18] sm:$0xf]
  %v1343 = vld [vmem:[%s1 + $0x1c] sm:$0xf]
  %v1344 = vld [vmem:[%s1 + $0x20] sm:$0xf]
  %v1345 = vld [vmem:[%s1 + $0x24] sm:$0xf]
  %v1346 = vld [vmem:[%s1 + $0x28] sm:$0xf]
  %v1347 = vld [vmem:[%s1 + $0x2c] sm:$0xf]
  %v1348 = vld [vmem:[%s1 + $0x30] sm:$0xf]
  %v1349 = vld [vmem:[%s1 + $0x34] sm:$0xf]
  %v1350 = vld [vmem:[%s1 + $0x38] sm:$0xf]
  %v1351 = vld [vmem:[%s1 + $0x3c] sm:$0xf]
  %v1352 = vld [vmem:[%s1 + $0x40] sm:$0xf]
  %v1353 = vld [vmem:[%s1 + $0x44] sm:$0x3]
  %v1354 = vld [vmem:[%s2] sm:$0x1]
  %v1356 = vperm.slane %v1354, 0
  %1359 = vst [vmem:[#allocation1] ss:$9 sm:$0xff] %v1335
  %v1360 = vld [vmem:[#allocation1] sm:$0xff]
  %v1362 = vld [vmem:[#allocation1 + $0x9] sm:$0xff]
  %v1364 = vld [vmem:[#allocation1 + $0x12] sm:$0xff]
  %1366 = vrot.lane.b32.xlu0 %v1360, 8
  %v1367 = vpop.permute.xlu0 %1366
  %1368 = vrot.lane.b32.xlu0 %v1362, 8
  %v1369 = vpop.permute.xlu0 %1368
  %1370 = vrot.lane.b32.xlu0 %v1364, 8
  %v1371 = vpop.permute.xlu0 %1370
  %vm1372 = vcmask 64512
  %v1373 = vsel %vm1372, %v1367, %v1369
  %v1374 = vsel %vm1372, %v1369, %v1371
  %v1394 = vunpack.c.l.b16 %v1336
  %v1395 = vunpack.c.l.b16 %v1337
  %v1396 = vunpack.c.l.b16 %v1338
  %v1397 = vunpack.c.l.b16 %v1339
  %v1398 = vunpack.c.l.b16 %v1340
  %v1399 = vunpack.c.l.b16 %v1341
  %v1400 = vunpack.c.l.b16 %v1342
  %v1401 = vunpack.c.l.b16 %v1343
  %v1402 = vunpack.c.l.b16 %v1344
  %v1403 = vunpack.c.l.b16 %v1345
  %v1404 = vunpack.c.l.b16 %v1346
  %v1405 = vunpack.c.l.b16 %v1347
  %v1406 = vunpack.c.l.b16 %v1348
  %v1407 = vunpack.c.l.b16 %v1349
  %v1408 = vunpack.c.l.b16 %v1350
  %v1409 = vunpack.c.l.b16 %v1351
  %v1410 = vunpack.c.l.b16 %v1352
  %v1411 = vunpack.c.l.b16 %v1353
  %v1412 = vpack.c.b16 %v1395, %v1394
  %v1413 = vpack.c.b16 %v1397, %v1396
  %v1414 = vpack.c.b16 %v1399, %v1398
  %v1415 = vpack.c.b16 %v1401, %v1400
  %v1416 = vpack.c.b16 %v1403, %v1402
  %v1417 = vpack.c.b16 %v1405, %v1404
  %v1418 = vpack.c.b16 %v1407, %v1406
  %v1419 = vpack.c.b16 %v1409, %v1408
  %v1420 = vpack.c.b16 %v1411, %v1410
  %v1430 = vsel %vm198, %v1374, 0
  %v1433 = vsel %vm201, %v1420, 0
  %1435 = vmatpush.bf16.msra.mxu0 %v1419
  %1436 = vmatpush.bf16.msra.mxu0 %v1418
  %1437 = vmatpush.bf16.msra.mxu0 %v1417
  %1438 = vmatpush.bf16.msra.mxu0 %v1416
  %1439 = vmatpush.bf16.msra.mxu0 %v1415
  %1440 = vmatpush.bf16.msra.mxu0 %v1414
  %1441 = vmatpush.bf16.msra.mxu0 %v1413
  %1442 = vmatpush.bf16.msra.mxu0 %v1412
  %1443 = vmatmul.bf16.gmra.mxu0 %v1373
  %v1444 = vpop.f32.mrf.mxu0
  %v1445 = vadd.f32 %v1356, %v1444
  %v1446 = vpop.f32.mrf.mxu0
  %1447 = vdwg.mxu0
  %1448 = vmatpush.bf16.msra.mxu0 0
  %1449 = vmatpush.bf16.msra.mxu0 0
  %1450 = vmatpush.bf16.msra.mxu0 0
  %1451 = vmatpush.bf16.msra.mxu0 0
  %1452 = vmatpush.bf16.msra.mxu0 0
  %1453 = vmatpush.bf16.msra.mxu0 0
  %1454 = vmatpush.bf16.msra.mxu0 0
  %1455 = vmatpush.bf16.msra.mxu0 %v1433
  %1456 = vmatmul.bf16.gmra.mxu0 %v1430
  %v1457 = vpop.f32.mrf.mxu0
  %v1458 = vadd.f32 %v1445, %v1457
  %v1459 = vpop.f32.mrf.mxu0
  %1460 = vdwg.mxu0
  %v1461 = vmax.f32 %v1458, 0.0
  %v1462 = vpack.c.bf16 %v1461, %v1461
  %v1464 = vrot.slane %v1462, 3
  %v1467 = vsel %vm73, %v1462, %v1464
  %1469 = vrot.lane.b32.xlu0 %v1467, 104
  %v1470 = vpop.permute.xlu0 %1469
  %v1471 = vrot.slane %v1470, 7
  %v1472 = vsel %vm828, %v1471, %v1470
  %vm1474 = vcmask 1041216
  %vm1475 = vcmask 254977
  %vm1476 = vmor %vm1475, %vm1474
  %1477 = vst.msk [vmem:[#allocation3 + $0x4] sm:$0x3] %vm1476, %v1472
  %v1478 = vld [vmem:[#allocation2 + $0x4] sm:$0x3]
  %v1479 = vld [vmem:[%s1] sm:$0xf]
  %v1480 = vld [vmem:[%s1 + $0x4] sm:$0xf]
  %v1481 = vld [vmem:[%s1 + $0x8] sm:$0xf]
  %v1482 = vld [vmem:[%s1 + $0xc] sm:$0xf]
  %v1483 = vld [vmem:[%s1 + $0x10] sm:$0xf]
  %v1484 = vld [vmem:[%s1 + $0x14] sm:$0xf]
  %v1485 = vld [vmem:[%s1 + $0x18] sm:$0xf]
  %v1486 = vld [vmem:[%s1 + $0x1c] sm:$0xf]
  %v1487 = vld [vmem:[%s1 + $0x20] sm:$0xf]
  %v1488 = vld [vmem:[%s1 + $0x24] sm:$0xf]
  %v1489 = vld [vmem:[%s1 + $0x28] sm:$0xf]
  %v1490 = vld [vmem:[%s1 + $0x2c] sm:$0xf]
  %v1491 = vld [vmem:[%s1 + $0x30] sm:$0xf]
  %v1492 = vld [vmem:[%s1 + $0x34] sm:$0xf]
  %v1493 = vld [vmem:[%s1 + $0x38] sm:$0xf]
  %v1494 = vld [vmem:[%s1 + $0x3c] sm:$0xf]
  %v1495 = vld [vmem:[%s1 + $0x40] sm:$0xf]
  %v1496 = vld [vmem:[%s1 + $0x44] sm:$0x3]
  %v1497 = vld [vmem:[%s2] sm:$0x1]
  %v1499 = vperm.slane %v1497, 0
  %1502 = vst [vmem:[#allocation1] ss:$9 sm:$0xff] %v1478
  %v1503 = vld [vmem:[#allocation1] sm:$0xff]
  %v1505 = vld [vmem:[#allocation1 + $0x9] sm:$0xff]
  %1507 = vrot.lane.b32.xlu0 %v1503, 80
  %v1508 = vpop.permute.xlu0 %1507
  %1509 = vrot.lane.b32.xlu0 %v1505, 80
  %v1510 = vpop.permute.xlu0 %1509
  %v1511 = vsel %vm788, %v1508, %v1510
  %v1531 = vunpack.c.l.b16 %v1479
  %v1532 = vunpack.c.l.b16 %v1480
  %v1533 = vunpack.c.l.b16 %v1481
  %v1534 = vunpack.c.l.b16 %v1482
  %v1535 = vunpack.c.l.b16 %v1483
  %v1536 = vunpack.c.l.b16 %v1484
  %v1537 = vunpack.c.l.b16 %v1485
  %v1538 = vunpack.c.l.b16 %v1486
  %v1539 = vunpack.c.l.b16 %v1487
  %v1540 = vunpack.c.l.b16 %v1488
  %v1541 = vunpack.c.l.b16 %v1489
  %v1542 = vunpack.c.l.b16 %v1490
  %v1543 = vunpack.c.l.b16 %v1491
  %v1544 = vunpack.c.l.b16 %v1492
  %v1545 = vunpack.c.l.b16 %v1493
  %v1546 = vunpack.c.l.b16 %v1494
  %v1547 = vunpack.c.l.b16 %v1495
  %v1548 = vunpack.c.l.b16 %v1496
  %v1549 = vpack.c.b16 %v1532, %v1531
  %v1550 = vpack.c.b16 %v1534, %v1533
  %v1551 = vpack.c.b16 %v1536, %v1535
  %v1552 = vpack.c.b16 %v1538, %v1537
  %v1553 = vpack.c.b16 %v1540, %v1539
  %v1554 = vpack.c.b16 %v1542, %v1541
  %v1555 = vpack.c.b16 %v1544, %v1543
  %v1556 = vpack.c.b16 %v1546, %v1545
  %v1557 = vpack.c.b16 %v1548, %v1547
  %v1567 = vsel %vm198, %v1510, 0
  %v1570 = vsel %vm201, %v1557, 0
  %1572 = vmatpush.bf16.msra.mxu0 %v1556
  %1573 = vmatpush.bf16.msra.mxu0 %v1555
  %1574 = vmatpush.bf16.msra.mxu0 %v1554
  %1575 = vmatpush.bf16.msra.mxu0 %v1553
  %1576 = vmatpush.bf16.msra.mxu0 %v1552
  %1577 = vmatpush.bf16.msra.mxu0 %v1551
  %1578 = vmatpush.bf16.msra.mxu0 %v1550
  %1579 = vmatpush.bf16.msra.mxu0 %v1549
  %1580 = vmatmul.bf16.gmra.mxu0 %v1511
  %v1581 = vpop.f32.mrf.mxu0
  %v1582 = vadd.f32 %v1499, %v1581
  %v1583 = vpop.f32.mrf.mxu0
  %1584 = vdwg.mxu0
  %1585 = vmatpush.bf16.msra.mxu0 0
  %1586 = vmatpush.bf16.msra.mxu0 0
  %1587 = vmatpush.bf16.msra.mxu0 0
  %1588 = vmatpush.bf16.msra.mxu0 0
  %1589 = vmatpush.bf16.msra.mxu0 0
  %1590 = vmatpush.bf16.msra.mxu0 0
  %1591 = vmatpush.bf16.msra.mxu0 0
  %1592 = vmatpush.bf16.msra.mxu0 %v1570
  %1593 = vmatmul.bf16.gmra.mxu0 %v1567
  %v1594 = vpop.f32.mrf.mxu0
  %v1595 = vadd.f32 %v1582, %v1594
  %v1596 = vpop.f32.mrf.mxu0
  %1597 = vdwg.mxu0
  %v1598 = vmax.f32 %v1595, 0.0
  %v1599 = vpack.c.bf16 %v1598, %v1598
  %v1601 = vrot.slane %v1599, 3
  %v1604 = vsel %vm73, %v1599, %v1601
  %1606 = vrot.lane.b32.xlu0 %v1604, 32
  %v1607 = vpop.permute.xlu0 %1606
  %vm1609 = vcmask 712960
  %1610 = vst.msk [vmem:[#allocation3 + $0x5] sm:$0x1] %vm1609, %v1607
  %v1611 = vld [vmem:[#allocation2 + $0x4] sm:$0x3]
  %v1612 = vld [vmem:[%s1] sm:$0xf]
  %v1613 = vld [vmem:[%s1 + $0x4] sm:$0xf]
  %v1614 = vld [vmem:[%s1 + $0x8] sm:$0xf]
  %v1615 = vld [vmem:[%s1 + $0xc] sm:$0xf]
  %v1616 = vld [vmem:[%s1 + $0x10] sm:$0xf]
  %v1617 = vld [vmem:[%s1 + $0x14] sm:$0xf]
  %v1618 = vld [vmem:[%s1 + $0x18] sm:$0xf]
  %v1619 = vld [vmem:[%s1 + $0x1c] sm:$0xf]
  %v1620 = vld [vmem:[%s1 + $0x20] sm:$0xf]
  %v1621 = vld [vmem:[%s1 + $0x24] sm:$0xf]
  %v1622 = vld [vmem:[%s1 + $0x28] sm:$0xf]
  %v1623 = vld [vmem:[%s1 + $0x2c] sm:$0xf]
  %v1624 = vld [vmem:[%s1 + $0x30] sm:$0xf]
  %v1625 = vld [vmem:[%s1 + $0x34] sm:$0xf]
  %v1626 = vld [vmem:[%s1 + $0x38] sm:$0xf]
  %v1627 = vld [vmem:[%s1 + $0x3c] sm:$0xf]
  %v1628 = vld [vmem:[%s1 + $0x40] sm:$0xf]
  %v1629 = vld [vmem:[%s1 + $0x44] sm:$0x3]
  %v1630 = vld [vmem:[%s2] sm:$0x1]
  %v1632 = vperm.slane %v1630, 0
  %1635 = vst [vmem:[#allocation1] ss:$9 sm:$0xff] %v1611
  %v1636 = vld [vmem:[#allocation1] sm:$0xff]
  %v1638 = vld [vmem:[#allocation1 + $0x9] sm:$0xff]
  %1640 = vrot.lane.b32.xlu0 %v1636, 24
  %v1641 = vpop.permute.xlu0 %1640
  %1642 = vrot.lane.b32.xlu0 %v1638, 24
  %v1643 = vpop.permute.xlu0 %1642
  %vm1644 = vcmask 195584
  %v1645 = vsel %vm1644, %v1641, %v1643
  %v1665 = vunpack.c.l.b16 %v1612
  %v1666 = vunpack.c.l.b16 %v1613
  %v1667 = vunpack.c.l.b16 %v1614
  %v1668 = vunpack.c.l.b16 %v1615
  %v1669 = vunpack.c.l.b16 %v1616
  %v1670 = vunpack.c.l.b16 %v1617
  %v1671 = vunpack.c.l.b16 %v1618
  %v1672 = vunpack.c.l.b16 %v1619
  %v1673 = vunpack.c.l.b16 %v1620
  %v1674 = vunpack.c.l.b16 %v1621
  %v1675 = vunpack.c.l.b16 %v1622
  %v1676 = vunpack.c.l.b16 %v1623
  %v1677 = vunpack.c.l.b16 %v1624
  %v1678 = vunpack.c.l.b16 %v1625
  %v1679 = vunpack.c.l.b16 %v1626
  %v1680 = vunpack.c.l.b16 %v1627
  %v1681 = vunpack.c.l.b16 %v1628
  %v1682 = vunpack.c.l.b16 %v1629
  %v1683 = vpack.c.b16 %v1666, %v1665
  %v1684 = vpack.c.b16 %v1668, %v1667
  %v1685 = vpack.c.b16 %v1670, %v1669
  %v1686 = vpack.c.b16 %v1672, %v1671
  %v1687 = vpack.c.b16 %v1674, %v1673
  %v1688 = vpack.c.b16 %v1676, %v1675
  %v1689 = vpack.c.b16 %v1678, %v1677
  %v1690 = vpack.c.b16 %v1680, %v1679
  %v1691 = vpack.c.b16 %v1682, %v1681
  %v1701 = vsel %vm198, %v1643, 0
  %v1704 = vsel %vm201, %v1691, 0
  %1706 = vmatpush.bf16.msra.mxu0 %v1690
  %1707 = vmatpush.bf16.msra.mxu0 %v1689
  %1708 = vmatpush.bf16.msra.mxu0 %v1688
  %1709 = vmatpush.bf16.msra.mxu0 %v1687
  %1710 = vmatpush.bf16.msra.mxu0 %v1686
  %1711 = vmatpush.bf16.msra.mxu0 %v1685
  %1712 = vmatpush.bf16.msra.mxu0 %v1684
  %1713 = vmatpush.bf16.msra.mxu0 %v1683
  %1714 = vmatmul.bf16.gmra.mxu0 %v1645
  %v1715 = vpop.f32.mrf.mxu0
  %v1716 = vadd.f32 %v1632, %v1715
  %v1717 = vpop.f32.mrf.mxu0
  %1718 = vdwg.mxu0
  %1719 = vmatpush.bf16.msra.mxu0 0
  %1720 = vmatpush.bf16.msra.mxu0 0
  %1721 = vmatpush.bf16.msra.mxu0 0
  %1722 = vmatpush.bf16.msra.mxu0 0
  %1723 = vmatpush.bf16.msra.mxu0 0
  %1724 = vmatpush.bf16.msra.mxu0 0
  %1725 = vmatpush.bf16.msra.mxu0 0
  %1726 = vmatpush.bf16.msra.mxu0 %v1704
  %1727 = vmatmul.bf16.gmra.mxu0 %v1701
  %v1728 = vpop.f32.mrf.mxu0
  %v1729 = vadd.f32 %v1716, %v1728
  %v1730 = vpop.f32.mrf.mxu0
  %1731 = vdwg.mxu0
  %v1732 = vmax.f32 %v1729, 0.0
  %v1733 = vpack.c.bf16 %v1732, %v1732
  %v1735 = vrot.slane %v1733, 3
  %v1738 = vsel %vm73, %v1733, %v1735
  %1740 = vrot.lane.b32.xlu0 %v1738, 88
  %v1741 = vpop.permute.xlu0 %1740
  %v1742 = vrot.slane %v1741, 7
  %v1743 = vsel %vm555, %v1742, %v1741
  %vm1745 = vcmask 1041088
  %vm1746 = vcmask 123905
  %vm1747 = vmor %vm1746, %vm1745
  %1748 = vst.msk [vmem:[#allocation3 + $0x5] sm:$0x3] %vm1747, %v1743
  %v1749 = vld [vmem:[#allocation2 + $0x5] sm:$0x3]
  %v1750 = vld [vmem:[%s1] sm:$0xf]
  %v1751 = vld [vmem:[%s1 + $0x4] sm:$0xf]
  %v1752 = vld [vmem:[%s1 + $0x8] sm:$0xf]
  %v1753 = vld [vmem:[%s1 + $0xc] sm:$0xf]
  %v1754 = vld [vmem:[%s1 + $0x10] sm:$0xf]
  %v1755 = vld [vmem:[%s1 + $0x14] sm:$0xf]
  %v1756 = vld [vmem:[%s1 + $0x18] sm:$0xf]
  %v1757 = vld [vmem:[%s1 + $0x1c] sm:$0xf]
  %v1758 = vld [vmem:[%s1 + $0x20] sm:$0xf]
  %v1759 = vld [vmem:[%s1 + $0x24] sm:$0xf]
  %v1760 = vld [vmem:[%s1 + $0x28] sm:$0xf]
  %v1761 = vld [vmem:[%s1 + $0x2c] sm:$0xf]
  %v1762 = vld [vmem:[%s1 + $0x30] sm:$0xf]
  %v1763 = vld [vmem:[%s1 + $0x34] sm:$0xf]
  %v1764 = vld [vmem:[%s1 + $0x38] sm:$0xf]
  %v1765 = vld [vmem:[%s1 + $0x3c] sm:$0xf]
  %v1766 = vld [vmem:[%s1 + $0x40] sm:$0xf]
  %v1767 = vld [vmem:[%s1 + $0x44] sm:$0x3]
  %v1768 = vld [vmem:[%s2] sm:$0x1]
  %v1770 = vperm.slane %v1768, 0
  %1773 = vst [vmem:[#allocation1] ss:$9 sm:$0xff] %v1749
  %v1774 = vld [vmem:[#allocation1] sm:$0xff]
  %v1776 = vld [vmem:[#allocation1 + $0x9] sm:$0xff]
  %1778 = vrot.lane.b32.xlu0 %v1774, 96
  %v1779 = vpop.permute.xlu0 %1778
  %1780 = vrot.lane.b32.xlu0 %v1776, 96
  %v1781 = vpop.permute.xlu0 %1780
  %v1782 = vsel %vm515, %v1779, %v1781
  %v1802 = vunpack.c.l.b16 %v1750
  %v1803 = vunpack.c.l.b16 %v1751
  %v1804 = vunpack.c.l.b16 %v1752
  %v1805 = vunpack.c.l.b16 %v1753
  %v1806 = vunpack.c.l.b16 %v1754
  %v1807 = vunpack.c.l.b16 %v1755
  %v1808 = vunpack.c.l.b16 %v1756
  %v1809 = vunpack.c.l.b16 %v1757
  %v1810 = vunpack.c.l.b16 %v1758
  %v1811 = vunpack.c.l.b16 %v1759
  %v1812 = vunpack.c.l.b16 %v1760
  %v1813 = vunpack.c.l.b16 %v1761
  %v1814 = vunpack.c.l.b16 %v1762
  %v1815 = vunpack.c.l.b16 %v1763
  %v1816 = vunpack.c.l.b16 %v1764
  %v1817 = vunpack.c.l.b16 %v1765
  %v1818 = vunpack.c.l.b16 %v1766
  %v1819 = vunpack.c.l.b16 %v1767
  %v1820 = vpack.c.b16 %v1803, %v1802
  %v1821 = vpack.c.b16 %v1805, %v1804
  %v1822 = vpack.c.b16 %v1807, %v1806
  %v1823 = vpack.c.b16 %v1809, %v1808
  %v1824 = vpack.c.b16 %v1811, %v1810
  %v1825 = vpack.c.b16 %v1813, %v1812
  %v1826 = vpack.c.b16 %v1815, %v1814
  %v1827 = vpack.c.b16 %v1817, %v1816
  %v1828 = vpack.c.b16 %v1819, %v1818
  %v1838 = vsel %vm198, %v1781, 0
  %v1841 = vsel %vm201, %v1828, 0
  %1843 = vmatpush.bf16.msra.mxu0 %v1827
  %1844 = vmatpush.bf16.msra.mxu0 %v1826
  %1845 = vmatpush.bf16.msra.mxu0 %v1825
  %1846 = vmatpush.bf16.msra.mxu0 %v1824
  %1847 = vmatpush.bf16.msra.mxu0 %v1823
  %1848 = vmatpush.bf16.msra.mxu0 %v1822
  %1849 = vmatpush.bf16.msra.mxu0 %v1821
  %1850 = vmatpush.bf16.msra.mxu0 %v1820
  %1851 = vmatmul.bf16.gmra.mxu0 %v1782
  %v1852 = vpop.f32.mrf.mxu0
  %v1853 = vadd.f32 %v1770, %v1852
  %v1854 = vpop.f32.mrf.mxu0
  %1855 = vdwg.mxu0
  %1856 = vmatpush.bf16.msra.mxu0 0
  %1857 = vmatpush.bf16.msra.mxu0 0
  %1858 = vmatpush.bf16.msra.mxu0 0
  %1859 = vmatpush.bf16.msra.mxu0 0
  %1860 = vmatpush.bf16.msra.mxu0 0
  %1861 = vmatpush.bf16.msra.mxu0 0
  %1862 = vmatpush.bf16.msra.mxu0 0
  %1863 = vmatpush.bf16.msra.mxu0 %v1841
  %1864 = vmatmul.bf16.gmra.mxu0 %v1838
  %v1865 = vpop.f32.mrf.mxu0
  %v1866 = vadd.f32 %v1853, %v1865
  %v1867 = vpop.f32.mrf.mxu0
  %1868 = vdwg.mxu0
  %v1869 = vmax.f32 %v1866, 0.0
  %v1870 = vpack.c.bf16 %v1869, %v1869
  %v1872 = vrot.slane %v1870, 3
  %v1875 = vsel %vm73, %v1870, %v1872
  %1877 = vrot.lane.b32.xlu0 %v1875, 16
  %v1878 = vpop.permute.xlu0 %1877
  %vm1880 = vcmask 581760
  %1881 = vst.msk [vmem:[#allocation3 + $0x6] sm:$0x1] %vm1880, %v1878
  %v1882 = vld [vmem:[#allocation2 + $0x5] sm:$0x3]
  %v1883 = vld [vmem:[%s1] sm:$0xf]
  %v1884 = vld [vmem:[%s1 + $0x4] sm:$0xf]
  %v1885 = vld [vmem:[%s1 + $0x8] sm:$0xf]
  %v1886 = vld [vmem:[%s1 + $0xc] sm:$0xf]
  %v1887 = vld [vmem:[%s1 + $0x10] sm:$0xf]
  %v1888 = vld [vmem:[%s1 + $0x14] sm:$0xf]
  %v1889 = vld [vmem:[%s1 + $0x18] sm:$0xf]
  %v1890 = vld [vmem:[%s1 + $0x1c] sm:$0xf]
  %v1891 = vld [vmem:[%s1 + $0x20] sm:$0xf]
  %v1892 = vld [vmem:[%s1 + $0x24] sm:$0xf]
  %v1893 = vld [vmem:[%s1 + $0x28] sm:$0xf]
  %v1894 = vld [vmem:[%s1 + $0x2c] sm:$0xf]
  %v1895 = vld [vmem:[%s1 + $0x30] sm:$0xf]
  %v1896 = vld [vmem:[%s1 + $0x34] sm:$0xf]
  %v1897 = vld [vmem:[%s1 + $0x38] sm:$0xf]
  %v1898 = vld [vmem:[%s1 + $0x3c] sm:$0xf]
  %v1899 = vld [vmem:[%s1 + $0x40] sm:$0xf]
  %v1900 = vld [vmem:[%s1 + $0x44] sm:$0x3]
  %v1901 = vld [vmem:[%s2] sm:$0x1]
  %v1903 = vperm.slane %v1901, 0
  %1906 = vst [vmem:[#allocation1] ss:$9 sm:$0xff] %v1882
  %v1907 = vld [vmem:[#allocation1] sm:$0xff]
  %v1909 = vld [vmem:[#allocation1 + $0x9] sm:$0xff]
  %1911 = vrot.lane.b32.xlu0 %v1907, 40
  %v1912 = vpop.permute.xlu0 %1911
  %1913 = vrot.lane.b32.xlu0 %v1909, 40
  %v1914 = vpop.permute.xlu0 %1913
  %vm1915 = vcmask 326656
  %v1916 = vsel %vm1915, %v1912, %v1914
  %v1936 = vunpack.c.l.b16 %v1883
  %v1937 = vunpack.c.l.b16 %v1884
  %v1938 = vunpack.c.l.b16 %v1885
  %v1939 = vunpack.c.l.b16 %v1886
  %v1940 = vunpack.c.l.b16 %v1887
  %v1941 = vunpack.c.l.b16 %v1888
  %v1942 = vunpack.c.l.b16 %v1889
  %v1943 = vunpack.c.l.b16 %v1890
  %v1944 = vunpack.c.l.b16 %v1891
  %v1945 = vunpack.c.l.b16 %v1892
  %v1946 = vunpack.c.l.b16 %v1893
  %v1947 = vunpack.c.l.b16 %v1894
  %v1948 = vunpack.c.l.b16 %v1895
  %v1949 = vunpack.c.l.b16 %v1896
  %v1950 = vunpack.c.l.b16 %v1897
  %v1951 = vunpack.c.l.b16 %v1898
  %v1952 = vunpack.c.l.b16 %v1899
  %v1953 = vunpack.c.l.b16 %v1900
  %v1954 = vpack.c.b16 %v1937, %v1936
  %v1955 = vpack.c.b16 %v1939, %v1938
  %v1956 = vpack.c.b16 %v1941, %v1940
  %v1957 = vpack.c.b16 %v1943, %v1942
  %v1958 = vpack.c.b16 %v1945, %v1944
  %v1959 = vpack.c.b16 %v1947, %v1946
  %v1960 = vpack.c.b16 %v1949, %v1948
  %v1961 = vpack.c.b16 %v1951, %v1950
  %v1962 = vpack.c.b16 %v1953, %v1952
  %v1972 = vsel %vm198, %v1914, 0
  %v1975 = vsel %vm201, %v1962, 0
  %1977 = vmatpush.bf16.msra.mxu0 %v1961
  %1978 = vmatpush.bf16.msra.mxu0 %v1960
  %1979 = vmatpush.bf16.msra.mxu0 %v1959
  %1980 = vmatpush.bf16.msra.mxu0 %v1958
  %1981 = vmatpush.bf16.msra.mxu0 %v1957
  %1982 = vmatpush.bf16.msra.mxu0 %v1956
  %1983 = vmatpush.bf16.msra.mxu0 %v1955
  %1984 = vmatpush.bf16.msra.mxu0 %v1954
  %1985 = vmatmul.bf16.gmra.mxu0 %v1916
  %v1986 = vpop.f32.mrf.mxu0
  %v1987 = vadd.f32 %v1903, %v1986
  %v1988 = vpop.f32.mrf.mxu0
  %1989 = vdwg.mxu0
  %1990 = vmatpush.bf16.msra.mxu0 0
  %1991 = vmatpush.bf16.msra.mxu0 0
  %1992 = vmatpush.bf16.msra.mxu0 0
  %1993 = vmatpush.bf16.msra.mxu0 0
  %1994 = vmatpush.bf16.msra.mxu0 0
  %1995 = vmatpush.bf16.msra.mxu0 0
  %1996 = vmatpush.bf16.msra.mxu0 0
  %1997 = vmatpush.bf16.msra.mxu0 %v1975
  %1998 = vmatmul.bf16.gmra.mxu0 %v1972
  %v1999 = vpop.f32.mrf.mxu0
  %v2000 = vadd.f32 %v1987, %v1999
  %v2001 = vpop.f32.mrf.mxu0
  %2002 = vdwg.mxu0
  %v2003 = vmax.f32 %v2000, 0.0
  %v2004 = vpack.c.bf16 %v2003, %v2003
  %v2006 = vrot.slane %v2004, 3
  %v2009 = vsel %vm73, %v2004, %v2006
  %2011 = vrot.lane.b32.xlu0 %v2009, 72
  %v2012 = vpop.permute.xlu0 %2011
  %2014 = vst.msk [vmem:[#allocation3 + $0x6] sm:$0x1] %vm35, %v2012
  %2015 = vst.msk [vmem:[#allocation4] sm:$0x1] %vm114, 0
  %vm2016 = vcmask 844801
  %vm2017 = vmor %vm2016, %vm1197
  %2018 = vst.msk [vmem:[#allocation4 + $0x3] sm:$0x3] %vm2017, 0
  %v2019 = vld [vmem:[#allocation3] sm:$0x7]
  %v2020 = vld [vmem:[%s3] sm:$0xf]
  %v2021 = vld [vmem:[%s3 + $0x4] sm:$0xf]
  %v2022 = vld [vmem:[%s3 + $0x8] sm:$0xf]
  %v2023 = vld [vmem:[%s3 + $0xc] sm:$0xf]
  %v2024 = vld [vmem:[%s3 + $0x10] sm:$0xf]
  %v2025 = vld [vmem:[%s3 + $0x14] sm:$0xf]
  %v2026 = vld [vmem:[%s3 + $0x18] sm:$0xf]
  %v2027 = vld [vmem:[%s3 + $0x1c] sm:$0xf]
  %v2028 = vld [vmem:[%s3 + $0x20] sm:$0xf]
  %v2029 = vld [vmem:[%s3 + $0x24] sm:$0xf]
  %v2030 = vld [vmem:[%s3 + $0x28] sm:$0xf]
  %v2031 = vld [vmem:[%s3 + $0x2c] sm:$0xf]
  %v2032 = vld [vmem:[%s3 + $0x30] sm:$0xf]
  %v2033 = vld [vmem:[%s3 + $0x34] sm:$0xf]
  %v2034 = vld [vmem:[%s3 + $0x38] sm:$0xf]
  %v2035 = vld [vmem:[%s3 + $0x3c] sm:$0xf]
  %v2036 = vld [vmem:[%s3 + $0x40] sm:$0xf]
  %v2037 = vld [vmem:[%s3 + $0x44] sm:$0xf]
  %v2038 = vld [vmem:[%s3 + $0x48] sm:$0xf]
  %v2039 = vld [vmem:[%s3 + $0x4c] sm:$0xf]
  %v2040 = vld [vmem:[%s3 + $0x50] sm:$0xf]
  %v2041 = vld [vmem:[%s3 + $0x54] sm:$0xf]
  %v2042 = vld [vmem:[%s3 + $0x58] sm:$0xf]
  %v2043 = vld [vmem:[%s3 + $0x5c] sm:$0xf]
  %v2044 = vld [vmem:[%s3 + $0x60] sm:$0xf]
  %v2045 = vld [vmem:[%s3 + $0x64] sm:$0xf]
  %v2046 = vld [vmem:[%s3 + $0x68] sm:$0xf]
  %v2047 = vld [vmem:[%s3 + $0x6c] sm:$0xf]
  %v2048 = vld [vmem:[%s3 + $0x70] sm:$0xf]
  %v2049 = vld [vmem:[%s3 + $0x74] sm:$0xf]
  %v2050 = vld [vmem:[%s3 + $0x78] sm:$0xf]
  %v2051 = vld [vmem:[%s3 + $0x7c] sm:$0xf]
  %v2052 = vld [vmem:[%s3 + $0x80] sm:$0xf]
  %v2053 = vld [vmem:[%s3 + $0x84] sm:$0xf]
  %v2054 = vld [vmem:[%s3 + $0x88] sm:$0xf]
  %v2055 = vld [vmem:[%s4] sm:$0x1]
  %v2057 = vperm.slane %v2055, 0
  %2060 = vst [vmem:[#allocation1] ss:$9 sm:$0xff] %v2019
  %v2061 = vld [vmem:[#allocation1] sm:$0xff]
  %v2062 = vld [vmem:[#allocation1 + $0x9] sm:$0xff]
  %v2063 = vld [vmem:[#allocation1 + $0x12] sm:$0xff]
  %v2101 = vunpack.c.l.b16 %v2020
  %v2102 = vunpack.c.l.b16 %v2021
  %v2103 = vunpack.c.l.b16 %v2022
  %v2104 = vunpack.c.l.b16 %v2023
  %v2105 = vunpack.c.l.b16 %v2024
  %v2106 = vunpack.c.l.b16 %v2025
  %v2107 = vunpack.c.l.b16 %v2026
  %v2108 = vunpack.c.l.b16 %v2027
  %v2109 = vunpack.c.l.b16 %v2028
  %v2110 = vunpack.c.l.b16 %v2029
  %v2111 = vunpack.c.l.b16 %v2030
  %v2112 = vunpack.c.l.b16 %v2031
  %v2113 = vunpack.c.l.b16 %v2032
  %v2114 = vunpack.c.l.b16 %v2033
  %v2115 = vunpack.c.l.b16 %v2034
  %v2116 = vunpack.c.l.b16 %v2035
  %v2117 = vunpack.c.l.b16 %v2036
  %v2118 = vunpack.c.l.b16 %v2037
  %v2119 = vunpack.c.l.b16 %v2038
  %v2120 = vunpack.c.l.b16 %v2039
  %v2121 = vunpack.c.l.b16 %v2040
  %v2122 = vunpack.c.l.b16 %v2041
  %v2123 = vunpack.c.l.b16 %v2042
  %v2124 = vunpack.c.l.b16 %v2043
  %v2125 = vunpack.c.l.b16 %v2044
  %v2126 = vunpack.c.l.b16 %v2045
  %v2127 = vunpack.c.l.b16 %v2046
  %v2128 = vunpack.c.l.b16 %v2047
  %v2129 = vunpack.c.l.b16 %v2048
  %v2130 = vunpack.c.l.b16 %v2049
  %v2131 = vunpack.c.l.b16 %v2050
  %v2132 = vunpack.c.l.b16 %v2051
  %v2133 = vunpack.c.l.b16 %v2052
  %v2134 = vunpack.c.l.b16 %v2053
  %v2135 = vunpack.c.l.b16 %v2054
  %v2136 = vpack.c.b16 %v2102, %v2101
  %v2137 = vpack.c.b16 %v2104, %v2103
  %v2138 = vpack.c.b16 %v2106, %v2105
  %v2139 = vpack.c.b16 %v2108, %v2107
  %v2140 = vpack.c.b16 %v2110, %v2109
  %v2141 = vpack.c.b16 %v2112, %v2111
  %v2142 = vpack.c.b16 %v2114, %v2113
  %v2143 = vpack.c.b16 %v2116, %v2115
  %v2144 = vpack.c.b16 %v2118, %v2117
  %v2145 = vpack.c.b16 %v2120, %v2119
  %v2146 = vpack.c.b16 %v2122, %v2121
  %v2147 = vpack.c.b16 %v2124, %v2123
  %v2148 = vpack.c.b16 %v2126, %v2125
  %v2149 = vpack.c.b16 %v2128, %v2127
  %v2150 = vpack.c.b16 %v2130, %v2129
  %v2151 = vpack.c.b16 %v2132, %v2131
  %v2152 = vpack.c.b16 %v2134, %v2133
  %v2153 = vpack.c.b16 %v2135, %v2135
  %vm2171 = vcmask 195584
  %v2172 = vsel %vm2171, %v2063, 0
  %v2175 = vsel %vm93, %v2153, 0
  %2177 = vmatpush.bf16.msra.mxu0 %v2143
  %2178 = vmatpush.bf16.msra.mxu0 %v2142
  %2179 = vmatpush.bf16.msra.mxu0 %v2141
  %2180 = vmatpush.bf16.msra.mxu0 %v2140
  %2181 = vmatpush.bf16.msra.mxu0 %v2139
  %2182 = vmatpush.bf16.msra.mxu0 %v2138
  %2183 = vmatpush.bf16.msra.mxu0 %v2137
  %2184 = vmatpush.bf16.msra.mxu0 %v2136
  %2185 = vmatmul.bf16.gmra.mxu0 %v2061
  %v2186 = vpop.f32.mrf.mxu0
  %v2187 = vadd.f32 %v2057, %v2186
  %v2188 = vpop.f32.mrf.mxu0
  %2189 = vdwg.mxu0
  %2190 = vmatpush.bf16.msra.mxu0 %v2151
  %2191 = vmatpush.bf16.msra.mxu0 %v2150
  %2192 = vmatpush.bf16.msra.mxu0 %v2149
  %2193 = vmatpush.bf16.msra.mxu0 %v2148
  %2194 = vmatpush.bf16.msra.mxu0 %v2147
  %2195 = vmatpush.bf16.msra.mxu0 %v2146
  %2196 = vmatpush.bf16.msra.mxu0 %v2145
  %2197 = vmatpush.bf16.msra.mxu0 %v2144
  %2198 = vmatmul.bf16.gmra.mxu0 %v2062
  %v2199 = vpop.f32.mrf.mxu0
  %v2200 = vadd.f32 %v2187, %v2199
  %v2201 = vpop.f32.mrf.mxu0
  %2202 = vdwg.mxu0
  %2203 = vmatpush.bf16.msra.mxu0 0
  %2204 = vmatpush.bf16.msra.mxu0 0
  %2205 = vmatpush.bf16.msra.mxu0 0
  %2206 = vmatpush.bf16.msra.mxu0 0
  %2207 = vmatpush.bf16.msra.mxu0 0
  %2208 = vmatpush.bf16.msra.mxu0 0
  %2209 = vmatpush.bf16.msra.mxu0 %v2175
  %2210 = vmatpush.bf16.msra.mxu0 %v2152
  %2211 = vmatmul.bf16.gmra.mxu0 %v2172
  %v2212 = vpop.f32.mrf.mxu0
  %v2213 = vadd.f32 %v2200, %v2212
  %v2214 = vpop.f32.mrf.mxu0
  %2215 = vdwg.mxu0
  %v2216 = vmax.f32 %v2213, 0.0
  %v2217 = vpack.c.bf16 %v2216, %v2216
  %v2219 = vrot.slane %v2217, 3
  %v2222 = vsel %vm73, %v2217, %v2219
  %2224 = vrot.lane.b32.xlu0 %v2222, 112
  %v2225 = vpop.permute.xlu0 %2224
  %v2226 = vrot.slane %v2225, 7
  %v2227 = vsel %vm242, %v2226, %v2225
  %2229 = vst.msk [vmem:[#allocation4] sm:$0x3] %vm247, %v2227
  %v2230 = vld [vmem:[#allocation3] sm:$0xf]
  %v2231 = vld [vmem:[%s3] sm:$0xf]
  %v2232 = vld [vmem:[%s3 + $0x4] sm:$0xf]
  %v2233 = vld [vmem:[%s3 + $0x8] sm:$0xf]
  %v2234 = vld [vmem:[%s3 + $0xc] sm:$0xf]
  %v2235 = vld [vmem:[%s3 + $0x10] sm:$0xf]
  %v2236 = vld [vmem:[%s3 + $0x14] sm:$0xf]
  %v2237 = vld [vmem:[%s3 + $0x18] sm:$0xf]
  %v2238 = vld [vmem:[%s3 + $0x1c] sm:$0xf]
  %v2239 = vld [vmem:[%s3 + $0x20] sm:$0xf]
  %v2240 = vld [vmem:[%s3 + $0x24] sm:$0xf]
  %v2241 = vld [vmem:[%s3 + $0x28] sm:$0xf]
  %v2242 = vld [vmem:[%s3 + $0x2c] sm:$0xf]
  %v2243 = vld [vmem:[%s3 + $0x30] sm:$0xf]
  %v2244 = vld [vmem:[%s3 + $0x34] sm:$0xf]
  %v2245 = vld [vmem:[%s3 + $0x38] sm:$0xf]
  %v2246 = vld [vmem:[%s3 + $0x3c] sm:$0xf]
  %v2247 = vld [vmem:[%s3 + $0x40] sm:$0xf]
  %v2248 = vld [vmem:[%s3 + $0x44] sm:$0xf]
  %v2249 = vld [vmem:[%s3 + $0x48] sm:$0xf]
  %v2250 = vld [vmem:[%s3 + $0x4c] sm:$0xf]
  %v2251 = vld [vmem:[%s3 + $0x50] sm:$0xf]
  %v2252 = vld [vmem:[%s3 + $0x54] sm:$0xf]
  %v2253 = vld [vmem:[%s3 + $0x58] sm:$0xf]
  %v2254 = vld [vmem:[%s3 + $0x5c] sm:$0xf]
  %v2255 = vld [vmem:[%s3 + $0x60] sm:$0xf]
  %v2256 = vld [vmem:[%s3 + $0x64] sm:$0xf]
  %v2257 = vld [vmem:[%s3 + $0x68] sm:$0xf]
  %v2258 = vld [vmem:[%s3 + $0x6c] sm:$0xf]
  %v2259 = vld [vmem:[%s3 + $0x70] sm:$0xf]
  %v2260 = vld [vmem:[%s3 + $0x74] sm:$0xf]
  %v2261 = vld [vmem:[%s3 + $0x78] sm:$0xf]
  %v2262 = vld [vmem:[%s3 + $0x7c] sm:$0xf]
  %v2263 = vld [vmem:[%s3 + $0x80] sm:$0xf]
  %v2264 = vld [vmem:[%s3 + $0x84] sm:$0xf]
  %v2265 = vld [vmem:[%s3 + $0x88] sm:$0xf]
  %v2266 = vld [vmem:[%s4] sm:$0x1]
  %v2268 = vperm.slane %v2266, 0
  %2271 = vst [vmem:[#allocation1] ss:$9 sm:$0xff] %v2230
  %v2272 = vld [vmem:[#allocation1] sm:$0xff]
  %v2274 = vld [vmem:[#allocation1 + $0x9] sm:$0xff]
  %v2276 = vld [vmem:[#allocation1 + $0x12] sm:$0xff]
  %v2278 = vld [vmem:[#allocation1 + $0x1b] sm:$0xff]
  %2280 = vrot.lane.b32.xlu0 %v2272, 16
  %v2281 = vpop.permute.xlu0 %2280
  %2282 = vrot.lane.b32.xlu0 %v2274, 16
  %v2283 = vpop.permute.xlu0 %2282
  %2284 = vrot.lane.b32.xlu0 %v2276, 16
  %v2285 = vpop.permute.xlu0 %2284
  %2286 = vrot.lane.b32.xlu0 %v2278, 16
  %v2287 = vpop.permute.xlu0 %2286
  %v2288 = vsel %vm416, %v2281, %v2283
  %v2289 = vsel %vm416, %v2283, %v2285
  %v2290 = vsel %vm416, %v2285, %v2287
  %v2328 = vunpack.c.l.b16 %v2231
  %v2329 = vunpack.c.l.b16 %v2232
  %v2330 = vunpack.c.l.b16 %v2233
  %v2331 = vunpack.c.l.b16 %v2234
  %v2332 = vunpack.c.l.b16 %v2235
  %v2333 = vunpack.c.l.b16 %v2236
  %v2334 = vunpack.c.l.b16 %v2237
  %v2335 = vunpack.c.l.b16 %v2238
  %v2336 = vunpack.c.l.b16 %v2239
  %v2337 = vunpack.c.l.b16 %v2240
  %v2338 = vunpack.c.l.b16 %v2241
  %v2339 = vunpack.c.l.b16 %v2242
  %v2340 = vunpack.c.l.b16 %v2243
  %v2341 = vunpack.c.l.b16 %v2244
  %v2342 = vunpack.c.l.b16 %v2245
  %v2343 = vunpack.c.l.b16 %v2246
  %v2344 = vunpack.c.l.b16 %v2247
  %v2345 = vunpack.c.l.b16 %v2248
  %v2346 = vunpack.c.l.b16 %v2249
  %v2347 = vunpack.c.l.b16 %v2250
  %v2348 = vunpack.c.l.b16 %v2251
  %v2349 = vunpack.c.l.b16 %v2252
  %v2350 = vunpack.c.l.b16 %v2253
  %v2351 = vunpack.c.l.b16 %v2254
  %v2352 = vunpack.c.l.b16 %v2255
  %v2353 = vunpack.c.l.b16 %v2256
  %v2354 = vunpack.c.l.b16 %v2257
  %v2355 = vunpack.c.l.b16 %v2258
  %v2356 = vunpack.c.l.b16 %v2259
  %v2357 = vunpack.c.l.b16 %v2260
  %v2358 = vunpack.c.l.b16 %v2261
  %v2359 = vunpack.c.l.b16 %v2262
  %v2360 = vunpack.c.l.b16 %v2263
  %v2361 = vunpack.c.l.b16 %v2264
  %v2362 = vunpack.c.l.b16 %v2265
  %v2363 = vpack.c.b16 %v2329, %v2328
  %v2364 = vpack.c.b16 %v2331, %v2330
  %v2365 = vpack.c.b16 %v2333, %v2332
  %v2366 = vpack.c.b16 %v2335, %v2334
  %v2367 = vpack.c.b16 %v2337, %v2336
  %v2368 = vpack.c.b16 %v2339, %v2338
  %v2369 = vpack.c.b16 %v2341, %v2340
  %v2370 = vpack.c.b16 %v2343, %v2342
  %v2371 = vpack.c.b16 %v2345, %v2344
  %v2372 = vpack.c.b16 %v2347, %v2346
  %v2373 = vpack.c.b16 %v2349, %v2348
  %v2374 = vpack.c.b16 %v2351, %v2350
  %v2375 = vpack.c.b16 %v2353, %v2352
  %v2376 = vpack.c.b16 %v2355, %v2354
  %v2377 = vpack.c.b16 %v2357, %v2356
  %v2378 = vpack.c.b16 %v2359, %v2358
  %v2379 = vpack.c.b16 %v2361, %v2360
  %v2380 = vpack.c.b16 %v2362, %v2362
  %v2399 = vsel %vm2171, %v2290, 0
  %v2402 = vsel %vm93, %v2380, 0
  %2404 = vmatpush.bf16.msra.mxu0 %v2370
  %2405 = vmatpush.bf16.msra.mxu0 %v2369
  %2406 = vmatpush.bf16.msra.mxu0 %v2368
  %2407 = vmatpush.bf16.msra.mxu0 %v2367
  %2408 = vmatpush.bf16.msra.mxu0 %v2366
  %2409 = vmatpush.bf16.msra.mxu0 %v2365
  %2410 = vmatpush.bf16.msra.mxu0 %v2364
  %2411 = vmatpush.bf16.msra.mxu0 %v2363
  %2412 = vmatmul.bf16.gmra.mxu0 %v2288
  %v2413 = vpop.f32.mrf.mxu0
  %v2414 = vadd.f32 %v2268, %v2413
  %v2415 = vpop.f32.mrf.mxu0
  %2416 = vdwg.mxu0
  %2417 = vmatpush.bf16.msra.mxu0 %v2378
  %2418 = vmatpush.bf16.msra.mxu0 %v2377
  %2419 = vmatpush.bf16.msra.mxu0 %v2376
  %2420 = vmatpush.bf16.msra.mxu0 %v2375
  %2421 = vmatpush.bf16.msra.mxu0 %v2374
  %2422 = vmatpush.bf16.msra.mxu0 %v2373
  %2423 = vmatpush.bf16.msra.mxu0 %v2372
  %2424 = vmatpush.bf16.msra.mxu0 %v2371
  %2425 = vmatmul.bf16.gmra.mxu0 %v2289
  %v2426 = vpop.f32.mrf.mxu0
  %v2427 = vadd.f32 %v2414, %v2426
  %v2428 = vpop.f32.mrf.mxu0
  %2429 = vdwg.mxu0
  %2430 = vmatpush.bf16.msra.mxu0 0
  %2431 = vmatpush.bf16.msra.mxu0 0
  %2432 = vmatpush.bf16.msra.mxu0 0
  %2433 = vmatpush.bf16.msra.mxu0 0
  %2434 = vmatpush.bf16.msra.mxu0 0
  %2435 = vmatpush.bf16.msra.mxu0 0
  %2436 = vmatpush.bf16.msra.mxu0 %v2402
  %2437 = vmatpush.bf16.msra.mxu0 %v2379
  %2438 = vmatmul.bf16.gmra.mxu0 %v2399
  %v2439 = vpop.f32.mrf.mxu0
  %v2440 = vadd.f32 %v2427, %v2439
  %v2441 = vpop.f32.mrf.mxu0
  %2442 = vdwg.mxu0
  %v2443 = vmax.f32 %v2440, 0.0
  %v2444 = vpack.c.bf16 %v2443, %v2443
  %v2446 = vrot.slane %v2444, 3
  %v2449 = vsel %vm73, %v2444, %v2446
  %2451 = vrot.lane.b32.xlu0 %v2449, 40
  %v2452 = vpop.permute.xlu0 %2451
  %2454 = vst.msk [vmem:[#allocation4 + $0x1] sm:$0x1] %vm381, %v2452
  %v2455 = vld [vmem:[#allocation3 + $0x1] sm:$0x7]
  %v2456 = vld [vmem:[%s3] sm:$0xf]
  %v2457 = vld [vmem:[%s3 + $0x4] sm:$0xf]
  %v2458 = vld [vmem:[%s3 + $0x8] sm:$0xf]
  %v2459 = vld [vmem:[%s3 + $0xc] sm:$0xf]
  %v2460 = vld [vmem:[%s3 + $0x10] sm:$0xf]
  %v2461 = vld [vmem:[%s3 + $0x14] sm:$0xf]
  %v2462 = vld [vmem:[%s3 + $0x18] sm:$0xf]
  %v2463 = vld [vmem:[%s3 + $0x1c] sm:$0xf]
  %v2464 = vld [vmem:[%s3 + $0x20] sm:$0xf]
  %v2465 = vld [vmem:[%s3 + $0x24] sm:$0xf]
  %v2466 = vld [vmem:[%s3 + $0x28] sm:$0xf]
  %v2467 = vld [vmem:[%s3 + $0x2c] sm:$0xf]
  %v2468 = vld [vmem:[%s3 + $0x30] sm:$0xf]
  %v2469 = vld [vmem:[%s3 + $0x34] sm:$0xf]
  %v2470 = vld [vmem:[%s3 + $0x38] sm:$0xf]
  %v2471 = vld [vmem:[%s3 + $0x3c] sm:$0xf]
  %v2472 = vld [vmem:[%s3 + $0x40] sm:$0xf]
  %v2473 = vld [vmem:[%s3 + $0x44] sm:$0xf]
  %v2474 = vld [vmem:[%s3 + $0x48] sm:$0xf]
  %v2475 = vld [vmem:[%s3 + $0x4c] sm:$0xf]
  %v2476 = vld [vmem:[%s3 + $0x50] sm:$0xf]
  %v2477 = vld [vmem:[%s3 + $0x54] sm:$0xf]
  %v2478 = vld [vmem:[%s3 + $0x58] sm:$0xf]
  %v2479 = vld [vmem:[%s3 + $0x5c] sm:$0xf]
  %v2480 = vld [vmem:[%s3 + $0x60] sm:$0xf]
  %v2481 = vld [vmem:[%s3 + $0x64] sm:$0xf]
  %v2482 = vld [vmem:[%s3 + $0x68] sm:$0xf]
  %v2483 = vld [vmem:[%s3 + $0x6c] sm:$0xf]
  %v2484 = vld [vmem:[%s3 + $0x70] sm:$0xf]
  %v2485 = vld [vmem:[%s3 + $0x74] sm:$0xf]
  %v2486 = vld [vmem:[%s3 + $0x78] sm:$0xf]
  %v2487 = vld [vmem:[%s3 + $0x7c] sm:$0xf]
  %v2488 = vld [vmem:[%s3 + $0x80] sm:$0xf]
  %v2489 = vld [vmem:[%s3 + $0x84] sm:$0xf]
  %v2490 = vld [vmem:[%s3 + $0x88] sm:$0xf]
  %v2491 = vld [vmem:[%s4] sm:$0x1]
  %v2493 = vperm.slane %v2491, 0
  %2496 = vst [vmem:[#allocation1] ss:$9 sm:$0xff] %v2455
  %v2497 = vld [vmem:[#allocation1] sm:$0xff]
  %v2499 = vld [vmem:[#allocation1 + $0x9] sm:$0xff]
  %v2501 = vld [vmem:[#allocation1 + $0x12] sm:$0xff]
  %2503 = vrot.lane.b32.xlu0 %v2497, 32
  %v2504 = vpop.permute.xlu0 %2503
  %2505 = vrot.lane.b32.xlu0 %v2499, 32
  %v2506 = vpop.permute.xlu0 %2505
  %2507 = vrot.lane.b32.xlu0 %v2501, 32
  %v2508 = vpop.permute.xlu0 %2507
  %v2509 = vsel %vm689, %v2504, %v2506
  %v2510 = vsel %vm689, %v2506, %v2508
  %v2548 = vunpack.c.l.b16 %v2456
  %v2549 = vunpack.c.l.b16 %v2457
  %v2550 = vunpack.c.l.b16 %v2458
  %v2551 = vunpack.c.l.b16 %v2459
  %v2552 = vunpack.c.l.b16 %v2460
  %v2553 = vunpack.c.l.b16 %v2461
  %v2554 = vunpack.c.l.b16 %v2462
  %v2555 = vunpack.c.l.b16 %v2463
  %v2556 = vunpack.c.l.b16 %v2464
  %v2557 = vunpack.c.l.b16 %v2465
  %v2558 = vunpack.c.l.b16 %v2466
  %v2559 = vunpack.c.l.b16 %v2467
  %v2560 = vunpack.c.l.b16 %v2468
  %v2561 = vunpack.c.l.b16 %v2469
  %v2562 = vunpack.c.l.b16 %v2470
  %v2563 = vunpack.c.l.b16 %v2471
  %v2564 = vunpack.c.l.b16 %v2472
  %v2565 = vunpack.c.l.b16 %v2473
  %v2566 = vunpack.c.l.b16 %v2474
  %v2567 = vunpack.c.l.b16 %v2475
  %v2568 = vunpack.c.l.b16 %v2476
  %v2569 = vunpack.c.l.b16 %v2477
  %v2570 = vunpack.c.l.b16 %v2478
  %v2571 = vunpack.c.l.b16 %v2479
  %v2572 = vunpack.c.l.b16 %v2480
  %v2573 = vunpack.c.l.b16 %v2481
  %v2574 = vunpack.c.l.b16 %v2482
  %v2575 = vunpack.c.l.b16 %v2483
  %v2576 = vunpack.c.l.b16 %v2484
  %v2577 = vunpack.c.l.b16 %v2485
  %v2578 = vunpack.c.l.b16 %v2486
  %v2579 = vunpack.c.l.b16 %v2487
  %v2580 = vunpack.c.l.b16 %v2488
  %v2581 = vunpack.c.l.b16 %v2489
  %v2582 = vunpack.c.l.b16 %v2490
  %v2583 = vpack.c.b16 %v2549, %v2548
  %v2584 = vpack.c.b16 %v2551, %v2550
  %v2585 = vpack.c.b16 %v2553, %v2552
  %v2586 = vpack.c.b16 %v2555, %v2554
  %v2587 = vpack.c.b16 %v2557, %v2556
  %v2588 = vpack.c.b16 %v2559, %v2558
  %v2589 = vpack.c.b16 %v2561, %v2560
  %v2590 = vpack.c.b16 %v2563, %v2562
  %v2591 = vpack.c.b16 %v2565, %v2564
  %v2592 = vpack.c.b16 %v2567, %v2566
  %v2593 = vpack.c.b16 %v2569, %v2568
  %v2594 = vpack.c.b16 %v2571, %v2570
  %v2595 = vpack.c.b16 %v2573, %v2572
  %v2596 = vpack.c.b16 %v2575, %v2574
  %v2597 = vpack.c.b16 %v2577, %v2576
  %v2598 = vpack.c.b16 %v2579, %v2578
  %v2599 = vpack.c.b16 %v2581, %v2580
  %v2600 = vpack.c.b16 %v2582, %v2582
  %v2619 = vsel %vm2171, %v2508, 0
  %v2622 = vsel %vm93, %v2600, 0
  %2624 = vmatpush.bf16.msra.mxu0 %v2590
  %2625 = vmatpush.bf16.msra.mxu0 %v2589
  %2626 = vmatpush.bf16.msra.mxu0 %v2588
  %2627 = vmatpush.bf16.msra.mxu0 %v2587
  %2628 = vmatpush.bf16.msra.mxu0 %v2586
  %2629 = vmatpush.bf16.msra.mxu0 %v2585
  %2630 = vmatpush.bf16.msra.mxu0 %v2584
  %2631 = vmatpush.bf16.msra.mxu0 %v2583
  %2632 = vmatmul.bf16.gmra.mxu0 %v2509
  %v2633 = vpop.f32.mrf.mxu0
  %v2634 = vadd.f32 %v2493, %v2633
  %v2635 = vpop.f32.mrf.mxu0
  %2636 = vdwg.mxu0
  %2637 = vmatpush.bf16.msra.mxu0 %v2598
  %2638 = vmatpush.bf16.msra.mxu0 %v2597
  %2639 = vmatpush.bf16.msra.mxu0 %v2596
  %2640 = vmatpush.bf16.msra.mxu0 %v2595
  %2641 = vmatpush.bf16.msra.mxu0 %v2594
  %2642 = vmatpush.bf16.msra.mxu0 %v2593
  %2643 = vmatpush.bf16.msra.mxu0 %v2592
  %2644 = vmatpush.bf16.msra.mxu0 %v2591
  %2645 = vmatmul.bf16.gmra.mxu0 %v2510
  %v2646 = vpop.f32.mrf.mxu0
  %v2647 = vadd.f32 %v2634, %v2646
  %v2648 = vpop.f32.mrf.mxu0
  %2649 = vdwg.mxu0
  %2650 = vmatpush.bf16.msra.mxu0 0
  %2651 = vmatpush.bf16.msra.mxu0 0
  %2652 = vmatpush.bf16.msra.mxu0 0
  %2653 = vmatpush.bf16.msra.mxu0 0
  %2654 = vmatpush.bf16.msra.mxu0 0
  %2655 = vmatpush.bf16.msra.mxu0 0
  %2656 = vmatpush.bf16.msra.mxu0 %v2622
  %2657 = vmatpush.bf16.msra.mxu0 %v2599
  %2658 = vmatmul.bf16.gmra.mxu0 %v2619
  %v2659 = vpop.f32.mrf.mxu0
  %v2660 = vadd.f32 %v2647, %v2659
  %v2661 = vpop.f32.mrf.mxu0
  %2662 = vdwg.mxu0
  %v2663 = vmax.f32 %v2660, 0.0
  %v2664 = vpack.c.bf16 %v2663, %v2663
  %v2666 = vrot.slane %v2664, 3
  %v2669 = vsel %vm73, %v2664, %v2666
  %2671 = vrot.lane.b32.xlu0 %v2669, 96
  %v2672 = vpop.permute.xlu0 %2671
  %v2673 = vrot.slane %v2672, 7
  %v2674 = vsel %vm515, %v2673, %v2672
  %2676 = vst.msk [vmem:[#allocation4 + $0x1] sm:$0x3] %vm520, %v2674
  %v2677 = vld [vmem:[#allocation3 + $0x2] sm:$0x7]
  %v2678 = vld [vmem:[%s3] sm:$0xf]
  %v2679 = vld [vmem:[%s3 + $0x4] sm:$0xf]
  %v2680 = vld [vmem:[%s3 + $0x8] sm:$0xf]
  %v2681 = vld [vmem:[%s3 + $0xc] sm:$0xf]
  %v2682 = vld [vmem:[%s3 + $0x10] sm:$0xf]
  %v2683 = vld [vmem:[%s3 + $0x14] sm:$0xf]
  %v2684 = vld [vmem:[%s3 + $0x18] sm:$0xf]
  %v2685 = vld [vmem:[%s3 + $0x1c] sm:$0xf]
  %v2686 = vld [vmem:[%s3 + $0x20] sm:$0xf]
  %v2687 = vld [vmem:[%s3 + $0x24] sm:$0xf]
  %v2688 = vld [vmem:[%s3 + $0x28] sm:$0xf]
  %v2689 = vld [vmem:[%s3 + $0x2c] sm:$0xf]
  %v2690 = vld [vmem:[%s3 + $0x30] sm:$0xf]
  %v2691 = vld [vmem:[%s3 + $0x34] sm:$0xf]
  %v2692 = vld [vmem:[%s3 + $0x38] sm:$0xf]
  %v2693 = vld [vmem:[%s3 + $0x3c] sm:$0xf]
  %v2694 = vld [vmem:[%s3 + $0x40] sm:$0xf]
  %v2695 = vld [vmem:[%s3 + $0x44] sm:$0xf]
  %v2696 = vld [vmem:[%s3 + $0x48] sm:$0xf]
  %v2697 = vld [vmem:[%s3 + $0x4c] sm:$0xf]
  %v2698 = vld [vmem:[%s3 + $0x50] sm:$0xf]
  %v2699 = vld [vmem:[%s3 + $0x54] sm:$0xf]
  %v2700 = vld [vmem:[%s3 + $0x58] sm:$0xf]
  %v2701 = vld [vmem:[%s3 + $0x5c] sm:$0xf]
  %v2702 = vld [vmem:[%s3 + $0x60] sm:$0xf]
  %v2703 = vld [vmem:[%s3 + $0x64] sm:$0xf]
  %v2704 = vld [vmem:[%s3 + $0x68] sm:$0xf]
  %v2705 = vld [vmem:[%s3 + $0x6c] sm:$0xf]
  %v2706 = vld [vmem:[%s3 + $0x70] sm:$0xf]
  %v2707 = vld [vmem:[%s3 + $0x74] sm:$0xf]
  %v2708 = vld [vmem:[%s3 + $0x78] sm:$0xf]
  %v2709 = vld [vmem:[%s3 + $0x7c] sm:$0xf]
  %v2710 = vld [vmem:[%s3 + $0x80] sm:$0xf]
  %v2711 = vld [vmem:[%s3 + $0x84] sm:$0xf]
  %v2712 = vld [vmem:[%s3 + $0x88] sm:$0xf]
  %v2713 = vld [vmem:[%s4] sm:$0x1]
  %v2715 = vperm.slane %v2713, 0
  %2718 = vst [vmem:[#allocation1] ss:$9 sm:$0xff] %v2677
  %v2719 = vld [vmem:[#allocation1] sm:$0xff]
  %v2721 = vld [vmem:[#allocation1 + $0x9] sm:$0xff]
  %v2723 = vld [vmem:[#allocation1 + $0x12] sm:$0xff]
  %2725 = vrot.lane.b32.xlu0 %v2719, 48
  %v2726 = vpop.permute.xlu0 %2725
  %2727 = vrot.lane.b32.xlu0 %v2721, 48
  %v2728 = vpop.permute.xlu0 %2727
  %2729 = vrot.lane.b32.xlu0 %v2723, 48
  %v2730 = vpop.permute.xlu0 %2729
  %v2731 = vsel %vm962, %v2726, %v2728
  %v2732 = vsel %vm962, %v2728, %v2730
  %v2770 = vunpack.c.l.b16 %v2678
  %v2771 = vunpack.c.l.b16 %v2679
  %v2772 = vunpack.c.l.b16 %v2680
  %v2773 = vunpack.c.l.b16 %v2681
  %v2774 = vunpack.c.l.b16 %v2682
  %v2775 = vunpack.c.l.b16 %v2683
  %v2776 = vunpack.c.l.b16 %v2684
  %v2777 = vunpack.c.l.b16 %v2685
  %v2778 = vunpack.c.l.b16 %v2686
  %v2779 = vunpack.c.l.b16 %v2687
  %v2780 = vunpack.c.l.b16 %v2688
  %v2781 = vunpack.c.l.b16 %v2689
  %v2782 = vunpack.c.l.b16 %v2690
  %v2783 = vunpack.c.l.b16 %v2691
  %v2784 = vunpack.c.l.b16 %v2692
  %v2785 = vunpack.c.l.b16 %v2693
  %v2786 = vunpack.c.l.b16 %v2694
  %v2787 = vunpack.c.l.b16 %v2695
  %v2788 = vunpack.c.l.b16 %v2696
  %v2789 = vunpack.c.l.b16 %v2697
  %v2790 = vunpack.c.l.b16 %v2698
  %v2791 = vunpack.c.l.b16 %v2699
  %v2792 = vunpack.c.l.b16 %v2700
  %v2793 = vunpack.c.l.b16 %v2701
  %v2794 = vunpack.c.l.b16 %v2702
  %v2795 = vunpack.c.l.b16 %v2703
  %v2796 = vunpack.c.l.b16 %v2704
  %v2797 = vunpack.c.l.b16 %v2705
  %v2798 = vunpack.c.l.b16 %v2706
  %v2799 = vunpack.c.l.b16 %v2707
  %v2800 = vunpack.c.l.b16 %v2708
  %v2801 = vunpack.c.l.b16 %v2709
  %v2802 = vunpack.c.l.b16 %v2710
  %v2803 = vunpack.c.l.b16 %v2711
  %v2804 = vunpack.c.l.b16 %v2712
  %v2805 = vpack.c.b16 %v2771, %v2770
  %v2806 = vpack.c.b16 %v2773, %v2772
  %v2807 = vpack.c.b16 %v2775, %v2774
  %v2808 = vpack.c.b16 %v2777, %v2776
  %v2809 = vpack.c.b16 %v2779, %v2778
  %v2810 = vpack.c.b16 %v2781, %v2780
  %v2811 = vpack.c.b16 %v2783, %v2782
  %v2812 = vpack.c.b16 %v2785, %v2784
  %v2813 = vpack.c.b16 %v2787, %v2786
  %v2814 = vpack.c.b16 %v2789, %v2788
  %v2815 = vpack.c.b16 %v2791, %v2790
  %v2816 = vpack.c.b16 %v2793, %v2792
  %v2817 = vpack.c.b16 %v2795, %v2794
  %v2818 = vpack.c.b16 %v2797, %v2796
  %v2819 = vpack.c.b16 %v2799, %v2798
  %v2820 = vpack.c.b16 %v2801, %v2800
  %v2821 = vpack.c.b16 %v2803, %v2802
  %v2822 = vpack.c.b16 %v2804, %v2804
  %v2841 = vsel %vm2171, %v2730, 0
  %v2844 = vsel %vm93, %v2822, 0
  %2846 = vmatpush.bf16.msra.mxu0 %v2812
  %2847 = vmatpush.bf16.msra.mxu0 %v2811
  %2848 = vmatpush.bf16.msra.mxu0 %v2810
  %2849 = vmatpush.bf16.msra.mxu0 %v2809
  %2850 = vmatpush.bf16.msra.mxu0 %v2808
  %2851 = vmatpush.bf16.msra.mxu0 %v2807
  %2852 = vmatpush.bf16.msra.mxu0 %v2806
  %2853 = vmatpush.bf16.msra.mxu0 %v2805
  %2854 = vmatmul.bf16.gmra.mxu0 %v2731
  %v2855 = vpop.f32.mrf.mxu0
  %v2856 = vadd.f32 %v2715, %v2855
  %v2857 = vpop.f32.mrf.mxu0
  %2858 = vdwg.mxu0
  %2859 = vmatpush.bf16.msra.mxu0 %v2820
  %2860 = vmatpush.bf16.msra.mxu0 %v2819
  %2861 = vmatpush.bf16.msra.mxu0 %v2818
  %2862 = vmatpush.bf16.msra.mxu0 %v2817
  %2863 = vmatpush.bf16.msra.mxu0 %v2816
  %2864 = vmatpush.bf16.msra.mxu0 %v2815
  %2865 = vmatpush.bf16.msra.mxu0 %v2814
  %2866 = vmatpush.bf16.msra.mxu0 %v2813
  %2867 = vmatmul.bf16.gmra.mxu0 %v2732
  %v2868 = vpop.f32.mrf.mxu0
  %v2869 = vadd.f32 %v2856, %v2868
  %v2870 = vpop.f32.mrf.mxu0
  %2871 = vdwg.mxu0
  %2872 = vmatpush.bf16.msra.mxu0 0
  %2873 = vmatpush.bf16.msra.mxu0 0
  %2874 = vmatpush.bf16.msra.mxu0 0
  %2875 = vmatpush.bf16.msra.mxu0 0
  %2876 = vmatpush.bf16.msra.mxu0 0
  %2877 = vmatpush.bf16.msra.mxu0 0
  %2878 = vmatpush.bf16.msra.mxu0 %v2844
  %2879 = vmatpush.bf16.msra.mxu0 %v2821
  %2880 = vmatmul.bf16.gmra.mxu0 %v2841
  %v2881 = vpop.f32.mrf.mxu0
  %v2882 = vadd.f32 %v2869, %v2881
  %v2883 = vpop.f32.mrf.mxu0
  %2884 = vdwg.mxu0
  %v2885 = vmax.f32 %v2882, 0.0
  %v2886 = vpack.c.bf16 %v2885, %v2885
  %v2888 = vrot.slane %v2886, 3
  %v2891 = vsel %vm73, %v2886, %v2888
  %2893 = vrot.lane.b32.xlu0 %v2891, 24
  %v2894 = vpop.permute.xlu0 %2893
  %2896 = vst.msk [vmem:[#allocation4 + $0x2] sm:$0x1] %vm654, %v2894
  %v2897 = vld [vmem:[#allocation3 + $0x3] sm:$0x7]
  %v2898 = vld [vmem:[%s3] sm:$0xf]
  %v2899 = vld [vmem:[%s3 + $0x4] sm:$0xf]
  %v2900 = vld [vmem:[%s3 + $0x8] sm:$0xf]
  %v2901 = vld [vmem:[%s3 + $0xc] sm:$0xf]
  %v2902 = vld [vmem:[%s3 + $0x10] sm:$0xf]
  %v2903 = vld [vmem:[%s3 + $0x14] sm:$0xf]
  %v2904 = vld [vmem:[%s3 + $0x18] sm:$0xf]
  %v2905 = vld [vmem:[%s3 + $0x1c] sm:$0xf]
  %v2906 = vld [vmem:[%s3 + $0x20] sm:$0xf]
  %v2907 = vld [vmem:[%s3 + $0x24] sm:$0xf]
  %v2908 = vld [vmem:[%s3 + $0x28] sm:$0xf]
  %v2909 = vld [vmem:[%s3 + $0x2c] sm:$0xf]
  %v2910 = vld [vmem:[%s3 + $0x30] sm:$0xf]
  %v2911 = vld [vmem:[%s3 + $0x34] sm:$0xf]
  %v2912 = vld [vmem:[%s3 + $0x38] sm:$0xf]
  %v2913 = vld [vmem:[%s3 + $0x3c] sm:$0xf]
  %v2914 = vld [vmem:[%s3 + $0x40] sm:$0xf]
  %v2915 = vld [vmem:[%s3 + $0x44] sm:$0xf]
  %v2916 = vld [vmem:[%s3 + $0x48] sm:$0xf]
  %v2917 = vld [vmem:[%s3 + $0x4c] sm:$0xf]
  %v2918 = vld [vmem:[%s3 + $0x50] sm:$0xf]
  %v2919 = vld [vmem:[%s3 + $0x54] sm:$0xf]
  %v2920 = vld [vmem:[%s3 + $0x58] sm:$0xf]
  %v2921 = vld [vmem:[%s3 + $0x5c] sm:$0xf]
  %v2922 = vld [vmem:[%s3 + $0x60] sm:$0xf]
  %v2923 = vld [vmem:[%s3 + $0x64] sm:$0xf]
  %v2924 = vld [vmem:[%s3 + $0x68] sm:$0xf]
  %v2925 = vld [vmem:[%s3 + $0x6c] sm:$0xf]
  %v2926 = vld [vmem:[%s3 + $0x70] sm:$0xf]
  %v2927 = vld [vmem:[%s3 + $0x74] sm:$0xf]
  %v2928 = vld [vmem:[%s3 + $0x78] sm:$0xf]
  %v2929 = vld [vmem:[%s3 + $0x7c] sm:$0xf]
  %v2930 = vld [vmem:[%s3 + $0x80] sm:$0xf]
  %v2931 = vld [vmem:[%s3 + $0x84] sm:$0xf]
  %v2932 = vld [vmem:[%s3 + $0x88] sm:$0xf]
  %v2933 = vld [vmem:[%s4] sm:$0x1]
  %v2935 = vperm.slane %v2933, 0
  %2938 = vst [vmem:[#allocation1] ss:$9 sm:$0xff] %v2897
  %v2939 = vld [vmem:[#allocation1] sm:$0xff]
  %v2941 = vld [vmem:[#allocation1 + $0x9] sm:$0xff]
  %v2943 = vld [vmem:[#allocation1 + $0x12] sm:$0xff]
  %2945 = vrot.lane.b32.xlu0 %v2939, 64
  %v2946 = vpop.permute.xlu0 %2945
  %2947 = vrot.lane.b32.xlu0 %v2941, 64
  %v2948 = vpop.permute.xlu0 %2947
  %2949 = vrot.lane.b32.xlu0 %v2943, 64
  %v2950 = vpop.permute.xlu0 %2949
  %v2951 = vsel %vm1234, %v2946, %v2948
  %v2952 = vsel %vm1234, %v2948, %v2950
  %v2990 = vunpack.c.l.b16 %v2898
  %v2991 = vunpack.c.l.b16 %v2899
  %v2992 = vunpack.c.l.b16 %v2900
  %v2993 = vunpack.c.l.b16 %v2901
  %v2994 = vunpack.c.l.b16 %v2902
  %v2995 = vunpack.c.l.b16 %v2903
  %v2996 = vunpack.c.l.b16 %v2904
  %v2997 = vunpack.c.l.b16 %v2905
  %v2998 = vunpack.c.l.b16 %v2906
  %v2999 = vunpack.c.l.b16 %v2907
  %v3000 = vunpack.c.l.b16 %v2908
  %v3001 = vunpack.c.l.b16 %v2909
  %v3002 = vunpack.c.l.b16 %v2910
  %v3003 = vunpack.c.l.b16 %v2911
  %v3004 = vunpack.c.l.b16 %v2912
  %v3005 = vunpack.c.l.b16 %v2913
  %v3006 = vunpack.c.l.b16 %v2914
  %v3007 = vunpack.c.l.b16 %v2915
  %v3008 = vunpack.c.l.b16 %v2916
  %v3009 = vunpack.c.l.b16 %v2917
  %v3010 = vunpack.c.l.b16 %v2918
  %v3011 = vunpack.c.l.b16 %v2919
  %v3012 = vunpack.c.l.b16 %v2920
  %v3013 = vunpack.c.l.b16 %v2921
  %v3014 = vunpack.c.l.b16 %v2922
  %v3015 = vunpack.c.l.b16 %v2923
  %v3016 = vunpack.c.l.b16 %v2924
  %v3017 = vunpack.c.l.b16 %v2925
  %v3018 = vunpack.c.l.b16 %v2926
  %v3019 = vunpack.c.l.b16 %v2927
  %v3020 = vunpack.c.l.b16 %v2928
  %v3021 = vunpack.c.l.b16 %v2929
  %v3022 = vunpack.c.l.b16 %v2930
  %v3023 = vunpack.c.l.b16 %v2931
  %v3024 = vunpack.c.l.b16 %v2932
  %v3025 = vpack.c.b16 %v2991, %v2990
  %v3026 = vpack.c.b16 %v2993, %v2992
  %v3027 = vpack.c.b16 %v2995, %v2994
  %v3028 = vpack.c.b16 %v2997, %v2996
  %v3029 = vpack.c.b16 %v2999, %v2998
  %v3030 = vpack.c.b16 %v3001, %v3000
  %v3031 = vpack.c.b16 %v3003, %v3002
  %v3032 = vpack.c.b16 %v3005, %v3004
  %v3033 = vpack.c.b16 %v3007, %v3006
  %v3034 = vpack.c.b16 %v3009, %v3008
  %v3035 = vpack.c.b16 %v3011, %v3010
  %v3036 = vpack.c.b16 %v3013, %v3012
  %v3037 = vpack.c.b16 %v3015, %v3014
  %v3038 = vpack.c.b16 %v3017, %v3016
  %v3039 = vpack.c.b16 %v3019, %v3018
  %v3040 = vpack.c.b16 %v3021, %v3020
  %v3041 = vpack.c.b16 %v3023, %v3022
  %v3042 = vpack.c.b16 %v3024, %v3024
  %v3061 = vsel %vm2171, %v2950, 0
  %v3064 = vsel %vm93, %v3042, 0
  %3066 = vmatpush.bf16.msra.mxu0 %v3032
  %3067 = vmatpush.bf16.msra.mxu0 %v3031
  %3068 = vmatpush.bf16.msra.mxu0 %v3030
  %3069 = vmatpush.bf16.msra.mxu0 %v3029
  %3070 = vmatpush.bf16.msra.mxu0 %v3028
  %3071 = vmatpush.bf16.msra.mxu0 %v3027
  %3072 = vmatpush.bf16.msra.mxu0 %v3026
  %3073 = vmatpush.bf16.msra.mxu0 %v3025
  %3074 = vmatmul.bf16.gmra.mxu0 %v2951
  %v3075 = vpop.f32.mrf.mxu0
  %v3076 = vadd.f32 %v2935, %v3075
  %v3077 = vpop.f32.mrf.mxu0
  %3078 = vdwg.mxu0
  %3079 = vmatpush.bf16.msra.mxu0 %v3040
  %3080 = vmatpush.bf16.msra.mxu0 %v3039
  %3081 = vmatpush.bf16.msra.mxu0 %v3038
  %3082 = vmatpush.bf16.msra.mxu0 %v3037
  %3083 = vmatpush.bf16.msra.mxu0 %v3036
  %3084 = vmatpush.bf16.msra.mxu0 %v3035
  %3085 = vmatpush.bf16.msra.mxu0 %v3034
  %3086 = vmatpush.bf16.msra.mxu0 %v3033
  %3087 = vmatmul.bf16.gmra.mxu0 %v2952
  %v3088 = vpop.f32.mrf.mxu0
  %v3089 = vadd.f32 %v3076, %v3088
  %v3090 = vpop.f32.mrf.mxu0
  %3091 = vdwg.mxu0
  %3092 = vmatpush.bf16.msra.mxu0 0
  %3093 = vmatpush.bf16.msra.mxu0 0
  %3094 = vmatpush.bf16.msra.mxu0 0
  %3095 = vmatpush.bf16.msra.mxu0 0
  %3096 = vmatpush.bf16.msra.mxu0 0
  %3097 = vmatpush.bf16.msra.mxu0 0
  %3098 = vmatpush.bf16.msra.mxu0 %v3064
  %3099 = vmatpush.bf16.msra.mxu0 %v3041
  %3100 = vmatmul.bf16.gmra.mxu0 %v3061
  %v3101 = vpop.f32.mrf.mxu0
  %v3102 = vadd.f32 %v3089, %v3101
  %v3103 = vpop.f32.mrf.mxu0
  %3104 = vdwg.mxu0
  %v3105 = vmax.f32 %v3102, 0.0
  %v3106 = vpack.c.bf16 %v3105, %v3105
  %v3108 = vrot.slane %v3106, 3
  %v3111 = vsel %vm73, %v3106, %v3108
  %3113 = vrot.lane.b32.xlu0 %v3111, 80
  %v3114 = vpop.permute.xlu0 %3113
  %v3115 = vrot.slane %v3114, 7
  %v3116 = vsel %vm788, %v3115, %v3114
  %3118 = vst.msk [vmem:[#allocation4 + $0x2] sm:$0x3] %vm793, %v3116
  %v3119 = vld [vmem:[#allocation3 + $0x4] sm:$0x7]
  %v3120 = vld [vmem:[%s3] sm:$0xf]
  %v3121 = vld [vmem:[%s3 + $0x4] sm:$0xf]
  %v3122 = vld [vmem:[%s3 + $0x8] sm:$0xf]
  %v3123 = vld [vmem:[%s3 + $0xc] sm:$0xf]
  %v3124 = vld [vmem:[%s3 + $0x10] sm:$0xf]
  %v3125 = vld [vmem:[%s3 + $0x14] sm:$0xf]
  %v3126 = vld [vmem:[%s3 + $0x18] sm:$0xf]
  %v3127 = vld [vmem:[%s3 + $0x1c] sm:$0xf]
  %v3128 = vld [vmem:[%s3 + $0x20] sm:$0xf]
  %v3129 = vld [vmem:[%s3 + $0x24] sm:$0xf]
  %v3130 = vld [vmem:[%s3 + $0x28] sm:$0xf]
  %v3131 = vld [vmem:[%s3 + $0x2c] sm:$0xf]
  %v3132 = vld [vmem:[%s3 + $0x30] sm:$0xf]
  %v3133 = vld [vmem:[%s3 + $0x34] sm:$0xf]
  %v3134 = vld [vmem:[%s3 + $0x38] sm:$0xf]
  %v3135 = vld [vmem:[%s3 + $0x3c] sm:$0xf]
  %v3136 = vld [vmem:[%s3 + $0x40] sm:$0xf]
  %v3137 = vld [vmem:[%s3 + $0x44] sm:$0xf]
  %v3138 = vld [vmem:[%s3 + $0x48] sm:$0xf]
  %v3139 = vld [vmem:[%s3 + $0x4c] sm:$0xf]
  %v3140 = vld [vmem:[%s3 + $0x50] sm:$0xf]
  %v3141 = vld [vmem:[%s3 + $0x54] sm:$0xf]
  %v3142 = vld [vmem:[%s3 + $0x58] sm:$0xf]
  %v3143 = vld [vmem:[%s3 + $0x5c] sm:$0xf]
  %v3144 = vld [vmem:[%s3 + $0x60] sm:$0xf]
  %v3145 = vld [vmem:[%s3 + $0x64] sm:$0xf]
  %v3146 = vld [vmem:[%s3 + $0x68] sm:$0xf]
  %v3147 = vld [vmem:[%s3 + $0x6c] sm:$0xf]
  %v3148 = vld [vmem:[%s3 + $0x70] sm:$0xf]
  %v3149 = vld [vmem:[%s3 + $0x74] sm:$0xf]
  %v3150 = vld [vmem:[%s3 + $0x78] sm:$0xf]
  %v3151 = vld [vmem:[%s3 + $0x7c] sm:$0xf]
  %v3152 = vld [vmem:[%s3 + $0x80] sm:$0xf]
  %v3153 = vld [vmem:[%s3 + $0x84] sm:$0xf]
  %v3154 = vld [vmem:[%s3 + $0x88] sm:$0xf]
  %v3155 = vld [vmem:[%s4] sm:$0x1]
  %v3157 = vperm.slane %v3155, 0
  %3160 = vst [vmem:[#allocation1] ss:$9 sm:$0xff] %v3119
  %v3161 = vld [vmem:[#allocation1] sm:$0xff]
  %v3163 = vld [vmem:[#allocation1 + $0x9] sm:$0xff]
  %v3165 = vld [vmem:[#allocation1 + $0x12] sm:$0xff]
  %3167 = vrot.lane.b32.xlu0 %v3161, 80
  %v3168 = vpop.permute.xlu0 %3167
  %3169 = vrot.lane.b32.xlu0 %v3163, 80
  %v3170 = vpop.permute.xlu0 %3169
  %3171 = vrot.lane.b32.xlu0 %v3165, 80
  %v3172 = vpop.permute.xlu0 %3171
  %v3173 = vsel %vm788, %v3168, %v3170
  %v3174 = vsel %vm788, %v3170, %v3172
  %v3212 = vunpack.c.l.b16 %v3120
  %v3213 = vunpack.c.l.b16 %v3121
  %v3214 = vunpack.c.l.b16 %v3122
  %v3215 = vunpack.c.l.b16 %v3123
  %v3216 = vunpack.c.l.b16 %v3124
  %v3217 = vunpack.c.l.b16 %v3125
  %v3218 = vunpack.c.l.b16 %v3126
  %v3219 = vunpack.c.l.b16 %v3127
  %v3220 = vunpack.c.l.b16 %v3128
  %v3221 = vunpack.c.l.b16 %v3129
  %v3222 = vunpack.c.l.b16 %v3130
  %v3223 = vunpack.c.l.b16 %v3131
  %v3224 = vunpack.c.l.b16 %v3132
  %v3225 = vunpack.c.l.b16 %v3133
  %v3226 = vunpack.c.l.b16 %v3134
  %v3227 = vunpack.c.l.b16 %v3135
  %v3228 = vunpack.c.l.b16 %v3136
  %v3229 = vunpack.c.l.b16 %v3137
  %v3230 = vunpack.c.l.b16 %v3138
  %v3231 = vunpack.c.l.b16 %v3139
  %v3232 = vunpack.c.l.b16 %v3140
  %v3233 = vunpack.c.l.b16 %v3141
  %v3234 = vunpack.c.l.b16 %v3142
  %v3235 = vunpack.c.l.b16 %v3143
  %v3236 = vunpack.c.l.b16 %v3144
  %v3237 = vunpack.c.l.b16 %v3145
  %v3238 = vunpack.c.l.b16 %v3146
  %v3239 = vunpack.c.l.b16 %v3147
  %v3240 = vunpack.c.l.b16 %v3148
  %v3241 = vunpack.c.l.b16 %v3149
  %v3242 = vunpack.c.l.b16 %v3150
  %v3243 = vunpack.c.l.b16 %v3151
  %v3244 = vunpack.c.l.b16 %v3152
  %v3245 = vunpack.c.l.b16 %v3153
  %v3246 = vunpack.c.l.b16 %v3154
  %v3247 = vpack.c.b16 %v3213, %v3212
  %v3248 = vpack.c.b16 %v3215, %v3214
  %v3249 = vpack.c.b16 %v3217, %v3216
  %v3250 = vpack.c.b16 %v3219, %v3218
  %v3251 = vpack.c.b16 %v3221, %v3220
  %v3252 = vpack.c.b16 %v3223, %v3222
  %v3253 = vpack.c.b16 %v3225, %v3224
  %v3254 = vpack.c.b16 %v3227, %v3226
  %v3255 = vpack.c.b16 %v3229, %v3228
  %v3256 = vpack.c.b16 %v3231, %v3230
  %v3257 = vpack.c.b16 %v3233, %v3232
  %v3258 = vpack.c.b16 %v3235, %v3234
  %v3259 = vpack.c.b16 %v3237, %v3236
  %v3260 = vpack.c.b16 %v3239, %v3238
  %v3261 = vpack.c.b16 %v3241, %v3240
  %v3262 = vpack.c.b16 %v3243, %v3242
  %v3263 = vpack.c.b16 %v3245, %v3244
  %v3264 = vpack.c.b16 %v3246, %v3246
  %v3283 = vsel %vm2171, %v3172, 0
  %v3286 = vsel %vm93, %v3264, 0
  %3288 = vmatpush.bf16.msra.mxu0 %v3254
  %3289 = vmatpush.bf16.msra.mxu0 %v3253
  %3290 = vmatpush.bf16.msra.mxu0 %v3252
  %3291 = vmatpush.bf16.msra.mxu0 %v3251
  %3292 = vmatpush.bf16.msra.mxu0 %v3250
  %3293 = vmatpush.bf16.msra.mxu0 %v3249
  %3294 = vmatpush.bf16.msra.mxu0 %v3248
  %3295 = vmatpush.bf16.msra.mxu0 %v3247
  %3296 = vmatmul.bf16.gmra.mxu0 %v3173
  %v3297 = vpop.f32.mrf.mxu0
  %v3298 = vadd.f32 %v3157, %v3297
  %v3299 = vpop.f32.mrf.mxu0
  %3300 = vdwg.mxu0
  %3301 = vmatpush.bf16.msra.mxu0 %v3262
  %3302 = vmatpush.bf16.msra.mxu0 %v3261
  %3303 = vmatpush.bf16.msra.mxu0 %v3260
  %3304 = vmatpush.bf16.msra.mxu0 %v3259
  %3305 = vmatpush.bf16.msra.mxu0 %v3258
  %3306 = vmatpush.bf16.msra.mxu0 %v3257
  %3307 = vmatpush.bf16.msra.mxu0 %v3256
  %3308 = vmatpush.bf16.msra.mxu0 %v3255
  %3309 = vmatmul.bf16.gmra.mxu0 %v3174
  %v3310 = vpop.f32.mrf.mxu0
  %v3311 = vadd.f32 %v3298, %v3310
  %v3312 = vpop.f32.mrf.mxu0
  %3313 = vdwg.mxu0
  %3314 = vmatpush.bf16.msra.mxu0 0
  %3315 = vmatpush.bf16.msra.mxu0 0
  %3316 = vmatpush.bf16.msra.mxu0 0
  %3317 = vmatpush.bf16.msra.mxu0 0
  %3318 = vmatpush.bf16.msra.mxu0 0
  %3319 = vmatpush.bf16.msra.mxu0 0
  %3320 = vmatpush.bf16.msra.mxu0 %v3286
  %3321 = vmatpush.bf16.msra.mxu0 %v3263
  %3322 = vmatmul.bf16.gmra.mxu0 %v3283
  %v3323 = vpop.f32.mrf.mxu0
  %v3324 = vadd.f32 %v3311, %v3323
  %v3325 = vpop.f32.mrf.mxu0
  %3326 = vdwg.mxu0
  %v3327 = vmax.f32 %v3324, 0.0
  %v3328 = vpack.c.bf16 %v3327, %v3327
  %v3330 = vrot.slane %v3328, 3
  %v3333 = vsel %vm73, %v3328, %v3330
  %3335 = vrot.lane.b32.xlu0 %v3333, 8
  %v3336 = vpop.permute.xlu0 %3335
  %3338 = vst.msk [vmem:[#allocation4 + $0x3] sm:$0x1] %vm927, %v3336
  %v3339 = vld [vmem:[#allocation3 + $0x5] sm:$0x7]
  %v3340 = vld [vmem:[%s3] sm:$0xf]
  %v3341 = vld [vmem:[%s3 + $0x4] sm:$0xf]
  %v3342 = vld [vmem:[%s3 + $0x8] sm:$0xf]
  %v3343 = vld [vmem:[%s3 + $0xc] sm:$0xf]
  %v3344 = vld [vmem:[%s3 + $0x10] sm:$0xf]
  %v3345 = vld [vmem:[%s3 + $0x14] sm:$0xf]
  %v3346 = vld [vmem:[%s3 + $0x18] sm:$0xf]
  %v3347 = vld [vmem:[%s3 + $0x1c] sm:$0xf]
  %v3348 = vld [vmem:[%s3 + $0x20] sm:$0xf]
  %v3349 = vld [vmem:[%s3 + $0x24] sm:$0xf]
  %v3350 = vld [vmem:[%s3 + $0x28] sm:$0xf]
  %v3351 = vld [vmem:[%s3 + $0x2c] sm:$0xf]
  %v3352 = vld [vmem:[%s3 + $0x30] sm:$0xf]
  %v3353 = vld [vmem:[%s3 + $0x34] sm:$0xf]
  %v3354 = vld [vmem:[%s3 + $0x38] sm:$0xf]
  %v3355 = vld [vmem:[%s3 + $0x3c] sm:$0xf]
  %v3356 = vld [vmem:[%s3 + $0x40] sm:$0xf]
  %v3357 = vld [vmem:[%s3 + $0x44] sm:$0xf]
  %v3358 = vld [vmem:[%s3 + $0x48] sm:$0xf]
  %v3359 = vld [vmem:[%s3 + $0x4c] sm:$0xf]
  %v3360 = vld [vmem:[%s3 + $0x50] sm:$0xf]
  %v3361 = vld [vmem:[%s3 + $0x54] sm:$0xf]
  %v3362 = vld [vmem:[%s3 + $0x58] sm:$0xf]
  %v3363 = vld [vmem:[%s3 + $0x5c] sm:$0xf]
  %v3364 = vld [vmem:[%s3 + $0x60] sm:$0xf]
  %v3365 = vld [vmem:[%s3 + $0x64] sm:$0xf]
  %v3366 = vld [vmem:[%s3 + $0x68] sm:$0xf]
  %v3367 = vld [vmem:[%s3 + $0x6c] sm:$0xf]
  %v3368 = vld [vmem:[%s3 + $0x70] sm:$0xf]
  %v3369 = vld [vmem:[%s3 + $0x74] sm:$0xf]
  %v3370 = vld [vmem:[%s3 + $0x78] sm:$0xf]
  %v3371 = vld [vmem:[%s3 + $0x7c] sm:$0xf]
  %v3372 = vld [vmem:[%s3 + $0x80] sm:$0xf]
  %v3373 = vld [vmem:[%s3 + $0x84] sm:$0xf]
  %v3374 = vld [vmem:[%s3 + $0x88] sm:$0xf]
  %v3375 = vld [vmem:[%s4] sm:$0x1]
  %v3377 = vperm.slane %v3375, 0
  %3380 = vst [vmem:[#allocation1] ss:$9 sm:$0xff] %v3339
  %v3381 = vld [vmem:[#allocation1] sm:$0xff]
  %v3383 = vld [vmem:[#allocation1 + $0x9] sm:$0xff]
  %v3385 = vld [vmem:[#allocation1 + $0x12] sm:$0xff]
  %3387 = vrot.lane.b32.xlu0 %v3381, 96
  %v3388 = vpop.permute.xlu0 %3387
  %3389 = vrot.lane.b32.xlu0 %v3383, 96
  %v3390 = vpop.permute.xlu0 %3389
  %3391 = vrot.lane.b32.xlu0 %v3385, 96
  %v3392 = vpop.permute.xlu0 %3391
  %v3393 = vsel %vm515, %v3388, %v3390
  %v3394 = vsel %vm515, %v3390, %v3392
  %v3432 = vunpack.c.l.b16 %v3340
  %v3433 = vunpack.c.l.b16 %v3341
  %v3434 = vunpack.c.l.b16 %v3342
  %v3435 = vunpack.c.l.b16 %v3343
  %v3436 = vunpack.c.l.b16 %v3344
  %v3437 = vunpack.c.l.b16 %v3345
  %v3438 = vunpack.c.l.b16 %v3346
  %v3439 = vunpack.c.l.b16 %v3347
  %v3440 = vunpack.c.l.b16 %v3348
  %v3441 = vunpack.c.l.b16 %v3349
  %v3442 = vunpack.c.l.b16 %v3350
  %v3443 = vunpack.c.l.b16 %v3351
  %v3444 = vunpack.c.l.b16 %v3352
  %v3445 = vunpack.c.l.b16 %v3353
  %v3446 = vunpack.c.l.b16 %v3354
  %v3447 = vunpack.c.l.b16 %v3355
  %v3448 = vunpack.c.l.b16 %v3356
  %v3449 = vunpack.c.l.b16 %v3357
  %v3450 = vunpack.c.l.b16 %v3358
  %v3451 = vunpack.c.l.b16 %v3359
  %v3452 = vunpack.c.l.b16 %v3360
  %v3453 = vunpack.c.l.b16 %v3361
  %v3454 = vunpack.c.l.b16 %v3362
  %v3455 = vunpack.c.l.b16 %v3363
  %v3456 = vunpack.c.l.b16 %v3364
  %v3457 = vunpack.c.l.b16 %v3365
  %v3458 = vunpack.c.l.b16 %v3366
  %v3459 = vunpack.c.l.b16 %v3367
  %v3460 = vunpack.c.l.b16 %v3368
  %v3461 = vunpack.c.l.b16 %v3369
  %v3462 = vunpack.c.l.b16 %v3370
  %v3463 = vunpack.c.l.b16 %v3371
  %v3464 = vunpack.c.l.b16 %v3372
  %v3465 = vunpack.c.l.b16 %v3373
  %v3466 = vunpack.c.l.b16 %v3374
  %v3467 = vpack.c.b16 %v3433, %v3432
  %v3468 = vpack.c.b16 %v3435, %v3434
  %v3469 = vpack.c.b16 %v3437, %v3436
  %v3470 = vpack.c.b16 %v3439, %v3438
  %v3471 = vpack.c.b16 %v3441, %v3440
  %v3472 = vpack.c.b16 %v3443, %v3442
  %v3473 = vpack.c.b16 %v3445, %v3444
  %v3474 = vpack.c.b16 %v3447, %v3446
  %v3475 = vpack.c.b16 %v3449, %v3448
  %v3476 = vpack.c.b16 %v3451, %v3450
  %v3477 = vpack.c.b16 %v3453, %v3452
  %v3478 = vpack.c.b16 %v3455, %v3454
  %v3479 = vpack.c.b16 %v3457, %v3456
  %v3480 = vpack.c.b16 %v3459, %v3458
  %v3481 = vpack.c.b16 %v3461, %v3460
  %v3482 = vpack.c.b16 %v3463, %v3462
  %v3483 = vpack.c.b16 %v3465, %v3464
  %v3484 = vpack.c.b16 %v3466, %v3466
  %v3503 = vsel %vm2171, %v3392, 0
  %v3506 = vsel %vm93, %v3484, 0
  %3508 = vmatpush.bf16.msra.mxu0 %v3474
  %3509 = vmatpush.bf16.msra.mxu0 %v3473
  %3510 = vmatpush.bf16.msra.mxu0 %v3472
  %3511 = vmatpush.bf16.msra.mxu0 %v3471
  %3512 = vmatpush.bf16.msra.mxu0 %v3470
  %3513 = vmatpush.bf16.msra.mxu0 %v3469
  %3514 = vmatpush.bf16.msra.mxu0 %v3468
  %3515 = vmatpush.bf16.msra.mxu0 %v3467
  %3516 = vmatmul.bf16.gmra.mxu0 %v3393
  %v3517 = vpop.f32.mrf.mxu0
  %v3518 = vadd.f32 %v3377, %v3517
  %v3519 = vpop.f32.mrf.mxu0
  %3520 = vdwg.mxu0
  %3521 = vmatpush.bf16.msra.mxu0 %v3482
  %3522 = vmatpush.bf16.msra.mxu0 %v3481
  %3523 = vmatpush.bf16.msra.mxu0 %v3480
  %3524 = vmatpush.bf16.msra.mxu0 %v3479
  %3525 = vmatpush.bf16.msra.mxu0 %v3478
  %3526 = vmatpush.bf16.msra.mxu0 %v3477
  %3527 = vmatpush.bf16.msra.mxu0 %v3476
  %3528 = vmatpush.bf16.msra.mxu0 %v3475
  %3529 = vmatmul.bf16.gmra.mxu0 %v3394
  %v3530 = vpop.f32.mrf.mxu0
  %v3531 = vadd.f32 %v3518, %v3530
  %v3532 = vpop.f32.mrf.mxu0
  %3533 = vdwg.mxu0
  %3534 = vmatpush.bf16.msra.mxu0 0
  %3535 = vmatpush.bf16.msra.mxu0 0
  %3536 = vmatpush.bf16.msra.mxu0 0
  %3537 = vmatpush.bf16.msra.mxu0 0
  %3538 = vmatpush.bf16.msra.mxu0 0
  %3539 = vmatpush.bf16.msra.mxu0 0
  %3540 = vmatpush.bf16.msra.mxu0 %v3506
  %3541 = vmatpush.bf16.msra.mxu0 %v3483
  %3542 = vmatmul.bf16.gmra.mxu0 %v3503
  %v3543 = vpop.f32.mrf.mxu0
  %v3544 = vadd.f32 %v3531, %v3543
  %v3545 = vpop.f32.mrf.mxu0
  %3546 = vdwg.mxu0
  %v3547 = vmax.f32 %v3544, 0.0
  %v3548 = vpack.c.bf16 %v3547, %v3547
  %v3550 = vrot.slane %v3548, 3
  %v3553 = vsel %vm73, %v3548, %v3550
  %3555 = vrot.lane.b32.xlu0 %v3553, 64
  %v3556 = vpop.permute.xlu0 %3555
  %3558 = vst.msk [vmem:[#allocation4 + $0x3] sm:$0x1] %vm1061, %v3556
  %v3559 = vld [vmem:[#allocation4] sm:$0x7]
  %v3560 = vld [vmem:[%s5] sm:$0xf]
  %v3561 = vld [vmem:[%s5 + $0x4] sm:$0xf]
  %v3562 = vld [vmem:[%s5 + $0x8] sm:$0xf]
  %v3563 = vld [vmem:[%s5 + $0xc] sm:$0xf]
  %v3564 = vld [vmem:[%s5 + $0x10] sm:$0xf]
  %v3565 = vld [vmem:[%s5 + $0x14] sm:$0xf]
  %v3566 = vld [vmem:[%s5 + $0x18] sm:$0xf]
  %v3567 = vld [vmem:[%s5 + $0x1c] sm:$0xf]
  %v3568 = vld [vmem:[%s5 + $0x20] sm:$0xf]
  %v3569 = vld [vmem:[%s5 + $0x24] sm:$0xf]
  %v3570 = vld [vmem:[%s5 + $0x28] sm:$0xf]
  %v3571 = vld [vmem:[%s5 + $0x2c] sm:$0xf]
  %v3572 = vld [vmem:[%s5 + $0x30] sm:$0xf]
  %v3573 = vld [vmem:[%s5 + $0x34] sm:$0xf]
  %v3574 = vld [vmem:[%s5 + $0x38] sm:$0xf]
  %v3575 = vld [vmem:[%s5 + $0x3c] sm:$0xf]
  %v3576 = vld [vmem:[%s5 + $0x40] sm:$0xf]
  %v3577 = vld [vmem:[%s5 + $0x44] sm:$0xf]
  %v3578 = vld [vmem:[%s5 + $0x48] sm:$0xf]
  %v3579 = vld [vmem:[%s5 + $0x4c] sm:$0xf]
  %v3580 = vld [vmem:[%s5 + $0x50] sm:$0xf]
  %v3581 = vld [vmem:[%s5 + $0x54] sm:$0xf]
  %v3582 = vld [vmem:[%s5 + $0x58] sm:$0xf]
  %v3583 = vld [vmem:[%s5 + $0x5c] sm:$0xf]
  %v3584 = vld [vmem:[%s5 + $0x60] sm:$0xf]
  %v3585 = vld [vmem:[%s5 + $0x64] sm:$0xf]
  %v3586 = vld [vmem:[%s5 + $0x68] sm:$0xf]
  %v3587 = vld [vmem:[%s5 + $0x6c] sm:$0xf]
  %v3588 = vld [vmem:[%s5 + $0x70] sm:$0xf]
  %v3589 = vld [vmem:[%s5 + $0x74] sm:$0xf]
  %v3590 = vld [vmem:[%s5 + $0x78] sm:$0xf]
  %v3591 = vld [vmem:[%s5 + $0x7c] sm:$0xf]
  %v3592 = vld [vmem:[%s5 + $0x80] sm:$0xf]
  %v3593 = vld [vmem:[%s5 + $0x84] sm:$0xf]
  %v3594 = vld [vmem:[%s5 + $0x88] sm:$0xf]
  %v3595 = vld [vmem:[%s6] sm:$0x1]
  %v3597 = vperm.slane %v3595, 0
  %3600 = vst [vmem:[#allocation1] ss:$9 sm:$0xff] %v3559
  %v3601 = vld [vmem:[#allocation1] sm:$0xff]
  %v3602 = vld [vmem:[#allocation1 + $0x9] sm:$0xff]
  %v3603 = vld [vmem:[#allocation1 + $0x12] sm:$0xff]
  %v3641 = vunpack.c.l.b16 %v3560
  %v3642 = vunpack.c.l.b16 %v3561
  %v3643 = vunpack.c.l.b16 %v3562
  %v3644 = vunpack.c.l.b16 %v3563
  %v3645 = vunpack.c.l.b16 %v3564
  %v3646 = vunpack.c.l.b16 %v3565
  %v3647 = vunpack.c.l.b16 %v3566
  %v3648 = vunpack.c.l.b16 %v3567
  %v3649 = vunpack.c.l.b16 %v3568
  %v3650 = vunpack.c.l.b16 %v3569
  %v3651 = vunpack.c.l.b16 %v3570
  %v3652 = vunpack.c.l.b16 %v3571
  %v3653 = vunpack.c.l.b16 %v3572
  %v3654 = vunpack.c.l.b16 %v3573
  %v3655 = vunpack.c.l.b16 %v3574
  %v3656 = vunpack.c.l.b16 %v3575
  %v3657 = vunpack.c.l.b16 %v3576
  %v3658 = vunpack.c.l.b16 %v3577
  %v3659 = vunpack.c.l.b16 %v3578
  %v3660 = vunpack.c.l.b16 %v3579
  %v3661 = vunpack.c.l.b16 %v3580
  %v3662 = vunpack.c.l.b16 %v3581
  %v3663 = vunpack.c.l.b16 %v3582
  %v3664 = vunpack.c.l.b16 %v3583
  %v3665 = vunpack.c.l.b16 %v3584
  %v3666 = vunpack.c.l.b16 %v3585
  %v3667 = vunpack.c.l.b16 %v3586
  %v3668 = vunpack.c.l.b16 %v3587
  %v3669 = vunpack.c.l.b16 %v3588
  %v3670 = vunpack.c.l.b16 %v3589
  %v3671 = vunpack.c.l.b16 %v3590
  %v3672 = vunpack.c.l.b16 %v3591
  %v3673 = vunpack.c.l.b16 %v3592
  %v3674 = vunpack.c.l.b16 %v3593
  %v3675 = vunpack.c.l.b16 %v3594
  %v3676 = vpack.c.b16 %v3642, %v3641
  %v3677 = vpack.c.b16 %v3644, %v3643
  %v3678 = vpack.c.b16 %v3646, %v3645
  %v3679 = vpack.c.b16 %v3648, %v3647
  %v3680 = vpack.c.b16 %v3650, %v3649
  %v3681 = vpack.c.b16 %v3652, %v3651
  %v3682 = vpack.c.b16 %v3654, %v3653
  %v3683 = vpack.c.b16 %v3656, %v3655
  %v3684 = vpack.c.b16 %v3658, %v3657
  %v3685 = vpack.c.b16 %v3660, %v3659
  %v3686 = vpack.c.b16 %v3662, %v3661
  %v3687 = vpack.c.b16 %v3664, %v3663
  %v3688 = vpack.c.b16 %v3666, %v3665
  %v3689 = vpack.c.b16 %v3668, %v3667
  %v3690 = vpack.c.b16 %v3670, %v3669
  %v3691 = vpack.c.b16 %v3672, %v3671
  %v3692 = vpack.c.b16 %v3674, %v3673
  %v3693 = vpack.c.b16 %v3675, %v3675
  %v3711 = vsel %vm2171, %v3603, 0
  %v3714 = vsel %vm93, %v3693, 0
  %3716 = vmatpush.bf16.msra.mxu0 %v3683
  %3717 = vmatpush.bf16.msra.mxu0 %v3682
  %3718 = vmatpush.bf16.msra.mxu0 %v3681
  %3719 = vmatpush.bf16.msra.mxu0 %v3680
  %3720 = vmatpush.bf16.msra.mxu0 %v3679
  %3721 = vmatpush.bf16.msra.mxu0 %v3678
  %3722 = vmatpush.bf16.msra.mxu0 %v3677
  %3723 = vmatpush.bf16.msra.mxu0 %v3676
  %3724 = vmatmul.bf16.gmra.mxu0 %v3601
  %v3725 = vpop.f32.mrf.mxu0
  %v3726 = vadd.f32 %v3597, %v3725
  %v3727 = vpop.f32.mrf.mxu0
  %3728 = vdwg.mxu0
  %3729 = vmatpush.bf16.msra.mxu0 %v3691
  %3730 = vmatpush.bf16.msra.mxu0 %v3690
  %3731 = vmatpush.bf16.msra.mxu0 %v3689
  %3732 = vmatpush.bf16.msra.mxu0 %v3688
  %3733 = vmatpush.bf16.msra.mxu0 %v3687
  %3734 = vmatpush.bf16.msra.mxu0 %v3686
  %3735 = vmatpush.bf16.msra.mxu0 %v3685
  %3736 = vmatpush.bf16.msra.mxu0 %v3684
  %3737 = vmatmul.bf16.gmra.mxu0 %v3602
  %v3738 = vpop.f32.mrf.mxu0
  %v3739 = vadd.f32 %v3726, %v3738
  %v3740 = vpop.f32.mrf.mxu0
  %3741 = vdwg.mxu0
  %3742 = vmatpush.bf16.msra.mxu0 0
  %3743 = vmatpush.bf16.msra.mxu0 0
  %3744 = vmatpush.bf16.msra.mxu0 0
  %3745 = vmatpush.bf16.msra.mxu0 0
  %3746 = vmatpush.bf16.msra.mxu0 0
  %3747 = vmatpush.bf16.msra.mxu0 0
  %3748 = vmatpush.bf16.msra.mxu0 %v3714
  %3749 = vmatpush.bf16.msra.mxu0 %v3692
  %3750 = vmatmul.bf16.gmra.mxu0 %v3711
  %v3751 = vpop.f32.mrf.mxu0
  %v3752 = vadd.f32 %v3739, %v3751
  %v3753 = vpop.f32.mrf.mxu0
  %3754 = vdwg.mxu0
  %v3755 = vmax.f32 %v3752, 0.0
  %v3756 = vpack.c.bf16 %v3755, %v3755
  %v3757 = vld [vmem:[%s7] sm:$0xf]
  %v3758 = vld [vmem:[%s7 + $0x4] sm:$0xf]
  %v3759 = vld [vmem:[%s7 + $0x8] sm:$0xf]
  %v3760 = vld [vmem:[%s7 + $0xc] sm:$0xf]
  %v3761 = vld [vmem:[%s7 + $0x10] sm:$0xf]
  %v3762 = vld [vmem:[%s7 + $0x14] sm:$0xf]
  %v3763 = vld [vmem:[%s7 + $0x18] sm:$0xf]
  %v3764 = vld [vmem:[%s7 + $0x1c] sm:$0xf]
  %v3765 = vld [vmem:[#allocation4] sm:$0xf]
  %3767 = vst [vmem:[#allocation1] ss:$9 sm:$0xff] %v3765
  %v3768 = vld [vmem:[#allocation1] sm:$0xff]
  %v3770 = vld [vmem:[#allocation1 + $0x9] sm:$0xff]
  %v3772 = vld [vmem:[#allocation1 + $0x12] sm:$0xff]
  %v3774 = vld [vmem:[#allocation1 + $0x1b] sm:$0xff]
  %3776 = vrot.lane.b32.xlu0 %v3768, 16
  %v3777 = vpop.permute.xlu0 %3776
  %3778 = vrot.lane.b32.xlu0 %v3770, 16
  %v3779 = vpop.permute.xlu0 %3778
  %3780 = vrot.lane.b32.xlu0 %v3772, 16
  %v3781 = vpop.permute.xlu0 %3780
  %3782 = vrot.lane.b32.xlu0 %v3774, 16
  %v3783 = vpop.permute.xlu0 %3782
  %v3784 = vsel %vm416, %v3777, %v3779
  %v3785 = vsel %vm416, %v3779, %v3781
  %v3786 = vsel %vm416, %v3781, %v3783
  %v3790 = vsel %vm2171, %v3786, 0
  %3792 = vmatpush.bf16.msra.mxu0 %v3683
  %3793 = vmatpush.bf16.msra.mxu0 %v3682
  %3794 = vmatpush.bf16.msra.mxu0 %v3681
  %3795 = vmatpush.bf16.msra.mxu0 %v3680
  %3796 = vmatpush.bf16.msra.mxu0 %v3679
  %3797 = vmatpush.bf16.msra.mxu0 %v3678
  %3798 = vmatpush.bf16.msra.mxu0 %v3677
  %3799 = vmatpush.bf16.msra.mxu0 %v3676
  %3800 = vmatmul.bf16.gmra.mxu0 %v3784
  %v3801 = vpop.f32.mrf.mxu0
  %v3802 = vadd.f32 %v3597, %v3801
  %v3803 = vpop.f32.mrf.mxu0
  %3804 = vdwg.mxu0
  %3805 = vmatpush.bf16.msra.mxu0 %v3691
  %3806 = vmatpush.bf16.msra.mxu0 %v3690
  %3807 = vmatpush.bf16.msra.mxu0 %v3689
  %3808 = vmatpush.bf16.msra.mxu0 %v3688
  %3809 = vmatpush.bf16.msra.mxu0 %v3687
  %3810 = vmatpush.bf16.msra.mxu0 %v3686
  %3811 = vmatpush.bf16.msra.mxu0 %v3685
  %3812 = vmatpush.bf16.msra.mxu0 %v3684
  %3813 = vmatmul.bf16.gmra.mxu0 %v3785
  %v3814 = vpop.f32.mrf.mxu0
  %v3815 = vadd.f32 %v3802, %v3814
  %v3816 = vpop.f32.mrf.mxu0
  %3817 = vdwg.mxu0
  %3818 = vmatpush.bf16.msra.mxu0 0
  %3819 = vmatpush.bf16.msra.mxu0 0
  %3820 = vmatpush.bf16.msra.mxu0 0
  %3821 = vmatpush.bf16.msra.mxu0 0
  %3822 = vmatpush.bf16.msra.mxu0 0
  %3823 = vmatpush.bf16.msra.mxu0 0
  %3824 = vmatpush.bf16.msra.mxu0 %v3714
  %3825 = vmatpush.bf16.msra.mxu0 %v3692
  %3826 = vmatmul.bf16.gmra.mxu0 %v3790
  %v3827 = vpop.f32.mrf.mxu0
  %v3828 = vadd.f32 %v3815, %v3827
  %v3829 = vpop.f32.mrf.mxu0
  %3830 = vdwg.mxu0
  %v3831 = vmax.f32 %v3828, 0.0
  %v3832 = vpack.c.bf16 %v3831, %v3831
  %v3833 = vld [vmem:[%s7 + $0x20] sm:$0xf]
  %v3834 = vld [vmem:[%s7 + $0x24] sm:$0xf]
  %v3835 = vld [vmem:[%s7 + $0x28] sm:$0xf]
  %v3836 = vld [vmem:[%s7 + $0x2c] sm:$0xf]
  %v3837 = vld [vmem:[%s7 + $0x30] sm:$0xf]
  %v3838 = vld [vmem:[%s7 + $0x34] sm:$0xf]
  %v3839 = vld [vmem:[%s7 + $0x38] sm:$0xf]
  %v3840 = vld [vmem:[%s7 + $0x3c] sm:$0xf]
  %v3849 = vunpack.c.l.b16 %v3833
  %v3850 = vunpack.c.l.b16 %v3834
  %v3851 = vunpack.c.l.b16 %v3835
  %v3852 = vunpack.c.l.b16 %v3836
  %v3853 = vunpack.c.l.b16 %v3837
  %v3854 = vunpack.c.l.b16 %v3838
  %v3855 = vunpack.c.l.b16 %v3839
  %v3856 = vunpack.c.l.b16 %v3840
  %v3857 = vpack.c.b16 %v3850, %v3849
  %v3858 = vpack.c.b16 %v3852, %v3851
  %v3859 = vpack.c.b16 %v3854, %v3853
  %v3860 = vpack.c.b16 %v3856, %v3855
  %vm3865 = vcmask 523264
  %v3867 = vsel %vm3865, %v3832, 0
  %3869 = vmatpush.bf16.msra.mxu0 0
  %3870 = vmatpush.bf16.msra.mxu0 0
  %3871 = vmatpush.bf16.msra.mxu0 0
  %3872 = vmatpush.bf16.msra.mxu0 0
  %3873 = vmatpush.bf16.msra.mxu0 %v3860
  %3874 = vmatpush.bf16.msra.mxu0 %v3859
  %3875 = vmatpush.bf16.msra.mxu0 %v3858
  %3876 = vmatpush.bf16.msra.mxu0 %v3857
  %3877 = vmatmul.bf16.gmra.mxu0 %v3867
  %v3878 = vpop.f32.mrf.mxu0
  %v3879 = vadd.f32 0.0, %v3878
  %v3880 = vpop.f32.mrf.mxu0
  %3881 = vdwg.mxu0
  %v3890 = vunpack.c.l.b16 %v3757
  %v3891 = vunpack.c.l.b16 %v3758
  %v3892 = vunpack.c.l.b16 %v3759
  %v3893 = vunpack.c.l.b16 %v3760
  %v3894 = vunpack.c.l.b16 %v3761
  %v3895 = vunpack.c.l.b16 %v3762
  %v3896 = vunpack.c.l.b16 %v3763
  %v3897 = vunpack.c.l.b16 %v3764
  %v3898 = vpack.c.b16 %v3891, %v3890
  %v3899 = vpack.c.b16 %v3893, %v3892
  %v3900 = vpack.c.b16 %v3895, %v3894
  %v3901 = vpack.c.b16 %v3897, %v3896
  %v3907 = vsel %vm3865, %v3756, 0
  %3909 = vmatpush.bf16.msra.mxu0 0
  %3910 = vmatpush.bf16.msra.mxu0 0
  %3911 = vmatpush.bf16.msra.mxu0 0
  %3912 = vmatpush.bf16.msra.mxu0 0
  %3913 = vmatpush.bf16.msra.mxu0 %v3901
  %3914 = vmatpush.bf16.msra.mxu0 %v3900
  %3915 = vmatpush.bf16.msra.mxu0 %v3899
  %3916 = vmatpush.bf16.msra.mxu0 %v3898
  %3917 = vmatmul.bf16.gmra.mxu0 %v3907
  %v3918 = vpop.f32.mrf.mxu0
  %v3919 = vadd.f32 %v3879, %v3918
  %v3920 = vpop.f32.mrf.mxu0
  %3921 = vdwg.mxu0
  %v3922 = vld [vmem:[#allocation4 + $0x1] sm:$0x7]
  %3924 = vst [vmem:[#allocation1] ss:$9 sm:$0xff] %v3922
  %v3925 = vld [vmem:[#allocation1] sm:$0xff]
  %v3927 = vld [vmem:[#allocation1 + $0x9] sm:$0xff]
  %v3929 = vld [vmem:[#allocation1 + $0x12] sm:$0xff]
  %3931 = vrot.lane.b32.xlu0 %v3925, 32
  %v3932 = vpop.permute.xlu0 %3931
  %3933 = vrot.lane.b32.xlu0 %v3927, 32
  %v3934 = vpop.permute.xlu0 %3933
  %3935 = vrot.lane.b32.xlu0 %v3929, 32
  %v3936 = vpop.permute.xlu0 %3935
  %v3937 = vsel %vm689, %v3932, %v3934
  %v3938 = vsel %vm689, %v3934, %v3936
  %v3942 = vsel %vm2171, %v3936, 0
  %3944 = vmatpush.bf16.msra.mxu0 %v3683
  %3945 = vmatpush.bf16.msra.mxu0 %v3682
  %3946 = vmatpush.bf16.msra.mxu0 %v3681
  %3947 = vmatpush.bf16.msra.mxu0 %v3680
  %3948 = vmatpush.bf16.msra.mxu0 %v3679
  %3949 = vmatpush.bf16.msra.mxu0 %v3678
  %3950 = vmatpush.bf16.msra.mxu0 %v3677
  %3951 = vmatpush.bf16.msra.mxu0 %v3676
  %3952 = vmatmul.bf16.gmra.mxu0 %v3937
  %v3953 = vpop.f32.mrf.mxu0
  %v3954 = vadd.f32 %v3597, %v3953
  %v3955 = vpop.f32.mrf.mxu0
  %3956 = vdwg.mxu0
  %3957 = vmatpush.bf16.msra.mxu0 %v3691
  %3958 = vmatpush.bf16.msra.mxu0 %v3690
  %3959 = vmatpush.bf16.msra.mxu0 %v3689
  %3960 = vmatpush.bf16.msra.mxu0 %v3688
  %3961 = vmatpush.bf16.msra.mxu0 %v3687
  %3962 = vmatpush.bf16.msra.mxu0 %v3686
  %3963 = vmatpush.bf16.msra.mxu0 %v3685
  %3964 = vmatpush.bf16.msra.mxu0 %v3684
  %3965 = vmatmul.bf16.gmra.mxu0 %v3938
  %v3966 = vpop.f32.mrf.mxu0
  %v3967 = vadd.f32 %v3954, %v3966
  %v3968 = vpop.f32.mrf.mxu0
  %3969 = vdwg.mxu0
  %3970 = vmatpush.bf16.msra.mxu0 0
  %3971 = vmatpush.bf16.msra.mxu0 0
  %3972 = vmatpush.bf16.msra.mxu0 0
  %3973 = vmatpush.bf16.msra.mxu0 0
  %3974 = vmatpush.bf16.msra.mxu0 0
  %3975 = vmatpush.bf16.msra.mxu0 0
  %3976 = vmatpush.bf16.msra.mxu0 %v3714
  %3977 = vmatpush.bf16.msra.mxu0 %v3692
  %3978 = vmatmul.bf16.gmra.mxu0 %v3942
  %v3979 = vpop.f32.mrf.mxu0
  %v3980 = vadd.f32 %v3967, %v3979
  %v3981 = vpop.f32.mrf.mxu0
  %3982 = vdwg.mxu0
  %v3983 = vmax.f32 %v3980, 0.0
  %v3984 = vpack.c.bf16 %v3983, %v3983
  %v3985 = vld [vmem:[%s7 + $0x40] sm:$0xf]
  %v3986 = vld [vmem:[%s7 + $0x44] sm:$0xf]
  %v3987 = vld [vmem:[%s7 + $0x48] sm:$0xf]
  %v3988 = vld [vmem:[%s7 + $0x4c] sm:$0xf]
  %v3989 = vld [vmem:[%s7 + $0x50] sm:$0xf]
  %v3990 = vld [vmem:[%s7 + $0x54] sm:$0xf]
  %v3991 = vld [vmem:[%s7 + $0x58] sm:$0xf]
  %v3992 = vld [vmem:[%s7 + $0x5c] sm:$0xf]
  %v4001 = vunpack.c.l.b16 %v3985
  %v4002 = vunpack.c.l.b16 %v3986
  %v4003 = vunpack.c.l.b16 %v3987
  %v4004 = vunpack.c.l.b16 %v3988
  %v4005 = vunpack.c.l.b16 %v3989
  %v4006 = vunpack.c.l.b16 %v3990
  %v4007 = vunpack.c.l.b16 %v3991
  %v4008 = vunpack.c.l.b16 %v3992
  %v4009 = vpack.c.b16 %v4002, %v4001
  %v4010 = vpack.c.b16 %v4004, %v4003
  %v4011 = vpack.c.b16 %v4006, %v4005
  %v4012 = vpack.c.b16 %v4008, %v4007
  %v4018 = vsel %vm3865, %v3984, 0
  %4020 = vmatpush.bf16.msra.mxu0 0
  %4021 = vmatpush.bf16.msra.mxu0 0
  %4022 = vmatpush.bf16.msra.mxu0 0
  %4023 = vmatpush.bf16.msra.mxu0 0
  %4024 = vmatpush.bf16.msra.mxu0 %v4012
  %4025 = vmatpush.bf16.msra.mxu0 %v4011
  %4026 = vmatpush.bf16.msra.mxu0 %v4010
  %4027 = vmatpush.bf16.msra.mxu0 %v4009
  %4028 = vmatmul.bf16.gmra.mxu0 %v4018
  %v4029 = vpop.f32.mrf.mxu0
  %v4030 = vadd.f32 0.0, %v4029
  %v4031 = vpop.f32.mrf.mxu0
  %4032 = vdwg.mxu0
  %v4033 = vadd.f32 %v3919, %v4030
  %v4034 = vld [vmem:[#allocation4 + $0x2] sm:$0x7]
  %4036 = vst [vmem:[#allocation1] ss:$9 sm:$0xff] %v4034
  %v4037 = vld [vmem:[#allocation1] sm:$0xff]
  %v4039 = vld [vmem:[#allocation1 + $0x9] sm:$0xff]
  %v4041 = vld [vmem:[#allocation1 + $0x12] sm:$0xff]
  %4043 = vrot.lane.b32.xlu0 %v4037, 48
  %v4044 = vpop.permute.xlu0 %4043
  %4045 = vrot.lane.b32.xlu0 %v4039, 48
  %v4046 = vpop.permute.xlu0 %4045
  %4047 = vrot.lane.b32.xlu0 %v4041, 48
  %v4048 = vpop.permute.xlu0 %4047
  %v4049 = vsel %vm962, %v4044, %v4046
  %v4050 = vsel %vm962, %v4046, %v4048
  %v4054 = vsel %vm2171, %v4048, 0
  %4056 = vmatpush.bf16.msra.mxu0 %v3683
  %4057 = vmatpush.bf16.msra.mxu0 %v3682
  %4058 = vmatpush.bf16.msra.mxu0 %v3681
  %4059 = vmatpush.bf16.msra.mxu0 %v3680
  %4060 = vmatpush.bf16.msra.mxu0 %v3679
  %4061 = vmatpush.bf16.msra.mxu0 %v3678
  %4062 = vmatpush.bf16.msra.mxu0 %v3677
  %4063 = vmatpush.bf16.msra.mxu0 %v3676
  %4064 = vmatmul.bf16.gmra.mxu0 %v4049
  %v4065 = vpop.f32.mrf.mxu0
  %v4066 = vadd.f32 %v3597, %v4065
  %v4067 = vpop.f32.mrf.mxu0
  %4068 = vdwg.mxu0
  %4069 = vmatpush.bf16.msra.mxu0 %v3691
  %4070 = vmatpush.bf16.msra.mxu0 %v3690
  %4071 = vmatpush.bf16.msra.mxu0 %v3689
  %4072 = vmatpush.bf16.msra.mxu0 %v3688
  %4073 = vmatpush.bf16.msra.mxu0 %v3687
  %4074 = vmatpush.bf16.msra.mxu0 %v3686
  %4075 = vmatpush.bf16.msra.mxu0 %v3685
  %4076 = vmatpush.bf16.msra.mxu0 %v3684
  %4077 = vmatmul.bf16.gmra.mxu0 %v4050
  %v4078 = vpop.f32.mrf.mxu0
  %v4079 = vadd.f32 %v4066, %v4078
  %v4080 = vpop.f32.mrf.mxu0
  %4081 = vdwg.mxu0
  %4082 = vmatpush.bf16.msra.mxu0 0
  %4083 = vmatpush.bf16.msra.mxu0 0
  %4084 = vmatpush.bf16.msra.mxu0 0
  %4085 = vmatpush.bf16.msra.mxu0 0
  %4086 = vmatpush.bf16.msra.mxu0 0
  %4087 = vmatpush.bf16.msra.mxu0 0
  %4088 = vmatpush.bf16.msra.mxu0 %v3714
  %4089 = vmatpush.bf16.msra.mxu0 %v3692
  %4090 = vmatmul.bf16.gmra.mxu0 %v4054
  %v4091 = vpop.f32.mrf.mxu0
  %v4092 = vadd.f32 %v4079, %v4091
  %v4093 = vpop.f32.mrf.mxu0
  %4094 = vdwg.mxu0
  %v4095 = vmax.f32 %v4092, 0.0
  %v4096 = vpack.c.bf16 %v4095, %v4095
  %v4097 = vld [vmem:[%s7 + $0x60] sm:$0xf]
  %v4098 = vld [vmem:[%s7 + $0x64] sm:$0xf]
  %v4099 = vld [vmem:[%s7 + $0x68] sm:$0xf]
  %v4100 = vld [vmem:[%s7 + $0x6c] sm:$0xf]
  %v4101 = vld [vmem:[%s7 + $0x70] sm:$0xf]
  %v4102 = vld [vmem:[%s7 + $0x74] sm:$0xf]
  %v4103 = vld [vmem:[%s7 + $0x78] sm:$0xf]
  %v4104 = vld [vmem:[%s7 + $0x7c] sm:$0xf]
  %v4113 = vunpack.c.l.b16 %v4097
  %v4114 = vunpack.c.l.b16 %v4098
  %v4115 = vunpack.c.l.b16 %v4099
  %v4116 = vunpack.c.l.b16 %v4100
  %v4117 = vunpack.c.l.b16 %v4101
  %v4118 = vunpack.c.l.b16 %v4102
  %v4119 = vunpack.c.l.b16 %v4103
  %v4120 = vunpack.c.l.b16 %v4104
  %v4121 = vpack.c.b16 %v4114, %v4113
  %v4122 = vpack.c.b16 %v4116, %v4115
  %v4123 = vpack.c.b16 %v4118, %v4117
  %v4124 = vpack.c.b16 %v4120, %v4119
  %v4130 = vsel %vm3865, %v4096, 0
  %4132 = vmatpush.bf16.msra.mxu0 0
  %4133 = vmatpush.bf16.msra.mxu0 0
  %4134 = vmatpush.bf16.msra.mxu0 0
  %4135 = vmatpush.bf16.msra.mxu0 0
  %4136 = vmatpush.bf16.msra.mxu0 %v4124
  %4137 = vmatpush.bf16.msra.mxu0 %v4123
  %4138 = vmatpush.bf16.msra.mxu0 %v4122
  %4139 = vmatpush.bf16.msra.mxu0 %v4121
  %4140 = vmatmul.bf16.gmra.mxu0 %v4130
  %v4141 = vpop.f32.mrf.mxu0
  %v4142 = vadd.f32 0.0, %v4141
  %v4143 = vpop.f32.mrf.mxu0
  %4144 = vdwg.mxu0
  %v4145 = vadd.f32 %v4033, %v4142
  %v4146 = vld [vmem:[%s8] sm:$0x1]
  %v4148 = vperm.slane %v4146, 0
  %v4150 = vadd.f32 %v4145, %v4148
  %4151 = vst [vmem:[%s9] sm:$0x3] %v4150
  // Predicated region
  $region38: #{discriminator_forward.1} parent=0 // pred_check
    _
  $region39: #{discriminator_forward.1} parent=0 // pred_check_branch
    %4153 = sbr.rel (0) target = $region41
  $region40: #{discriminator_forward.1} parent=0 // pred_region
    _
  $region41: #{discriminator_forward.1} parent=0 // pred_fallthru
    _
  // Predicated region
  $region42: #{discriminator_forward.1} parent=0 // pred_check
    _
  $region43: #{discriminator_forward.1} parent=0 // pred_check_branch
    %4155 = sbr.rel (0) target = $region45
  $region44: #{discriminator_forward.1} parent=0 // pred_region
    _
  $region45: #{discriminator_forward.1} parent=0 // pred_fallthru
    _

</llo_original>
